<compile_context>
chip_gen: v7x
topology: tpu7x:2x2x1
jax: 0.10.0
libtpu: 0.0.40
codegen_flags: <defaults>
</compile_context>

<pallas_src>
import functools

import jax
import jax.numpy as jnp
from jax.experimental import pallas as pl
from jax.experimental.pallas import tpu as pltpu


# --------------------------------------------------------------------------- kernels

def _gn_silu(z, g, b):
    """GroupNorm(1, C) over the whole per-sample slab + SiLU, single-pass statistics."""
    n_el = z.size
    s1 = jnp.sum(z)
    s2 = jnp.sum(z * z)
    mean = s1 / n_el
    var = jnp.maximum(s2 / n_el - mean * mean, 0.0)
    zn = (z - mean) * jax.lax.rsqrt(var + 1e-5) * g + b
    return zn * pl.reciprocal(1.0 + jnp.exp(-zn), approx=True)          # SiLU


def _front_kernel(x_ref, w_ref, g_ref, b_ref, de_ref, e_ref, *, nb, c, ow):
    """Fused [Transformer.conv | Encoder.conv] (3x3, s2, p1) + GroupNorm(1,C) + SiLU.

    x_ref: (nb, 4*Cin, P) parity-split input; rows = [ee|eo|oe|oo] x Cin, lanes = i*ow+j.
    w_ref: (2*C, 16*Cin) bf16 weights; columns = [shift-group(4)] x [parity(4)] x Cin.
    The 3 shifted operand groups (values at (i,j-1), (i-1,j), (i-1,j-1)) are built
    in-kernel with pltpu.roll + boundary masks, then one GEMM computes both conv paths.
    """
    kp, p = x_ref.shape[1], x_ref.shape[2]
    lane = jax.lax.broadcasted_iota(jnp.int32, (kp, p), 1)
    mj = (lane % ow) != 0            # j > 0  -> (i, j-1) tap in-bounds
    mi = lane >= ow                  # i > 0  -> (i-1, j) tap in-bounds
    w = w_ref[...]
    g = g_ref[...]
    b = b_ref[...]
    for s in range(nb):              # batch folded into the block; statically unrolled
        xp = x_ref[s].astype(jnp.float32)
        zero = jnp.zeros_like(xp)
        r_j = jnp.where(mj, pltpu.roll(xp, shift=1, axis=1), zero)        # (i, j-1)
        r_i = jnp.where(mi, pltpu.roll(xp, shift=ow, axis=1), zero)       # (i-1, j)
        r_ij = jnp.where(mj & mi, pltpu.roll(xp, shift=ow + 1, axis=1), zero)  # (i-1, j-1)
        stacked = jnp.concatenate([xp, r_j, r_i, r_ij], axis=0).astype(jnp.bfloat16)
        y = jnp.dot(w, stacked, preferred_element_type=jnp.float32)       # (2C, P)
        de_ref[s] = _gn_silu(y[:c], g[:c], b[:c]).astype(de_ref.dtype)    # Transformer.conv
        e_ref[s] = _gn_silu(y[c:], g[c:], b[c:]).astype(e_ref.dtype)      # Encoder.conv


def _decoder_kernel(x_ref, w1_ref, g_ref, b_ref, w2_ref, o_ref, *, nb, ow):
    """Fused ConvTranspose2d(C,C,3,s2,p1,op1) -> GN(1,C) -> SiLU -> ConvT(1x1) -> sigmoid.

    Sub-pixel formulation: the 4 output parity planes (ee, eo, oe, oo) are rows of a
    (4C, P) slab produced by ONE (4C, 4C)x(4C, P) GEMM whose operand stacks
    [x(i,j); x(i,j+1); x(i+1,j); x(i+1,j+1)]; shifted taps built in-kernel (roll+mask).
    """
    cc, p = x_ref.shape[1], x_ref.shape[2]
    lane = jax.lax.broadcasted_iota(jnp.int32, (cc, p), 1)
    mj = (lane % ow) != (ow - 1)     # j < ow-1 -> (i, j+1) tap in-bounds
    mi = lane < (p - ow)             # i < oh-1 -> (i+1, j) tap in-bounds
    w1 = w1_ref[...]
    w2 = w2_ref[...]
    g = g_ref[...]
    b = b_ref[...]
    for s in range(nb):
        x = x_ref[s].astype(jnp.float32)
        zero = jnp.zeros_like(x)
        t1 = jnp.where(mj, pltpu.roll(x, shift=p - 1, axis=1), zero)          # x(i, j+1)
        t2 = jnp.where(mi, pltpu.roll(x, shift=p - ow, axis=1), zero)         # x(i+1, j)
        t3 = jnp.where(mj & mi, pltpu.roll(x, shift=p - ow - 1, axis=1), zero)  # x(i+1, j+1)
        stacked = jnp.concatenate([x, t1, t2, t3], axis=0).astype(jnp.bfloat16)  # (4C, P)
        y = jnp.dot(w1, stacked, preferred_element_type=jnp.float32)             # (4C, P)
        y = _gn_silu(y, g, b)
        z = jnp.dot(w2, y.astype(jnp.bfloat16), preferred_element_type=jnp.float32)
        o_ref[s] = pl.reciprocal(1.0 + jnp.exp(-z), approx=True).astype(o_ref.dtype)


# --------------------------------------------------------------------------- pallas wrappers

def _n_blocks(n):
    # 2 blocks -> one per TensorCore on v7x; on single-TC v5e/v6e it is one extra
    # (~0.35us) grid step, which is negligible. Fallback to 1 block if n is odd.
    return 2 if n % 2 == 0 else 1


def front_conv_gn_silu(x_par, w_front, g_cat, b_cat, d_model, ow):
    n, k4, p = x_par.shape
    c2, k16 = w_front.shape
    nblk = _n_blocks(n)
    nb = n // nblk
    kernel = functools.partial(_front_kernel, nb=nb, c=d_model, ow=ow)
    return pl.pallas_call(
        kernel,
        out_shape=(jax.ShapeDtypeStruct((n, d_model, p), jnp.bfloat16),   # decoder input (bf16 GEMM operand)
                   jax.ShapeDtypeStruct((n, d_model, p), jnp.float32)),   # encoder output
        grid=(nblk,),
        in_specs=[
            pl.BlockSpec((nb, k4, p), lambda i: (i, 0, 0)),
            pl.BlockSpec((c2, k16), lambda i: (0, 0)),
            pl.BlockSpec((c2, 1), lambda i: (0, 0)),
            pl.BlockSpec((c2, 1), lambda i: (0, 0)),
        ],
        out_specs=(pl.BlockSpec((nb, d_model, p), lambda i: (i, 0, 0)),
                   pl.BlockSpec((nb, d_model, p), lambda i: (i, 0, 0))),
        compiler_params=pltpu.CompilerParams(dimension_semantics=("parallel",)),
    )(x_par, w_front, g_cat, b_cat)


def decoder_tail(x_all, w1_cat, g_t, b_t, w2_blk, ow):
    m, c, p = x_all.shape
    r = w1_cat.shape[0]              # 4 * d_model
    co = w2_blk.shape[0]             # 4 * channel
    nblk = _n_blocks(m)
    nb = m // nblk
    kernel = functools.partial(_decoder_kernel, nb=nb, ow=ow)
    return pl.pallas_call(
        kernel,
        out_shape=jax.ShapeDtypeStruct((m, co, p), jnp.float32),
        grid=(nblk,),
        in_specs=[
            pl.BlockSpec((nb, c, p), lambda i: (i, 0, 0)),
            pl.BlockSpec((r, r), lambda i: (0, 0)),
            pl.BlockSpec((r, 1), lambda i: (0, 0)),
            pl.BlockSpec((r, 1), lambda i: (0, 0)),
            pl.BlockSpec((co, r), lambda i: (0, 0)),
        ],
        out_specs=pl.BlockSpec((nb, co, p), lambda i: (i, 0, 0)),
        compiler_params=pltpu.CompilerParams(dimension_semantics=("parallel",)),
    )(x_all, w1_cat, g_t, b_t, w2_blk)


# --------------------------------------------------------------------------- XLA glue (one-time / tiny)

def _parity_split(x):
    """(N, C, H, W) -> (N, 4*C, (H//2)*(W//2)); parity planes (ee, eo, oe, oo) x C."""
    n, c, h, w = x.shape
    oh, ow = h // 2, w // 2
    xp = x.reshape(n, c, oh, 2, ow, 2).transpose(0, 3, 5, 1, 2, 4)
    return xp.reshape(n, 4 * c, oh * ow)


def _parity_to_nchw(z, channel, oh, ow):
    """(M, 4*channel, oh*ow) parity-major -> (M, channel, 2*oh, 2*ow) depth-to-space."""
    m = z.shape[0]
    zp = z.reshape(m, 2, 2, channel, oh, ow)               # (m, ph, pw, c, i, j)
    return zp.transpose(0, 3, 4, 1, 5, 2).reshape(m, channel, 2 * oh, 2 * ow)


def _front_gemm_weights(w):
    """(Cout, Cin, 3, 3) stride-2 conv weight -> (Cout, 16*Cin) GEMM weight.

    Columns match the in-kernel operand stack [x_par ; (i,j-1) ; (i-1,j) ; (i-1,j-1)],
    each group ordered parity-major (ee, eo, oe, oo) x Cin.
    """
    co, ci = w.shape[:2]
    z = jnp.zeros((co, ci), w.dtype)
    t = lambda a, b: w[:, :, a, b]
    groups = [
        [t(1, 1), t(1, 2), t(2, 1), t(2, 2)],   # tap at (i, j)
        [z,       t(1, 0), z,       t(2, 0)],   # tap at (i, j-1)
        [z,       z,       t(0, 1), t(0, 2)],   # tap at (i-1, j)
        [z,       z,       z,       t(0, 0)],   # tap at (i-1, j-1)
    ]
    return jnp.concatenate([m for grp in groups for m in grp], axis=1)   # (Cout, 16*Cin)


def _subpixel_ct3x3_weights(wt):
    """(Cin, Cout, 3, 3) ConvTranspose2d(s2, p1, op1) weight -> (4*Cout, 4*Cin) GEMM weight.

    Row blocks = output parity (ee, eo, oe, oo); column blocks = input taps
    [x(i,j), x(i,j+1), x(i+1,j), x(i+1,j+1)] matching the in-kernel operand stack.
    """
    cin, cout = wt.shape[:2]
    m = lambda a, b: wt[:, :, a, b].T                      # (Cout, Cin)
    z = jnp.zeros((cout, cin), wt.dtype)
    tap0 = jnp.concatenate([m(1, 1), m(1, 2), m(2, 1), m(2, 2)], axis=0)
    tap1 = jnp.concatenate([z,       m(1, 0), z,       m(2, 0)], axis=0)
    tap2 = jnp.concatenate([z,       z,       m(0, 1), m(0, 2)], axis=0)
    tap3 = jnp.concatenate([z,       z,       z,       m(0, 0)], axis=0)
    return jnp.concatenate([tap0, tap1, tap2, tap3], axis=1)             # (4*Cout, 4*Cin)


# --------------------------------------------------------------------------- model

def init_params(key, channel, d_model):
    ks = jax.random.split(key, 4)
    s = 0.05
    return {
        # Transformer.conv (bias=False in the reference module)
        "t_conv_w": jax.random.normal(ks[0], (d_model, channel, 3, 3), jnp.float32) * s,
        "t_gn_g": jnp.ones((d_model,), jnp.float32),
        "t_gn_b": jnp.zeros((d_model,), jnp.float32),
        # Encoder.conv
        "e_conv_w": jax.random.normal(ks[1], (d_model, channel, 3, 3), jnp.float32) * s,
        "e_gn_g": jnp.ones((d_model,), jnp.float32),
        "e_gn_b": jnp.zeros((d_model,), jnp.float32),
        # Decoder.conv (shared across decoder iterations, as in the PyTorch module)
        "d_ct1_w": jax.random.normal(ks[2], (d_model, d_model, 3, 3), jnp.float32) * s,
        "d_gn_g": jnp.ones((d_model,), jnp.float32),
        "d_gn_b": jnp.zeros((d_model,), jnp.float32),
        "d_ct2_w": jax.random.normal(ks[3], (d_model, channel, 1, 1), jnp.float32) * s,
    }


def transformer_forward(src, params, n_enc, n_dec, d_model, channel):
    B, T, cin, H, W = src.shape                            # H = W = 32
    N = B * T
    oh, ow = H // 2, W // 2                                # 16, 16
    P = oh * ow                                            # 256

    # ---- front: Transformer.conv + Encoder.conv fused into one pallas_call ----
    x_par = _parity_split(src.reshape(N, cin, H, W)).astype(jnp.bfloat16)      # (N, 16, 256)
    w_front = jnp.concatenate([_front_gemm_weights(params["t_conv_w"]),
                               _front_gemm_weights(params["e_conv_w"])],
                              axis=0).astype(jnp.bfloat16)                     # (64, 64)
    g_cat = jnp.concatenate([params["t_gn_g"], params["e_gn_g"]]).reshape(2 * d_model, 1)
    b_cat = jnp.concatenate([params["t_gn_b"], params["e_gn_b"]]).reshape(2 * d_model, 1)
    de_flat, e_flat = front_conv_gn_silu(x_par, w_front, g_cat, b_cat, d_model, ow)

    e_outputs = e_flat.reshape(B, T, d_model, oh, ow)
    for _ in range(n_enc):
        # TODO(synk): EncoderLayer definition is not part of the provided source; identity stand-in.
        e_outputs = e_outputs

    # ---- decoder: all n_dec steps in ONE pallas_call (conv weights are shared) ----
    w1_cat = _subpixel_ct3x3_weights(params["d_ct1_w"]).astype(jnp.bfloat16)   # (128, 128)
    g_t = jnp.tile(params["d_gn_g"].reshape(1, d_model), (4, 1)).reshape(4 * d_model, 1)
    b_t = jnp.tile(params["d_gn_b"].reshape(1, d_model), (4, 1)).reshape(4 * d_model, 1)
    w2_blk = jnp.kron(jnp.eye(4, dtype=jnp.float32),
                      params["d_ct2_w"].reshape(d_model, channel).T).astype(jnp.bfloat16)  # (16, 128)

    x = de_flat.reshape(B, T, d_model, P)
    step_inputs = []
    for _ in range(n_dec):
        # TODO(synk): DecoderLayer definition is not part of the provided source; identity
        # stand-in (ignores e_outputs); the per-step structure of the module is preserved.
        x = x
        step_inputs.append(x.reshape(N, d_model, P))
    x_all = jnp.concatenate(step_inputs, axis=0)                               # (n_dec*N, 32, 256)

    z_all = decoder_tail(x_all, w1_cat, g_t, b_t, w2_blk, ow)                  # (n_dec*N, 16, 256)
    imgs = _parity_to_nchw(z_all, channel, oh, ow)                             # (n_dec*N, ch, 32, 32)
    imgs = imgs.reshape(n_dec, B, T, channel, H, W).transpose(1, 2, 0, 3, 4, 5)
    # sigmoid already applied in-kernel; cat over the channel dim as in the PyTorch module.
    return imgs.reshape(B, T, n_dec * channel, H, W)


if __name__ == "__main__":
    # opt: patch_size=2 -> channel=4, d_model=32, n_encoder_layers=2, n_decoder_layers=2, heads=4
    patch_size, d_model, n_enc, n_dec = 2, 32, 2, 2
    channel = patch_size * patch_size
    B, T = 2, 2

    key = jax.random.PRNGKey(0)
    k_src, k_par = jax.random.split(key)
    src = jax.random.normal(k_src, (B, T, channel, 32, 32), jnp.float32)
    params = init_params(k_par, channel, d_model)

    fwd = jax.jit(lambda s, p: transformer_forward(s, p, n_enc, n_dec, d_model, channel))
    out = fwd(src, params)
    jax.block_until_ready(out)

    assert out.shape == (B, T, n_dec * channel, 32, 32), out.shape
    assert bool(jnp.all(jnp.isfinite(out)))
    # sigmoid range (small slack for the approx-reciprocal sigmoid epilogue)
    assert bool(jnp.all((out > -1e-2) & (out < 1.0 + 1e-2)))
    print("KERNEL_OK")
</pallas_src>

<mosaic_0001>
module attributes {stable_mosaic.version = 11 : i64} {
  func.func @_front_kernel(%arg0: i32, %arg1: memref<2x16x256xbf16, #tpu.memory_space<vmem>>, %arg2: memref<64x64xbf16, #tpu.memory_space<vmem>>, %arg3: memref<64x1xf32, #tpu.memory_space<vmem>>, %arg4: memref<64x1xf32, #tpu.memory_space<vmem>>, %arg5: memref<2x32x256xbf16, #tpu.memory_space<vmem>>, %arg6: memref<2x32x256xf32, #tpu.memory_space<vmem>>) attributes {dimension_semantics = [#tpu.dimension_semantics<parallel>], iteration_bounds = array<i64: 2>, scalar_prefetch = 0 : i64, scratch_operands = 0 : i64, tpu.core_type = #tpu.core_type<tc>, window_params = [{transform_indices = @transform_0, window_bounds = array<i64: 2, 16, 256>}, {pipeline_mode = #tpu.pipeline_mode<synchronous>, transform_indices = @transform_1, window_bounds = array<i64: 64, 64>}, {pipeline_mode = #tpu.pipeline_mode<synchronous>, transform_indices = @transform_2, window_bounds = array<i64: 64, 1>}, {pipeline_mode = #tpu.pipeline_mode<synchronous>, transform_indices = @transform_3, window_bounds = array<i64: 64, 1>}, {transform_indices = @transform_4, window_bounds = array<i64: 2, 32, 256>}, {transform_indices = @transform_5, window_bounds = array<i64: 2, 32, 256>}]} {
    %0 = tpu.iota {dimensions = array<i32: 1>} : vector<16x256xi32>
    %c16_i32 = arith.constant 16 : i32
    %c0_i32 = arith.constant 0 : i32
    %1 = arith.cmpi eq, %c16_i32, %c0_i32 : i32
    %c1_i32 = arith.constant 1 : i32
    %2 = arith.select %1, %c1_i32, %c16_i32 : i32
    %3 = vector.broadcast %2 : i32 to vector<16x256xi32>
    %4 = arith.remsi %0, %3 : vector<16x256xi32>
    %c0_i32_0 = arith.constant 0 : i32
    %5 = vector.broadcast %c0_i32_0 : i32 to vector<16x256xi32>
    %6 = arith.cmpi ne, %4, %5 : vector<16x256xi32>
    %c0_i32_1 = arith.constant 0 : i32
    %7 = vector.broadcast %c0_i32_1 : i32 to vector<16x256xi32>
    %8 = arith.cmpi slt, %4, %7 : vector<16x256xi32>
    %c0_i32_2 = arith.constant 0 : i32
    %9 = arith.cmpi slt, %2, %c0_i32_2 : i32
    %10 = vector.broadcast %9 : i1 to vector<16x256xi1>
    %11 = vector.broadcast %10 : vector<16x256xi1> to vector<16x256xi1>
    %12 = arith.xori %8, %11 : vector<16x256xi1>
    %13 = arith.andi %12, %6 : vector<16x256xi1>
    %14 = vector.broadcast %2 : i32 to vector<16x256xi32>
    %15 = arith.addi %4, %14 : vector<16x256xi32>
    %16 = arith.select %13, %15, %4 : vector<16x256xi1>, vector<16x256xi32>
    %c0_i32_3 = arith.constant 0 : i32
    %17 = vector.broadcast %c0_i32_3 : i32 to vector<16x256xi32>
    %18 = arith.cmpi ne, %16, %17 : vector<16x256xi32>
    %c16_i32_4 = arith.constant 16 : i32
    %19 = vector.broadcast %c16_i32_4 : i32 to vector<16x256xi32>
    %20 = arith.cmpi sge, %0, %19 : vector<16x256xi32>
    %c0 = arith.constant 0 : index
    %c0_5 = arith.constant 0 : index
    %21 = vector.load %arg2[%c0, %c0_5] : memref<64x64xbf16, #tpu.memory_space<vmem>>, vector<64x64xbf16>
    %c0_6 = arith.constant 0 : index
    %c0_7 = arith.constant 0 : index
    %22 = vector.load %arg3[%c0_6, %c0_7] : memref<64x1xf32, #tpu.memory_space<vmem>>, vector<64x1xf32>
    %c0_8 = arith.constant 0 : index
    %c0_9 = arith.constant 0 : index
    %23 = vector.load %arg4[%c0_8, %c0_9] : memref<64x1xf32, #tpu.memory_space<vmem>>, vector<64x1xf32>
    %c0_10 = arith.constant 0 : index
    %c0_11 = arith.constant 0 : index
    %c0_12 = arith.constant 0 : index
    %24 = vector.load %arg1[%c0_10, %c0_11, %c0_12] : memref<2x16x256xbf16, #tpu.memory_space<vmem>>, vector<1x16x256xbf16>
    %25 = vector.shape_cast %24 : vector<1x16x256xbf16> to vector<16x256xbf16>
    %26 = arith.extf %25 : vector<16x256xbf16> to vector<16x256xf32>
    %cst = arith.constant 0.000000e+00 : f32
    %27 = vector.broadcast %cst : f32 to vector<16x256xf32>
    %c1_i32_13 = arith.constant 1 : i32
    %28 = tpu.dynamic_rotate %26 by %c1_i32_13 dim 1 : vector<16x256xf32>, i32 -> vector<16x256xf32>
    %29 = arith.select %18, %28, %27 : vector<16x256xi1>, vector<16x256xf32>
    %c16_i32_14 = arith.constant 16 : i32
    %30 = tpu.dynamic_rotate %26 by %c16_i32_14 dim 1 : vector<16x256xf32>, i32 -> vector<16x256xf32>
    %31 = arith.select %20, %30, %27 : vector<16x256xi1>, vector<16x256xf32>
    %32 = arith.andi %18, %20 : vector<16x256xi1>
    %c17_i32 = arith.constant 17 : i32
    %33 = tpu.dynamic_rotate %26 by %c17_i32 dim 1 : vector<16x256xf32>, i32 -> vector<16x256xf32>
    %34 = arith.select %32, %33, %27 : vector<16x256xi1>, vector<16x256xf32>
    %35 = tpu.concatenate %26, %29, %31, %34 in 0 : vector<16x256xf32>, vector<16x256xf32>, vector<16x256xf32>, vector<16x256xf32> -> vector<64x256xf32>
    %36 = arith.truncf %35 : vector<64x256xf32> to vector<64x256xbf16>
    %cst_15 = arith.constant dense<0.000000e+00> : vector<64x256xf32>
    %37 = tpu.matmul %21, %36, %cst_15 {dimension_numbers = #tpu.dot_dimension_numbers<[1], [0], [0], [1], [0, 0, 1, 1], [], []>} : vector<64x64xbf16>, vector<64x256xbf16>, vector<64x256xf32> -> vector<64x256xf32>
    %38 = vector.extract_strided_slice %37 {offsets = [0, 0], sizes = [32, 256], strides = [1, 1]} : vector<64x256xf32> to vector<32x256xf32>
    %39 = vector.extract_strided_slice %22 {offsets = [0, 0], sizes = [32, 1], strides = [1, 1]} : vector<64x1xf32> to vector<32x1xf32>
    %40 = vector.extract_strided_slice %23 {offsets = [0, 0], sizes = [32, 1], strides = [1, 1]} : vector<64x1xf32> to vector<32x1xf32>
    %41 = vector.shape_cast %38 : vector<32x256xf32> to vector<1x32x256xf32>
    %cst_16 = arith.constant dense<0.000000e+00> : vector<1xf32>
    %42 = vector.multi_reduction <add>, %41, %cst_16 [1, 2] : vector<1x32x256xf32> to vector<1xf32>
    %43 = vector.shape_cast %42 : vector<1xf32> to vector<1x1x1xf32>
    %44 = vector.extract %43[0, 0, 0] : f32 from vector<1x1x1xf32>
    %45 = arith.mulf %38, %38 : vector<32x256xf32>
    %46 = vector.shape_cast %45 : vector<32x256xf32> to vector<1x32x256xf32>
    %cst_17 = arith.constant dense<0.000000e+00> : vector<1xf32>
    %47 = vector.multi_reduction <add>, %46, %cst_17 [1, 2] : vector<1x32x256xf32> to vector<1xf32>
    %48 = vector.shape_cast %47 : vector<1xf32> to vector<1x1x1xf32>
    %49 = vector.extract %48[0, 0, 0] : f32 from vector<1x1x1xf32>
    %cst_18 = arith.constant 8.192000e+03 : f32
    %50 = arith.divf %44, %cst_18 : f32
    %cst_19 = arith.constant 8.192000e+03 : f32
    %51 = arith.divf %49, %cst_19 : f32
    %52 = arith.mulf %50, %50 : f32
    %53 = arith.subf %51, %52 : f32
    %cst_20 = arith.constant 0.000000e+00 : f32
    %54 = arith.maximumf %53, %cst_20 : f32
    %55 = vector.broadcast %50 : f32 to vector<32x256xf32>
    %56 = arith.subf %38, %55 : vector<32x256xf32>
    %cst_21 = arith.constant 9.99999974E-6 : f32
    %57 = arith.addf %54, %cst_21 : f32
    %58 = math.rsqrt %57 : f32
    %59 = vector.broadcast %58 : f32 to vector<32x256xf32>
    %60 = arith.mulf %56, %59 : vector<32x256xf32>
    %61 = vector.broadcast %39 : vector<32x1xf32> to vector<32x256xf32>
    %62 = arith.mulf %60, %61 : vector<32x256xf32>
    %63 = vector.broadcast %40 : vector<32x1xf32> to vector<32x256xf32>
    %64 = arith.addf %62, %63 : vector<32x256xf32>
    %cst_22 = arith.constant 0.000000e+00 : f32
    %65 = vector.broadcast %cst_22 : f32 to vector<32x256xf32>
    %66 = arith.subf %65, %64 : vector<32x256xf32>
    %67 = math.exp %66 : vector<32x256xf32>
    %cst_23 = arith.constant 1.000000e+00 : f32
    %68 = vector.broadcast %cst_23 : f32 to vector<32x256xf32>
    %69 = arith.addf %68, %67 : vector<32x256xf32>
    %70 = tpu.reciprocal %69 {approx = true} : vector<32x256xf32> -> vector<32x256xf32>
    %71 = arith.mulf %64, %70 : vector<32x256xf32>
    %72 = arith.truncf %71 : vector<32x256xf32> to vector<32x256xbf16>
    %c0_24 = arith.constant 0 : index
    %c0_25 = arith.constant 0 : index
    %c0_26 = arith.constant 0 : index
    %73 = vector.load %arg5[%c0_24, %c0_25, %c0_26] : memref<2x32x256xbf16, #tpu.memory_space<vmem>>, vector<1x32x256xbf16>
    %74 = vector.shape_cast %73 : vector<1x32x256xbf16> to vector<32x256xbf16>
    %75 = vector.shape_cast %72 : vector<32x256xbf16> to vector<1x32x256xbf16>
    tpu.vector_store %arg5[%c0_24, %c0_25, %c0_26], %75 {strides = array<i32>} : memref<2x32x256xbf16, #tpu.memory_space<vmem>>, vector<1x32x256xbf16>,
    %76 = vector.extract_strided_slice %37 {offsets = [32, 0], sizes = [32, 256], strides = [1, 1]} : vector<64x256xf32> to vector<32x256xf32>
    %77 = vector.extract_strided_slice %22 {offsets = [32, 0], sizes = [32, 1], strides = [1, 1]} : vector<64x1xf32> to vector<32x1xf32>
    %78 = vector.extract_strided_slice %23 {offsets = [32, 0], sizes = [32, 1], strides = [1, 1]} : vector<64x1xf32> to vector<32x1xf32>
    %79 = vector.shape_cast %76 : vector<32x256xf32> to vector<1x32x256xf32>
    %cst_27 = arith.constant dense<0.000000e+00> : vector<1xf32>
    %80 = vector.multi_reduction <add>, %79, %cst_27 [1, 2] : vector<1x32x256xf32> to vector<1xf32>
    %81 = vector.shape_cast %80 : vector<1xf32> to vector<1x1x1xf32>
    %82 = vector.extract %81[0, 0, 0] : f32 from vector<1x1x1xf32>
    %83 = arith.mulf %76, %76 : vector<32x256xf32>
    %84 = vector.shape_cast %83 : vector<32x256xf32> to vector<1x32x256xf32>
    %cst_28 = arith.constant dense<0.000000e+00> : vector<1xf32>
    %85 = vector.multi_reduction <add>, %84, %cst_28 [1, 2] : vector<1x32x256xf32> to vector<1xf32>
    %86 = vector.shape_cast %85 : vector<1xf32> to vector<1x1x1xf32>
    %87 = vector.extract %86[0, 0, 0] : f32 from vector<1x1x1xf32>
    %cst_29 = arith.constant 8.192000e+03 : f32
    %88 = arith.divf %82, %cst_29 : f32
    %cst_30 = arith.constant 8.192000e+03 : f32
    %89 = arith.divf %87, %cst_30 : f32
    %90 = arith.mulf %88, %88 : f32
    %91 = arith.subf %89, %90 : f32
    %cst_31 = arith.constant 0.000000e+00 : f32
    %92 = arith.maximumf %91, %cst_31 : f32
    %93 = vector.broadcast %88 : f32 to vector<32x256xf32>
    %94 = arith.subf %76, %93 : vector<32x256xf32>
    %cst_32 = arith.constant 9.99999974E-6 : f32
    %95 = arith.addf %92, %cst_32 : f32
    %96 = math.rsqrt %95 : f32
    %97 = vector.broadcast %96 : f32 to vector<32x256xf32>
    %98 = arith.mulf %94, %97 : vector<32x256xf32>
    %99 = vector.broadcast %77 : vector<32x1xf32> to vector<32x256xf32>
    %100 = arith.mulf %98, %99 : vector<32x256xf32>
    %101 = vector.broadcast %78 : vector<32x1xf32> to vector<32x256xf32>
    %102 = arith.addf %100, %101 : vector<32x256xf32>
    %cst_33 = arith.constant 0.000000e+00 : f32
    %103 = vector.broadcast %cst_33 : f32 to vector<32x256xf32>
    %104 = arith.subf %103, %102 : vector<32x256xf32>
    %105 = math.exp %104 : vector<32x256xf32>
    %cst_34 = arith.constant 1.000000e+00 : f32
    %106 = vector.broadcast %cst_34 : f32 to vector<32x256xf32>
    %107 = arith.addf %106, %105 : vector<32x256xf32>
    %108 = tpu.reciprocal %107 {approx = true} : vector<32x256xf32> -> vector<32x256xf32>
    %109 = arith.mulf %102, %108 : vector<32x256xf32>
    %c0_35 = arith.constant 0 : index
    %c0_36 = arith.constant 0 : index
    %c0_37 = arith.constant 0 : index
    %110 = vector.load %arg6[%c0_35, %c0_36, %c0_37] : memref<2x32x256xf32, #tpu.memory_space<vmem>>, vector<1x32x256xf32>
    %111 = vector.shape_cast %110 : vector<1x32x256xf32> to vector<32x256xf32>
    %112 = vector.shape_cast %109 : vector<32x256xf32> to vector<1x32x256xf32>
    tpu.vector_store %arg6[%c0_35, %c0_36, %c0_37], %112 {strides = array<i32>} : memref<2x32x256xf32, #tpu.memory_space<vmem>>, vector<1x32x256xf32>,
    %c1 = arith.constant 1 : index
    %c0_38 = arith.constant 0 : index
    %c0_39 = arith.constant 0 : index
    %113 = vector.load %arg1[%c1, %c0_38, %c0_39] : memref<2x16x256xbf16, #tpu.memory_space<vmem>>, vector<1x16x256xbf16>
    %114 = vector.shape_cast %113 : vector<1x16x256xbf16> to vector<16x256xbf16>
    %115 = arith.extf %114 : vector<16x256xbf16> to vector<16x256xf32>
    %cst_40 = arith.constant 0.000000e+00 : f32
    %116 = vector.broadcast %cst_40 : f32 to vector<16x256xf32>
    %c1_i32_41 = arith.constant 1 : i32
    %117 = tpu.dynamic_rotate %115 by %c1_i32_41 dim 1 : vector<16x256xf32>, i32 -> vector<16x256xf32>
    %118 = arith.select %18, %117, %116 : vector<16x256xi1>, vector<16x256xf32>
    %c16_i32_42 = arith.constant 16 : i32
    %119 = tpu.dynamic_rotate %115 by %c16_i32_42 dim 1 : vector<16x256xf32>, i32 -> vector<16x256xf32>
    %120 = arith.select %20, %119, %116 : vector<16x256xi1>, vector<16x256xf32>
    %121 = arith.andi %18, %20 : vector<16x256xi1>
    %c17_i32_43 = arith.constant 17 : i32
    %122 = tpu.dynamic_rotate %115 by %c17_i32_43 dim 1 : vector<16x256xf32>, i32 -> vector<16x256xf32>
    %123 = arith.select %121, %122, %116 : vector<16x256xi1>, vector<16x256xf32>
    %124 = tpu.concatenate %115, %118, %120, %123 in 0 : vector<16x256xf32>, vector<16x256xf32>, vector<16x256xf32>, vector<16x256xf32> -> vector<64x256xf32>
    %125 = arith.truncf %124 : vector<64x256xf32> to vector<64x256xbf16>
    %cst_44 = arith.constant dense<0.000000e+00> : vector<64x256xf32>
    %126 = tpu.matmul %21, %125, %cst_44 {dimension_numbers = #tpu.dot_dimension_numbers<[1], [0], [0], [1], [0, 0, 1, 1], [], []>} : vector<64x64xbf16>, vector<64x256xbf16>, vector<64x256xf32> -> vector<64x256xf32>
    %127 = vector.extract_strided_slice %126 {offsets = [0, 0], sizes = [32, 256], strides = [1, 1]} : vector<64x256xf32> to vector<32x256xf32>
    %128 = vector.extract_strided_slice %22 {offsets = [0, 0], sizes = [32, 1], strides = [1, 1]} : vector<64x1xf32> to vector<32x1xf32>
    %129 = vector.extract_strided_slice %23 {offsets = [0, 0], sizes = [32, 1], strides = [1, 1]} : vector<64x1xf32> to vector<32x1xf32>
    %130 = vector.shape_cast %127 : vector<32x256xf32> to vector<1x32x256xf32>
    %cst_45 = arith.constant dense<0.000000e+00> : vector<1xf32>
    %131 = vector.multi_reduction <add>, %130, %cst_45 [1, 2] : vector<1x32x256xf32> to vector<1xf32>
    %132 = vector.shape_cast %131 : vector<1xf32> to vector<1x1x1xf32>
    %133 = vector.extract %132[0, 0, 0] : f32 from vector<1x1x1xf32>
    %134 = arith.mulf %127, %127 : vector<32x256xf32>
    %135 = vector.shape_cast %134 : vector<32x256xf32> to vector<1x32x256xf32>
    %cst_46 = arith.constant dense<0.000000e+00> : vector<1xf32>
    %136 = vector.multi_reduction <add>, %135, %cst_46 [1, 2] : vector<1x32x256xf32> to vector<1xf32>
    %137 = vector.shape_cast %136 : vector<1xf32> to vector<1x1x1xf32>
    %138 = vector.extract %137[0, 0, 0] : f32 from vector<1x1x1xf32>
    %cst_47 = arith.constant 8.192000e+03 : f32
    %139 = arith.divf %133, %cst_47 : f32
    %cst_48 = arith.constant 8.192000e+03 : f32
    %140 = arith.divf %138, %cst_48 : f32
    %141 = arith.mulf %139, %139 : f32
    %142 = arith.subf %140, %141 : f32
    %cst_49 = arith.constant 0.000000e+00 : f32
    %143 = arith.maximumf %142, %cst_49 : f32
    %144 = vector.broadcast %139 : f32 to vector<32x256xf32>
    %145 = arith.subf %127, %144 : vector<32x256xf32>
    %cst_50 = arith.constant 9.99999974E-6 : f32
    %146 = arith.addf %143, %cst_50 : f32
    %147 = math.rsqrt %146 : f32
    %148 = vector.broadcast %147 : f32 to vector<32x256xf32>
    %149 = arith.mulf %145, %148 : vector<32x256xf32>
    %150 = vector.broadcast %128 : vector<32x1xf32> to vector<32x256xf32>
    %151 = arith.mulf %149, %150 : vector<32x256xf32>
    %152 = vector.broadcast %129 : vector<32x1xf32> to vector<32x256xf32>
    %153 = arith.addf %151, %152 : vector<32x256xf32>
    %cst_51 = arith.constant 0.000000e+00 : f32
    %154 = vector.broadcast %cst_51 : f32 to vector<32x256xf32>
    %155 = arith.subf %154, %153 : vector<32x256xf32>
    %156 = math.exp %155 : vector<32x256xf32>
    %cst_52 = arith.constant 1.000000e+00 : f32
    %157 = vector.broadcast %cst_52 : f32 to vector<32x256xf32>
    %158 = arith.addf %157, %156 : vector<32x256xf32>
    %159 = tpu.reciprocal %158 {approx = true} : vector<32x256xf32> -> vector<32x256xf32>
    %160 = arith.mulf %153, %159 : vector<32x256xf32>
    %161 = arith.truncf %160 : vector<32x256xf32> to vector<32x256xbf16>
    %c1_53 = arith.constant 1 : index
    %c0_54 = arith.constant 0 : index
    %c0_55 = arith.constant 0 : index
    %162 = vector.load %arg5[%c1_53, %c0_54, %c0_55] : memref<2x32x256xbf16, #tpu.memory_space<vmem>>, vector<1x32x256xbf16>
    %163 = vector.shape_cast %162 : vector<1x32x256xbf16> to vector<32x256xbf16>
    %164 = vector.shape_cast %161 : vector<32x256xbf16> to vector<1x32x256xbf16>
    tpu.vector_store %arg5[%c1_53, %c0_54, %c0_55], %164 {strides = array<i32>} : memref<2x32x256xbf16, #tpu.memory_space<vmem>>, vector<1x32x256xbf16>,
    %165 = vector.extract_strided_slice %126 {offsets = [32, 0], sizes = [32, 256], strides = [1, 1]} : vector<64x256xf32> to vector<32x256xf32>
    %166 = vector.extract_strided_slice %22 {offsets = [32, 0], sizes = [32, 1], strides = [1, 1]} : vector<64x1xf32> to vector<32x1xf32>
    %167 = vector.extract_strided_slice %23 {offsets = [32, 0], sizes = [32, 1], strides = [1, 1]} : vector<64x1xf32> to vector<32x1xf32>
    %168 = vector.shape_cast %165 : vector<32x256xf32> to vector<1x32x256xf32>
    %cst_56 = arith.constant dense<0.000000e+00> : vector<1xf32>
    %169 = vector.multi_reduction <add>, %168, %cst_56 [1, 2] : vector<1x32x256xf32> to vector<1xf32>
    %170 = vector.shape_cast %169 : vector<1xf32> to vector<1x1x1xf32>
    %171 = vector.extract %170[0, 0, 0] : f32 from vector<1x1x1xf32>
    %172 = arith.mulf %165, %165 : vector<32x256xf32>
    %173 = vector.shape_cast %172 : vector<32x256xf32> to vector<1x32x256xf32>
    %cst_57 = arith.constant dense<0.000000e+00> : vector<1xf32>
    %174 = vector.multi_reduction <add>, %173, %cst_57 [1, 2] : vector<1x32x256xf32> to vector<1xf32>
    %175 = vector.shape_cast %174 : vector<1xf32> to vector<1x1x1xf32>
    %176 = vector.extract %175[0, 0, 0] : f32 from vector<1x1x1xf32>
    %cst_58 = arith.constant 8.192000e+03 : f32
    %177 = arith.divf %171, %cst_58 : f32
    %cst_59 = arith.constant 8.192000e+03 : f32
    %178 = arith.divf %176, %cst_59 : f32
    %179 = arith.mulf %177, %177 : f32
    %180 = arith.subf %178, %179 : f32
    %cst_60 = arith.constant 0.000000e+00 : f32
    %181 = arith.maximumf %180, %cst_60 : f32
    %182 = vector.broadcast %177 : f32 to vector<32x256xf32>
    %183 = arith.subf %165, %182 : vector<32x256xf32>
    %cst_61 = arith.constant 9.99999974E-6 : f32
    %184 = arith.addf %181, %cst_61 : f32
    %185 = math.rsqrt %184 : f32
    %186 = vector.broadcast %185 : f32 to vector<32x256xf32>
    %187 = arith.mulf %183, %186 : vector<32x256xf32>
    %188 = vector.broadcast %166 : vector<32x1xf32> to vector<32x256xf32>
    %189 = arith.mulf %187, %188 : vector<32x256xf32>
    %190 = vector.broadcast %167 : vector<32x1xf32> to vector<32x256xf32>
    %191 = arith.addf %189, %190 : vector<32x256xf32>
    %cst_62 = arith.constant 0.000000e+00 : f32
    %192 = vector.broadcast %cst_62 : f32 to vector<32x256xf32>
    %193 = arith.subf %192, %191 : vector<32x256xf32>
    %194 = math.exp %193 : vector<32x256xf32>
    %cst_63 = arith.constant 1.000000e+00 : f32
    %195 = vector.broadcast %cst_63 : f32 to vector<32x256xf32>
    %196 = arith.addf %195, %194 : vector<32x256xf32>
    %197 = tpu.reciprocal %196 {approx = true} : vector<32x256xf32> -> vector<32x256xf32>
    %198 = arith.mulf %191, %197 : vector<32x256xf32>
    %c1_64 = arith.constant 1 : index
    %c0_65 = arith.constant 0 : index
    %c0_66 = arith.constant 0 : index
    %199 = vector.load %arg6[%c1_64, %c0_65, %c0_66] : memref<2x32x256xf32, #tpu.memory_space<vmem>>, vector<1x32x256xf32>
    %200 = vector.shape_cast %199 : vector<1x32x256xf32> to vector<32x256xf32>
    %201 = vector.shape_cast %198 : vector<32x256xf32> to vector<1x32x256xf32>
    tpu.vector_store %arg6[%c1_64, %c0_65, %c0_66], %201 {strides = array<i32>} : memref<2x32x256xf32, #tpu.memory_space<vmem>>, vector<1x32x256xf32>,
    return
  }
  func.func @transform_0(%arg0: i32) -> (i32, i32, i32) {
    %c0_i32 = arith.constant 0 : i32
    %c0_i32_0 = arith.constant 0 : i32
    %c0_i32_1 = arith.constant 0 : i32
    return %arg0, %c0_i32, %c0_i32_0 : i32, i32, i32
  }
  func.func @transform_1(%arg0: i32) -> (i32, i32) {
    %c0_i32 = arith.constant 0 : i32
    %c0_i32_0 = arith.constant 0 : i32
    %c0_i32_1 = arith.constant 0 : i32
    return %c0_i32, %c0_i32_0 : i32, i32
  }
  func.func @transform_2(%arg0: i32) -> (i32, i32) {
    %c0_i32 = arith.constant 0 : i32
    %c0_i32_0 = arith.constant 0 : i32
    %c0_i32_1 = arith.constant 0 : i32
    return %c0_i32, %c0_i32_0 : i32, i32
  }
  func.func @transform_3(%arg0: i32) -> (i32, i32) {
    %c0_i32 = arith.constant 0 : i32
    %c0_i32_0 = arith.constant 0 : i32
    %c0_i32_1 = arith.constant 0 : i32
    return %c0_i32, %c0_i32_0 : i32, i32
  }
  func.func @transform_4(%arg0: i32) -> (i32, i32, i32) {
    %c0_i32 = arith.constant 0 : i32
    %c0_i32_0 = arith.constant 0 : i32
    %c0_i32_1 = arith.constant 0 : i32
    return %arg0, %c0_i32, %c0_i32_0 : i32, i32, i32
  }
  func.func @transform_5(%arg0: i32) -> (i32, i32, i32) {
    %c0_i32 = arith.constant 0 : i32
    %c0_i32_0 = arith.constant 0 : i32
    %c0_i32_1 = arith.constant 0 : i32
    return %arg0, %c0_i32, %c0_i32_0 : i32, i32, i32
  }
}

module attributes {stable_mosaic.version = 11 : i64} {
  func.func @_decoder_kernel(%arg0: i32, %arg1: memref<4x32x256xbf16, #tpu.memory_space<vmem>>, %arg2: memref<128x128xbf16, #tpu.memory_space<vmem>>, %arg3: memref<128x1xf32, #tpu.memory_space<vmem>>, %arg4: memref<128x1xf32, #tpu.memory_space<vmem>>, %arg5: memref<16x128xbf16, #tpu.memory_space<vmem>>, %arg6: memref<4x16x256xf32, #tpu.memory_space<vmem>>) attributes {dimension_semantics = [#tpu.dimension_semantics<parallel>], iteration_bounds = array<i64: 2>, scalar_prefetch = 0 : i64, scratch_operands = 0 : i64, tpu.core_type = #tpu.core_type<tc>, window_params = [{transform_indices = @transform_0, window_bounds = array<i64: 4, 32, 256>}, {pipeline_mode = #tpu.pipeline_mode<synchronous>, transform_indices = @transform_1, window_bounds = array<i64: 128, 128>}, {pipeline_mode = #tpu.pipeline_mode<synchronous>, transform_indices = @transform_2, window_bounds = array<i64: 128, 1>}, {pipeline_mode = #tpu.pipeline_mode<synchronous>, transform_indices = @transform_3, window_bounds = array<i64: 128, 1>}, {pipeline_mode = #tpu.pipeline_mode<synchronous>, transform_indices = @transform_4, window_bounds = array<i64: 16, 128>}, {transform_indices = @transform_5, window_bounds = array<i64: 4, 16, 256>}]} {
    %0 = tpu.iota {dimensions = array<i32: 1>} : vector<32x256xi32>
    %c16_i32 = arith.constant 16 : i32
    %c0_i32 = arith.constant 0 : i32
    %1 = arith.cmpi eq, %c16_i32, %c0_i32 : i32
    %c1_i32 = arith.constant 1 : i32
    %2 = arith.select %1, %c1_i32, %c16_i32 : i32
    %3 = vector.broadcast %2 : i32 to vector<32x256xi32>
    %4 = arith.remsi %0, %3 : vector<32x256xi32>
    %c0_i32_0 = arith.constant 0 : i32
    %5 = vector.broadcast %c0_i32_0 : i32 to vector<32x256xi32>
    %6 = arith.cmpi ne, %4, %5 : vector<32x256xi32>
    %c0_i32_1 = arith.constant 0 : i32
    %7 = vector.broadcast %c0_i32_1 : i32 to vector<32x256xi32>
    %8 = arith.cmpi slt, %4, %7 : vector<32x256xi32>
    %c0_i32_2 = arith.constant 0 : i32
    %9 = arith.cmpi slt, %2, %c0_i32_2 : i32
    %10 = vector.broadcast %9 : i1 to vector<32x256xi1>
    %11 = vector.broadcast %10 : vector<32x256xi1> to vector<32x256xi1>
    %12 = arith.xori %8, %11 : vector<32x256xi1>
    %13 = arith.andi %12, %6 : vector<32x256xi1>
    %14 = vector.broadcast %2 : i32 to vector<32x256xi32>
    %15 = arith.addi %4, %14 : vector<32x256xi32>
    %16 = arith.select %13, %15, %4 : vector<32x256xi1>, vector<32x256xi32>
    %c15_i32 = arith.constant 15 : i32
    %17 = vector.broadcast %c15_i32 : i32 to vector<32x256xi32>
    %18 = arith.cmpi ne, %16, %17 : vector<32x256xi32>
    %c240_i32 = arith.constant 240 : i32
    %19 = vector.broadcast %c240_i32 : i32 to vector<32x256xi32>
    %20 = arith.cmpi slt, %0, %19 : vector<32x256xi32>
    %c0 = arith.constant 0 : index
    %c0_3 = arith.constant 0 : index
    %21 = vector.load %arg2[%c0, %c0_3] : memref<128x128xbf16, #tpu.memory_space<vmem>>, vector<128x128xbf16>
    %c0_4 = arith.constant 0 : index
    %c0_5 = arith.constant 0 : index
    %22 = vector.load %arg5[%c0_4, %c0_5] : memref<16x128xbf16, #tpu.memory_space<vmem>>, vector<16x128xbf16>
    %c0_6 = arith.constant 0 : index
    %c0_7 = arith.constant 0 : index
    %23 = vector.load %arg3[%c0_6, %c0_7] : memref<128x1xf32, #tpu.memory_space<vmem>>, vector<128x1xf32>
    %c0_8 = arith.constant 0 : index
    %c0_9 = arith.constant 0 : index
    %24 = vector.load %arg4[%c0_8, %c0_9] : memref<128x1xf32, #tpu.memory_space<vmem>>, vector<128x1xf32>
    %c0_10 = arith.constant 0 : index
    %c0_11 = arith.constant 0 : index
    %c0_12 = arith.constant 0 : index
    %25 = vector.load %arg1[%c0_10, %c0_11, %c0_12] : memref<4x32x256xbf16, #tpu.memory_space<vmem>>, vector<1x32x256xbf16>
    %26 = vector.shape_cast %25 : vector<1x32x256xbf16> to vector<32x256xbf16>
    %27 = arith.extf %26 : vector<32x256xbf16> to vector<32x256xf32>
    %cst = arith.constant 0.000000e+00 : f32
    %28 = vector.broadcast %cst : f32 to vector<32x256xf32>
    %c255_i32 = arith.constant 255 : i32
    %29 = tpu.dynamic_rotate %27 by %c255_i32 dim 1 : vector<32x256xf32>, i32 -> vector<32x256xf32>
    %30 = arith.select %18, %29, %28 : vector<32x256xi1>, vector<32x256xf32>
    %c240_i32_13 = arith.constant 240 : i32
    %31 = tpu.dynamic_rotate %27 by %c240_i32_13 dim 1 : vector<32x256xf32>, i32 -> vector<32x256xf32>
    %32 = arith.select %20, %31, %28 : vector<32x256xi1>, vector<32x256xf32>
    %33 = arith.andi %18, %20 : vector<32x256xi1>
    %c239_i32 = arith.constant 239 : i32
    %34 = tpu.dynamic_rotate %27 by %c239_i32 dim 1 : vector<32x256xf32>, i32 -> vector<32x256xf32>
    %35 = arith.select %33, %34, %28 : vector<32x256xi1>, vector<32x256xf32>
    %36 = tpu.concatenate %27, %30, %32, %35 in 0 : vector<32x256xf32>, vector<32x256xf32>, vector<32x256xf32>, vector<32x256xf32> -> vector<128x256xf32>
    %37 = arith.truncf %36 : vector<128x256xf32> to vector<128x256xbf16>
    %cst_14 = arith.constant dense<0.000000e+00> : vector<128x256xf32>
    %38 = tpu.matmul %21, %37, %cst_14 {dimension_numbers = #tpu.dot_dimension_numbers<[1], [0], [0], [1], [0, 0, 1, 1], [], []>} : vector<128x128xbf16>, vector<128x256xbf16>, vector<128x256xf32> -> vector<128x256xf32>
    %39 = vector.shape_cast %38 : vector<128x256xf32> to vector<1x128x256xf32>
    %cst_15 = arith.constant dense<0.000000e+00> : vector<1xf32>
    %40 = vector.multi_reduction <add>, %39, %cst_15 [1, 2] : vector<1x128x256xf32> to vector<1xf32>
    %41 = vector.shape_cast %40 : vector<1xf32> to vector<1x1x1xf32>
    %42 = vector.extract %41[0, 0, 0] : f32 from vector<1x1x1xf32>
    %43 = arith.mulf %38, %38 : vector<128x256xf32>
    %44 = vector.shape_cast %43 : vector<128x256xf32> to vector<1x128x256xf32>
    %cst_16 = arith.constant dense<0.000000e+00> : vector<1xf32>
    %45 = vector.multi_reduction <add>, %44, %cst_16 [1, 2] : vector<1x128x256xf32> to vector<1xf32>
    %46 = vector.shape_cast %45 : vector<1xf32> to vector<1x1x1xf32>
    %47 = vector.extract %46[0, 0, 0] : f32 from vector<1x1x1xf32>
    %cst_17 = arith.constant 3.276800e+04 : f32
    %48 = arith.divf %42, %cst_17 : f32
    %cst_18 = arith.constant 3.276800e+04 : f32
    %49 = arith.divf %47, %cst_18 : f32
    %50 = arith.mulf %48, %48 : f32
    %51 = arith.subf %49, %50 : f32
    %cst_19 = arith.constant 0.000000e+00 : f32
    %52 = arith.maximumf %51, %cst_19 : f32
    %53 = vector.broadcast %48 : f32 to vector<128x256xf32>
    %54 = arith.subf %38, %53 : vector<128x256xf32>
    %cst_20 = arith.constant 9.99999974E-6 : f32
    %55 = arith.addf %52, %cst_20 : f32
    %56 = math.rsqrt %55 : f32
    %57 = vector.broadcast %56 : f32 to vector<128x256xf32>
    %58 = arith.mulf %54, %57 : vector<128x256xf32>
    %59 = vector.broadcast %23 : vector<128x1xf32> to vector<128x256xf32>
    %60 = arith.mulf %58, %59 : vector<128x256xf32>
    %61 = vector.broadcast %24 : vector<128x1xf32> to vector<128x256xf32>
    %62 = arith.addf %60, %61 : vector<128x256xf32>
    %cst_21 = arith.constant 0.000000e+00 : f32
    %63 = vector.broadcast %cst_21 : f32 to vector<128x256xf32>
    %64 = arith.subf %63, %62 : vector<128x256xf32>
    %65 = math.exp %64 : vector<128x256xf32>
    %cst_22 = arith.constant 1.000000e+00 : f32
    %66 = vector.broadcast %cst_22 : f32 to vector<128x256xf32>
    %67 = arith.addf %66, %65 : vector<128x256xf32>
    %68 = tpu.reciprocal %67 {approx = true} : vector<128x256xf32> -> vector<128x256xf32>
    %69 = arith.mulf %62, %68 : vector<128x256xf32>
    %70 = arith.truncf %69 : vector<128x256xf32> to vector<128x256xbf16>
    %cst_23 = arith.constant dense<0.000000e+00> : vector<16x256xf32>
    %71 = tpu.matmul %22, %70, %cst_23 {dimension_numbers = #tpu.dot_dimension_numbers<[1], [0], [0], [1], [0, 0, 1, 1], [], []>} : vector<16x128xbf16>, vector<128x256xbf16>, vector<16x256xf32> -> vector<16x256xf32>
    %cst_24 = arith.constant 0.000000e+00 : f32
    %72 = vector.broadcast %cst_24 : f32 to vector<16x256xf32>
    %73 = arith.subf %72, %71 : vector<16x256xf32>
    %74 = math.exp %73 : vector<16x256xf32>
    %cst_25 = arith.constant 1.000000e+00 : f32
    %75 = vector.broadcast %cst_25 : f32 to vector<16x256xf32>
    %76 = arith.addf %75, %74 : vector<16x256xf32>
    %77 = tpu.reciprocal %76 {approx = true} : vector<16x256xf32> -> vector<16x256xf32>
    %c0_26 = arith.constant 0 : index
    %c0_27 = arith.constant 0 : index
    %c0_28 = arith.constant 0 : index
    %78 = vector.load %arg6[%c0_26, %c0_27, %c0_28] : memref<4x16x256xf32, #tpu.memory_space<vmem>>, vector<1x16x256xf32>
    %79 = vector.shape_cast %78 : vector<1x16x256xf32> to vector<16x256xf32>
    %80 = vector.shape_cast %77 : vector<16x256xf32> to vector<1x16x256xf32>
    tpu.vector_store %arg6[%c0_26, %c0_27, %c0_28], %80 {strides = array<i32>} : memref<4x16x256xf32, #tpu.memory_space<vmem>>, vector<1x16x256xf32>,
    %c1 = arith.constant 1 : index
    %c0_29 = arith.constant 0 : index
    %c0_30 = arith.constant 0 : index
    %81 = vector.load %arg1[%c1, %c0_29, %c0_30] : memref<4x32x256xbf16, #tpu.memory_space<vmem>>, vector<1x32x256xbf16>
    %82 = vector.shape_cast %81 : vector<1x32x256xbf16> to vector<32x256xbf16>
    %83 = arith.extf %82 : vector<32x256xbf16> to vector<32x256xf32>
    %cst_31 = arith.constant 0.000000e+00 : f32
    %84 = vector.broadcast %cst_31 : f32 to vector<32x256xf32>
    %c255_i32_32 = arith.constant 255 : i32
    %85 = tpu.dynamic_rotate %83 by %c255_i32_32 dim 1 : vector<32x256xf32>, i32 -> vector<32x256xf32>
    %86 = arith.select %18, %85, %84 : vector<32x256xi1>, vector<32x256xf32>
    %c240_i32_33 = arith.constant 240 : i32
    %87 = tpu.dynamic_rotate %83 by %c240_i32_33 dim 1 : vector<32x256xf32>, i32 -> vector<32x256xf32>
    %88 = arith.select %20, %87, %84 : vector<32x256xi1>, vector<32x256xf32>
    %89 = arith.andi %18, %20 : vector<32x256xi1>
    %c239_i32_34 = arith.constant 239 : i32
    %90 = tpu.dynamic_rotate %83 by %c239_i32_34 dim 1 : vector<32x256xf32>, i32 -> vector<32x256xf32>
    %91 = arith.select %89, %90, %84 : vector<32x256xi1>, vector<32x256xf32>
    %92 = tpu.concatenate %83, %86, %88, %91 in 0 : vector<32x256xf32>, vector<32x256xf32>, vector<32x256xf32>, vector<32x256xf32> -> vector<128x256xf32>
    %93 = arith.truncf %92 : vector<128x256xf32> to vector<128x256xbf16>
    %cst_35 = arith.constant dense<0.000000e+00> : vector<128x256xf32>
    %94 = tpu.matmul %21, %93, %cst_35 {dimension_numbers = #tpu.dot_dimension_numbers<[1], [0], [0], [1], [0, 0, 1, 1], [], []>} : vector<128x128xbf16>, vector<128x256xbf16>, vector<128x256xf32> -> vector<128x256xf32>
    %95 = vector.shape_cast %94 : vector<128x256xf32> to vector<1x128x256xf32>
    %cst_36 = arith.constant dense<0.000000e+00> : vector<1xf32>
    %96 = vector.multi_reduction <add>, %95, %cst_36 [1, 2] : vector<1x128x256xf32> to vector<1xf32>
    %97 = vector.shape_cast %96 : vector<1xf32> to vector<1x1x1xf32>
    %98 = vector.extract %97[0, 0, 0] : f32 from vector<1x1x1xf32>
    %99 = arith.mulf %94, %94 : vector<128x256xf32>
    %100 = vector.shape_cast %99 : vector<128x256xf32> to vector<1x128x256xf32>
    %cst_37 = arith.constant dense<0.000000e+00> : vector<1xf32>
    %101 = vector.multi_reduction <add>, %100, %cst_37 [1, 2] : vector<1x128x256xf32> to vector<1xf32>
    %102 = vector.shape_cast %101 : vector<1xf32> to vector<1x1x1xf32>
    %103 = vector.extract %102[0, 0, 0] : f32 from vector<1x1x1xf32>
    %cst_38 = arith.constant 3.276800e+04 : f32
    %104 = arith.divf %98, %cst_38 : f32
    %cst_39 = arith.constant 3.276800e+04 : f32
    %105 = arith.divf %103, %cst_39 : f32
    %106 = arith.mulf %104, %104 : f32
    %107 = arith.subf %105, %106 : f32
    %cst_40 = arith.constant 0.000000e+00 : f32
    %108 = arith.maximumf %107, %cst_40 : f32
    %109 = vector.broadcast %104 : f32 to vector<128x256xf32>
    %110 = arith.subf %94, %109 : vector<128x256xf32>
    %cst_41 = arith.constant 9.99999974E-6 : f32
    %111 = arith.addf %108, %cst_41 : f32
    %112 = math.rsqrt %111 : f32
    %113 = vector.broadcast %112 : f32 to vector<128x256xf32>
    %114 = arith.mulf %110, %113 : vector<128x256xf32>
    %115 = vector.broadcast %23 : vector<128x1xf32> to vector<128x256xf32>
    %116 = arith.mulf %114, %115 : vector<128x256xf32>
    %117 = vector.broadcast %24 : vector<128x1xf32> to vector<128x256xf32>
    %118 = arith.addf %116, %117 : vector<128x256xf32>
    %cst_42 = arith.constant 0.000000e+00 : f32
    %119 = vector.broadcast %cst_42 : f32 to vector<128x256xf32>
    %120 = arith.subf %119, %118 : vector<128x256xf32>
    %121 = math.exp %120 : vector<128x256xf32>
    %cst_43 = arith.constant 1.000000e+00 : f32
    %122 = vector.broadcast %cst_43 : f32 to vector<128x256xf32>
    %123 = arith.addf %122, %121 : vector<128x256xf32>
    %124 = tpu.reciprocal %123 {approx = true} : vector<128x256xf32> -> vector<128x256xf32>
    %125 = arith.mulf %118, %124 : vector<128x256xf32>
    %126 = arith.truncf %125 : vector<128x256xf32> to vector<128x256xbf16>
    %cst_44 = arith.constant dense<0.000000e+00> : vector<16x256xf32>
    %127 = tpu.matmul %22, %126, %cst_44 {dimension_numbers = #tpu.dot_dimension_numbers<[1], [0], [0], [1], [0, 0, 1, 1], [], []>} : vector<16x128xbf16>, vector<128x256xbf16>, vector<16x256xf32> -> vector<16x256xf32>
    %cst_45 = arith.constant 0.000000e+00 : f32
    %128 = vector.broadcast %cst_45 : f32 to vector<16x256xf32>
    %129 = arith.subf %128, %127 : vector<16x256xf32>
    %130 = math.exp %129 : vector<16x256xf32>
    %cst_46 = arith.constant 1.000000e+00 : f32
    %131 = vector.broadcast %cst_46 : f32 to vector<16x256xf32>
    %132 = arith.addf %131, %130 : vector<16x256xf32>
    %133 = tpu.reciprocal %132 {approx = true} : vector<16x256xf32> -> vector<16x256xf32>
    %c1_47 = arith.constant 1 : index
    %c0_48 = arith.constant 0 : index
    %c0_49 = arith.constant 0 : index
    %134 = vector.load %arg6[%c1_47, %c0_48, %c0_49] : memref<4x16x256xf32, #tpu.memory_space<vmem>>, vector<1x16x256xf32>
    %135 = vector.shape_cast %134 : vector<1x16x256xf32> to vector<16x256xf32>
    %136 = vector.shape_cast %133 : vector<16x256xf32> to vector<1x16x256xf32>
    tpu.vector_store %arg6[%c1_47, %c0_48, %c0_49], %136 {strides = array<i32>} : memref<4x16x256xf32, #tpu.memory_space<vmem>>, vector<1x16x256xf32>,
    %c2 = arith.constant 2 : index
    %c0_50 = arith.constant 0 : index
    %c0_51 = arith.constant 0 : index
    %137 = vector.load %arg1[%c2, %c0_50, %c0_51] : memref<4x32x256xbf16, #tpu.memory_space<vmem>>, vector<1x32x256xbf16>
    %138 = vector.shape_cast %137 : vector<1x32x256xbf16> to vector<32x256xbf16>
    %139 = arith.extf %138 : vector<32x256xbf16> to vector<32x256xf32>
    %cst_52 = arith.constant 0.000000e+00 : f32
    %140 = vector.broadcast %cst_52 : f32 to vector<32x256xf32>
    %c255_i32_53 = arith.constant 255 : i32
    %141 = tpu.dynamic_rotate %139 by %c255_i32_53 dim 1 : vector<32x256xf32>, i32 -> vector<32x256xf32>
    %142 = arith.select %18, %141, %140 : vector<32x256xi1>, vector<32x256xf32>
    %c240_i32_54 = arith.constant 240 : i32
    %143 = tpu.dynamic_rotate %139 by %c240_i32_54 dim 1 : vector<32x256xf32>, i32 -> vector<32x256xf32>
    %144 = arith.select %20, %143, %140 : vector<32x256xi1>, vector<32x256xf32>
    %145 = arith.andi %18, %20 : vector<32x256xi1>
    %c239_i32_55 = arith.constant 239 : i32
    %146 = tpu.dynamic_rotate %139 by %c239_i32_55 dim 1 : vector<32x256xf32>, i32 -> vector<32x256xf32>
    %147 = arith.select %145, %146, %140 : vector<32x256xi1>, vector<32x256xf32>
    %148 = tpu.concatenate %139, %142, %144, %147 in 0 : vector<32x256xf32>, vector<32x256xf32>, vector<32x256xf32>, vector<32x256xf32> -> vector<128x256xf32>
    %149 = arith.truncf %148 : vector<128x256xf32> to vector<128x256xbf16>
    %cst_56 = arith.constant dense<0.000000e+00> : vector<128x256xf32>
    %150 = tpu.matmul %21, %149, %cst_56 {dimension_numbers = #tpu.dot_dimension_numbers<[1], [0], [0], [1], [0, 0, 1, 1], [], []>} : vector<128x128xbf16>, vector<128x256xbf16>, vector<128x256xf32> -> vector<128x256xf32>
    %151 = vector.shape_cast %150 : vector<128x256xf32> to vector<1x128x256xf32>
    %cst_57 = arith.constant dense<0.000000e+00> : vector<1xf32>
    %152 = vector.multi_reduction <add>, %151, %cst_57 [1, 2] : vector<1x128x256xf32> to vector<1xf32>
    %153 = vector.shape_cast %152 : vector<1xf32> to vector<1x1x1xf32>
    %154 = vector.extract %153[0, 0, 0] : f32 from vector<1x1x1xf32>
    %155 = arith.mulf %150, %150 : vector<128x256xf32>
    %156 = vector.shape_cast %155 : vector<128x256xf32> to vector<1x128x256xf32>
    %cst_58 = arith.constant dense<0.000000e+00> : vector<1xf32>
    %157 = vector.multi_reduction <add>, %156, %cst_58 [1, 2] : vector<1x128x256xf32> to vector<1xf32>
    %158 = vector.shape_cast %157 : vector<1xf32> to vector<1x1x1xf32>
    %159 = vector.extract %158[0, 0, 0] : f32 from vector<1x1x1xf32>
    %cst_59 = arith.constant 3.276800e+04 : f32
    %160 = arith.divf %154, %cst_59 : f32
    %cst_60 = arith.constant 3.276800e+04 : f32
    %161 = arith.divf %159, %cst_60 : f32
    %162 = arith.mulf %160, %160 : f32
    %163 = arith.subf %161, %162 : f32
    %cst_61 = arith.constant 0.000000e+00 : f32
    %164 = arith.maximumf %163, %cst_61 : f32
    %165 = vector.broadcast %160 : f32 to vector<128x256xf32>
    %166 = arith.subf %150, %165 : vector<128x256xf32>
    %cst_62 = arith.constant 9.99999974E-6 : f32
    %167 = arith.addf %164, %cst_62 : f32
    %168 = math.rsqrt %167 : f32
    %169 = vector.broadcast %168 : f32 to vector<128x256xf32>
    %170 = arith.mulf %166, %169 : vector<128x256xf32>
    %171 = vector.broadcast %23 : vector<128x1xf32> to vector<128x256xf32>
    %172 = arith.mulf %170, %171 : vector<128x256xf32>
    %173 = vector.broadcast %24 : vector<128x1xf32> to vector<128x256xf32>
    %174 = arith.addf %172, %173 : vector<128x256xf32>
    %cst_63 = arith.constant 0.000000e+00 : f32
    %175 = vector.broadcast %cst_63 : f32 to vector<128x256xf32>
    %176 = arith.subf %175, %174 : vector<128x256xf32>
    %177 = math.exp %176 : vector<128x256xf32>
    %cst_64 = arith.constant 1.000000e+00 : f32
    %178 = vector.broadcast %cst_64 : f32 to vector<128x256xf32>
    %179 = arith.addf %178, %177 : vector<128x256xf32>
    %180 = tpu.reciprocal %179 {approx = true} : vector<128x256xf32> -> vector<128x256xf32>
    %181 = arith.mulf %174, %180 : vector<128x256xf32>
    %182 = arith.truncf %181 : vector<128x256xf32> to vector<128x256xbf16>
    %cst_65 = arith.constant dense<0.000000e+00> : vector<16x256xf32>
    %183 = tpu.matmul %22, %182, %cst_65 {dimension_numbers = #tpu.dot_dimension_numbers<[1], [0], [0], [1], [0, 0, 1, 1], [], []>} : vector<16x128xbf16>, vector<128x256xbf16>, vector<16x256xf32> -> vector<16x256xf32>
    %cst_66 = arith.constant 0.000000e+00 : f32
    %184 = vector.broadcast %cst_66 : f32 to vector<16x256xf32>
    %185 = arith.subf %184, %183 : vector<16x256xf32>
    %186 = math.exp %185 : vector<16x256xf32>
    %cst_67 = arith.constant 1.000000e+00 : f32
    %187 = vector.broadcast %cst_67 : f32 to vector<16x256xf32>
    %188 = arith.addf %187, %186 : vector<16x256xf32>
    %189 = tpu.reciprocal %188 {approx = true} : vector<16x256xf32> -> vector<16x256xf32>
    %c2_68 = arith.constant 2 : index
    %c0_69 = arith.constant 0 : index
    %c0_70 = arith.constant 0 : index
    %190 = vector.load %arg6[%c2_68, %c0_69, %c0_70] : memref<4x16x256xf32, #tpu.memory_space<vmem>>, vector<1x16x256xf32>
    %191 = vector.shape_cast %190 : vector<1x16x256xf32> to vector<16x256xf32>
    %192 = vector.shape_cast %189 : vector<16x256xf32> to vector<1x16x256xf32>
    tpu.vector_store %arg6[%c2_68, %c0_69, %c0_70], %192 {strides = array<i32>} : memref<4x16x256xf32, #tpu.memory_space<vmem>>, vector<1x16x256xf32>,
    %c3 = arith.constant 3 : index
    %c0_71 = arith.constant 0 : index
    %c0_72 = arith.constant 0 : index
    %193 = vector.load %arg1[%c3, %c0_71, %c0_72] : memref<4x32x256xbf16, #tpu.memory_space<vmem>>, vector<1x32x256xbf16>
    %194 = vector.shape_cast %193 : vector<1x32x256xbf16> to vector<32x256xbf16>
    %195 = arith.extf %194 : vector<32x256xbf16> to vector<32x256xf32>
    %cst_73 = arith.constant 0.000000e+00 : f32
    %196 = vector.broadcast %cst_73 : f32 to vector<32x256xf32>
    %c255_i32_74 = arith.constant 255 : i32
    %197 = tpu.dynamic_rotate %195 by %c255_i32_74 dim 1 : vector<32x256xf32>, i32 -> vector<32x256xf32>
    %198 = arith.select %18, %197, %196 : vector<32x256xi1>, vector<32x256xf32>
    %c240_i32_75 = arith.constant 240 : i32
    %199 = tpu.dynamic_rotate %195 by %c240_i32_75 dim 1 : vector<32x256xf32>, i32 -> vector<32x256xf32>
    %200 = arith.select %20, %199, %196 : vector<32x256xi1>, vector<32x256xf32>
    %201 = arith.andi %18, %20 : vector<32x256xi1>
    %c239_i32_76 = arith.constant 239 : i32
    %202 = tpu.dynamic_rotate %195 by %c239_i32_76 dim 1 : vector<32x256xf32>, i32 -> vector<32x256xf32>
    %203 = arith.select %201, %202, %196 : vector<32x256xi1>, vector<32x256xf32>
    %204 = tpu.concatenate %195, %198, %200, %203 in 0 : vector<32x256xf32>, vector<32x256xf32>, vector<32x256xf32>, vector<32x256xf32> -> vector<128x256xf32>
    %205 = arith.truncf %204 : vector<128x256xf32> to vector<128x256xbf16>
    %cst_77 = arith.constant dense<0.000000e+00> : vector<128x256xf32>
    %206 = tpu.matmul %21, %205, %cst_77 {dimension_numbers = #tpu.dot_dimension_numbers<[1], [0], [0], [1], [0, 0, 1, 1], [], []>} : vector<128x128xbf16>, vector<128x256xbf16>, vector<128x256xf32> -> vector<128x256xf32>
    %207 = vector.shape_cast %206 : vector<128x256xf32> to vector<1x128x256xf32>
    %cst_78 = arith.constant dense<0.000000e+00> : vector<1xf32>
    %208 = vector.multi_reduction <add>, %207, %cst_78 [1, 2] : vector<1x128x256xf32> to vector<1xf32>
    %209 = vector.shape_cast %208 : vector<1xf32> to vector<1x1x1xf32>
    %210 = vector.extract %209[0, 0, 0] : f32 from vector<1x1x1xf32>
    %211 = arith.mulf %206, %206 : vector<128x256xf32>
    %212 = vector.shape_cast %211 : vector<128x256xf32> to vector<1x128x256xf32>
    %cst_79 = arith.constant dense<0.000000e+00> : vector<1xf32>
    %213 = vector.multi_reduction <add>, %212, %cst_79 [1, 2] : vector<1x128x256xf32> to vector<1xf32>
    %214 = vector.shape_cast %213 : vector<1xf32> to vector<1x1x1xf32>
    %215 = vector.extract %214[0, 0, 0] : f32 from vector<1x1x1xf32>
    %cst_80 = arith.constant 3.276800e+04 : f32
    %216 = arith.divf %210, %cst_80 : f32
    %cst_81 = arith.constant 3.276800e+04 : f32
    %217 = arith.divf %215, %cst_81 : f32
    %218 = arith.mulf %216, %216 : f32
    %219 = arith.subf %217, %218 : f32
    %cst_82 = arith.constant 0.000000e+00 : f32
    %220 = arith.maximumf %219, %cst_82 : f32
    %221 = vector.broadcast %216 : f32 to vector<128x256xf32>
    %222 = arith.subf %206, %221 : vector<128x256xf32>
    %cst_83 = arith.constant 9.99999974E-6 : f32
    %223 = arith.addf %220, %cst_83 : f32
    %224 = math.rsqrt %223 : f32
    %225 = vector.broadcast %224 : f32 to vector<128x256xf32>
    %226 = arith.mulf %222, %225 : vector<128x256xf32>
    %227 = vector.broadcast %23 : vector<128x1xf32> to vector<128x256xf32>
    %228 = arith.mulf %226, %227 : vector<128x256xf32>
    %229 = vector.broadcast %24 : vector<128x1xf32> to vector<128x256xf32>
    %230 = arith.addf %228, %229 : vector<128x256xf32>
    %cst_84 = arith.constant 0.000000e+00 : f32
    %231 = vector.broadcast %cst_84 : f32 to vector<128x256xf32>
    %232 = arith.subf %231, %230 : vector<128x256xf32>
    %233 = math.exp %232 : vector<128x256xf32>
    %cst_85 = arith.constant 1.000000e+00 : f32
    %234 = vector.broadcast %cst_85 : f32 to vector<128x256xf32>
    %235 = arith.addf %234, %233 : vector<128x256xf32>
    %236 = tpu.reciprocal %235 {approx = true} : vector<128x256xf32> -> vector<128x256xf32>
    %237 = arith.mulf %230, %236 : vector<128x256xf32>
    %238 = arith.truncf %237 : vector<128x256xf32> to vector<128x256xbf16>
    %cst_86 = arith.constant dense<0.000000e+00> : vector<16x256xf32>
    %239 = tpu.matmul %22, %238, %cst_86 {dimension_numbers = #tpu.dot_dimension_numbers<[1], [0], [0], [1], [0, 0, 1, 1], [], []>} : vector<16x128xbf16>, vector<128x256xbf16>, vector<16x256xf32> -> vector<16x256xf32>
    %cst_87 = arith.constant 0.000000e+00 : f32
    %240 = vector.broadcast %cst_87 : f32 to vector<16x256xf32>
    %241 = arith.subf %240, %239 : vector<16x256xf32>
    %242 = math.exp %241 : vector<16x256xf32>
    %cst_88 = arith.constant 1.000000e+00 : f32
    %243 = vector.broadcast %cst_88 : f32 to vector<16x256xf32>
    %244 = arith.addf %243, %242 : vector<16x256xf32>
    %245 = tpu.reciprocal %244 {approx = true} : vector<16x256xf32> -> vector<16x256xf32>
    %c3_89 = arith.constant 3 : index
    %c0_90 = arith.constant 0 : index
    %c0_91 = arith.constant 0 : index
    %246 = vector.load %arg6[%c3_89, %c0_90, %c0_91] : memref<4x16x256xf32, #tpu.memory_space<vmem>>, vector<1x16x256xf32>
    %247 = vector.shape_cast %246 : vector<1x16x256xf32> to vector<16x256xf32>
    %248 = vector.shape_cast %245 : vector<16x256xf32> to vector<1x16x256xf32>
    tpu.vector_store %arg6[%c3_89, %c0_90, %c0_91], %248 {strides = array<i32>} : memref<4x16x256xf32, #tpu.memory_space<vmem>>, vector<1x16x256xf32>,
    return
  }
  func.func @transform_0(%arg0: i32) -> (i32, i32, i32) {
    %c0_i32 = arith.constant 0 : i32
    %c0_i32_0 = arith.constant 0 : i32
    %c0_i32_1 = arith.constant 0 : i32
    return %arg0, %c0_i32, %c0_i32_0 : i32, i32, i32
  }
  func.func @transform_1(%arg0: i32) -> (i32, i32) {
    %c0_i32 = arith.constant 0 : i32
    %c0_i32_0 = arith.constant 0 : i32
    %c0_i32_1 = arith.constant 0 : i32
    return %c0_i32, %c0_i32_0 : i32, i32
  }
  func.func @transform_2(%arg0: i32) -> (i32, i32) {
    %c0_i32 = arith.constant 0 : i32
    %c0_i32_0 = arith.constant 0 : i32
    %c0_i32_1 = arith.constant 0 : i32
    return %c0_i32, %c0_i32_0 : i32, i32
  }
  func.func @transform_3(%arg0: i32) -> (i32, i32) {
    %c0_i32 = arith.constant 0 : i32
    %c0_i32_0 = arith.constant 0 : i32
    %c0_i32_1 = arith.constant 0 : i32
    return %c0_i32, %c0_i32_0 : i32, i32
  }
  func.func @transform_4(%arg0: i32) -> (i32, i32) {
    %c0_i32 = arith.constant 0 : i32
    %c0_i32_0 = arith.constant 0 : i32
    %c0_i32_1 = arith.constant 0 : i32
    return %c0_i32, %c0_i32_0 : i32, i32
  }
  func.func @transform_5(%arg0: i32) -> (i32, i32, i32) {
    %c0_i32 = arith.constant 0 : i32
    %c0_i32_0 = arith.constant 0 : i32
    %c0_i32_1 = arith.constant 0 : i32
    return %arg0, %c0_i32, %c0_i32_0 : i32, i32, i32
  }
}

</mosaic_0001>

<llo_original>
// kernel: tile.14
$region0: #{tile.14}
  #allocation2 [shape = 's32[1]{0}', space=sflag, size = 0x4, scoped, tag = 'scoped memory for tile.14']
  %s0 = inlined_call_operand.hbm [shape: f32[32], index: 0, kind: input, shape index: {}]
  %s1 = inlined_call_operand.vmem [shape: f32[4,1,1,32], index: 1, kind: output, shape index: {}]
  $region1: #{tile.14} parent=0
    #allocation0 [shape = 'u8[512]{0}', space=vmem, size = 0x400, scoped, tag = 'operand span for operand 0']
    #allocation1 [shape = 's32[1]{0}', space=sflag, size = 0x4, scoped, tag = 'scoped memory for tile.14']
    %2 = vsyncpa [#allocation1], 0
    // Predicated region
    $region2: #{tile.14} parent=1 // pred_check
      _
    $region3: #{tile.14} parent=1 // pred_check_branch
      %4 = sbr.rel (0) target = $region5
    $region4: #{tile.14} parent=1 // pred_region
      %s6 = ssub.s32 16, 16
      %7 = vsyncadd [#allocation1], %s6
      %s9 = sshll.u32 [#allocation0], 4
      %s10 = int_to_ptr.vmem [resolvable:$true] %s9
      %12 = dma.hbm_to_vmem [thread:$0]  %s0, 16, %s10, [#allocation1]
    $region5: #{tile.14} parent=1 // pred_fallthru
      _
    // Predicated region
    $region6: #{tile.14} parent=1 // pred_check
      _
    $region7: #{tile.14} parent=1 // pred_check_branch
      %14 = sbr.rel (0) target = $region9
    $region8: #{tile.14} parent=1 // pred_region
      %15 = dma.done [#allocation1], 16
    $region9: #{tile.14} parent=1 // pred_fallthru
      _
    %v16 = vld [vmem:[#allocation0] ss:$0 sm:$0xff]
    %17 = vst [vmem:[%s1] sm:$0xf] %v16
    %18 = vsyncpa [#allocation1], 1

// kernel: tile.0
$region0: #{tile.0}
  %s0 = inlined_call_operand.vmem [shape: f32[4,1,1,32], index: 0, kind: input, shape index: {}]
  %s1 = inlined_call_operand.vmem [shape: f32[128,1], index: 1, kind: output, shape index: {}]
  $region1: #{tile.0} parent=0
    #allocation0 [shape = 'u8[4096]{0}', space=vmem, size = 0x1000, scoped, tag = 'scoped mem for input reshape']
    %s3 = sshllo.u32 0, 4
    %v4 = vld [vmem:[%s0] sm:%s3]
    %5 = vst [vmem:[#allocation0] sm:%s3] %v4
    %v6 = vld [vmem:[#allocation0] sm:$0xf]
    %vm7 = vcmask 7168
    %8 = vst.msk [vmem:[%s1] sm:$0x1] %vm7, %v6
    %s9 = scalar_lea.vmem %s1, 31
    %10 = vst.msk [vmem:[%s9] sm:$0x2] %vm7, %v6
    %s11 = scalar_lea.vmem %s1, 62
    %12 = vst.msk [vmem:[%s11] sm:$0x4] %vm7, %v6
    %s13 = scalar_lea.vmem %s1, 93
    %14 = vst.msk [vmem:[%s13] sm:$0x8] %vm7, %v6
    %v15 = vld [vmem:[#allocation0] sm:$0xf]
    %16 = vrot.lane.b32.xlu0 %v15, 127
    %v17 = vpop.permute.xlu0 %16
    %vm18 = vcmask 7168
    %s19 = scalar_lea.vmem %s1, 1
    %20 = vst.msk [vmem:[%s19] sm:$0x1] %vm18, %v17
    %s21 = scalar_lea.vmem %s1, 32
    %22 = vst.msk [vmem:[%s21] sm:$0x2] %vm18, %v17
    %s23 = scalar_lea.vmem %s1, 63
    %24 = vst.msk [vmem:[%s23] sm:$0x4] %vm18, %v17
    %s25 = scalar_lea.vmem %s1, 94
    %26 = vst.msk [vmem:[%s25] sm:$0x8] %vm18, %v17
    %v27 = vld [vmem:[#allocation0] sm:$0xf]
    %28 = vrot.lane.b32.xlu0 %v27, 126
    %v29 = vpop.permute.xlu0 %28
    %vm30 = vcmask 7168
    %s31 = scalar_lea.vmem %s1, 2
    %32 = vst.msk [vmem:[%s31] sm:$0x1] %vm30, %v29
    %s33 = scalar_lea.vmem %s1, 33
    %34 = vst.msk [vmem:[%s33] sm:$0x2] %vm30, %v29
    %s35 = scalar_lea.vmem %s1, 64
    %36 = vst.msk [vmem:[%s35] sm:$0x4] %vm30, %v29
    %s37 = scalar_lea.vmem %s1, 95
    %38 = vst.msk [vmem:[%s37] sm:$0x8] %vm30, %v29
    %v39 = vld [vmem:[#allocation0] sm:$0xf]
    %40 = vrot.lane.b32.xlu0 %v39, 125
    %v41 = vpop.permute.xlu0 %40
    %vm42 = vcmask 7168
    %s43 = scalar_lea.vmem %s1, 3
    %44 = vst.msk [vmem:[%s43] sm:$0x1] %vm42, %v41
    %s45 = scalar_lea.vmem %s1, 34
    %46 = vst.msk [vmem:[%s45] sm:$0x2] %vm42, %v41
    %s47 = scalar_lea.vmem %s1, 65
    %48 = vst.msk [vmem:[%s47] sm:$0x4] %vm42, %v41
    %s49 = scalar_lea.vmem %s1, 96
    %50 = vst.msk [vmem:[%s49] sm:$0x8] %vm42, %v41
    %v51 = vld [vmem:[#allocation0] sm:$0xf]
    %52 = vrot.lane.b32.xlu0 %v51, 124
    %v53 = vpop.permute.xlu0 %52
    %vm54 = vcmask 7168
    %s55 = scalar_lea.vmem %s1, 4
    %56 = vst.msk [vmem:[%s55] sm:$0x1] %vm54, %v53
    %s57 = scalar_lea.vmem %s1, 35
    %58 = vst.msk [vmem:[%s57] sm:$0x2] %vm54, %v53
    %s59 = scalar_lea.vmem %s1, 66
    %60 = vst.msk [vmem:[%s59] sm:$0x4] %vm54, %v53
    %s61 = scalar_lea.vmem %s1, 97
    %62 = vst.msk [vmem:[%s61] sm:$0x8] %vm54, %v53
    %v63 = vld [vmem:[#allocation0] sm:$0xf]
    %64 = vrot.lane.b32.xlu0 %v63, 123
    %v65 = vpop.permute.xlu0 %64
    %vm66 = vcmask 7168
    %s67 = scalar_lea.vmem %s1, 5
    %68 = vst.msk [vmem:[%s67] sm:$0x1] %vm66, %v65
    %s69 = scalar_lea.vmem %s1, 36
    %70 = vst.msk [vmem:[%s69] sm:$0x2] %vm66, %v65
    %s71 = scalar_lea.vmem %s1, 67
    %72 = vst.msk [vmem:[%s71] sm:$0x4] %vm66, %v65
    %s73 = scalar_lea.vmem %s1, 98
    %74 = vst.msk [vmem:[%s73] sm:$0x8] %vm66, %v65
    %v75 = vld [vmem:[#allocation0] sm:$0xf]
    %76 = vrot.lane.b32.xlu0 %v75, 122
    %v77 = vpop.permute.xlu0 %76
    %vm78 = vcmask 7168
    %s79 = scalar_lea.vmem %s1, 6
    %80 = vst.msk [vmem:[%s79] sm:$0x1] %vm78, %v77
    %s81 = scalar_lea.vmem %s1, 37
    %82 = vst.msk [vmem:[%s81] sm:$0x2] %vm78, %v77
    %s83 = scalar_lea.vmem %s1, 68
    %84 = vst.msk [vmem:[%s83] sm:$0x4] %vm78, %v77
    %s85 = scalar_lea.vmem %s1, 99
    %86 = vst.msk [vmem:[%s85] sm:$0x8] %vm78, %v77
    %v87 = vld [vmem:[#allocation0] sm:$0xf]
    %88 = vrot.lane.b32.xlu0 %v87, 121
    %v89 = vpop.permute.xlu0 %88
    %vm90 = vcmask 7168
    %s91 = scalar_lea.vmem %s1, 7
    %92 = vst.msk [vmem:[%s91] sm:$0x1] %vm90, %v89
    %s93 = scalar_lea.vmem %s1, 38
    %94 = vst.msk [vmem:[%s93] sm:$0x2] %vm90, %v89
    %s95 = scalar_lea.vmem %s1, 69
    %96 = vst.msk [vmem:[%s95] sm:$0x4] %vm90, %v89
    %s97 = scalar_lea.vmem %s1, 100
    %98 = vst.msk [vmem:[%s97] sm:$0x8] %vm90, %v89
    %v99 = vld [vmem:[#allocation0] sm:$0xf]
    %100 = vrot.lane.b32.xlu0 %v99, 120
    %v101 = vpop.permute.xlu0 %100
    %vm102 = vcmask 7168
    %s103 = scalar_lea.vmem %s1, 8
    %104 = vst.msk [vmem:[%s103] sm:$0x1] %vm102, %v101
    %s105 = scalar_lea.vmem %s1, 39
    %106 = vst.msk [vmem:[%s105] sm:$0x2] %vm102, %v101
    %s107 = scalar_lea.vmem %s1, 70
    %108 = vst.msk [vmem:[%s107] sm:$0x4] %vm102, %v101
    %s109 = scalar_lea.vmem %s1, 101
    %110 = vst.msk [vmem:[%s109] sm:$0x8] %vm102, %v101
    %v111 = vld [vmem:[#allocation0] sm:$0xf]
    %112 = vrot.lane.b32.xlu0 %v111, 119
    %v113 = vpop.permute.xlu0 %112
    %vm114 = vcmask 7168
    %s115 = scalar_lea.vmem %s1, 9
    %116 = vst.msk [vmem:[%s115] sm:$0x1] %vm114, %v113
    %s117 = scalar_lea.vmem %s1, 40
    %118 = vst.msk [vmem:[%s117] sm:$0x2] %vm114, %v113
    %s119 = scalar_lea.vmem %s1, 71
    %120 = vst.msk [vmem:[%s119] sm:$0x4] %vm114, %v113
    %s121 = scalar_lea.vmem %s1, 102
    %122 = vst.msk [vmem:[%s121] sm:$0x8] %vm114, %v113
    %v123 = vld [vmem:[#allocation0] sm:$0xf]
    %124 = vrot.lane.b32.xlu0 %v123, 118
    %v125 = vpop.permute.xlu0 %124
    %vm126 = vcmask 7168
    %s127 = scalar_lea.vmem %s1, 10
    %128 = vst.msk [vmem:[%s127] sm:$0x1] %vm126, %v125
    %s129 = scalar_lea.vmem %s1, 41
    %130 = vst.msk [vmem:[%s129] sm:$0x2] %vm126, %v125
    %s131 = scalar_lea.vmem %s1, 72
    %132 = vst.msk [vmem:[%s131] sm:$0x4] %vm126, %v125
    %s133 = scalar_lea.vmem %s1, 103
    %134 = vst.msk [vmem:[%s133] sm:$0x8] %vm126, %v125
    %v135 = vld [vmem:[#allocation0] sm:$0xf]
    %136 = vrot.lane.b32.xlu0 %v135, 117
    %v137 = vpop.permute.xlu0 %136
    %vm138 = vcmask 7168
    %s139 = scalar_lea.vmem %s1, 11
    %140 = vst.msk [vmem:[%s139] sm:$0x1] %vm138, %v137
    %s141 = scalar_lea.vmem %s1, 42
    %142 = vst.msk [vmem:[%s141] sm:$0x2] %vm138, %v137
    %s143 = scalar_lea.vmem %s1, 73
    %144 = vst.msk [vmem:[%s143] sm:$0x4] %vm138, %v137
    %s145 = scalar_lea.vmem %s1, 104
    %146 = vst.msk [vmem:[%s145] sm:$0x8] %vm138, %v137
    %v147 = vld [vmem:[#allocation0] sm:$0xf]
    %148 = vrot.lane.b32.xlu0 %v147, 116
    %v149 = vpop.permute.xlu0 %148
    %vm150 = vcmask 7168
    %s151 = scalar_lea.vmem %s1, 12
    %152 = vst.msk [vmem:[%s151] sm:$0x1] %vm150, %v149
    %s153 = scalar_lea.vmem %s1, 43
    %154 = vst.msk [vmem:[%s153] sm:$0x2] %vm150, %v149
    %s155 = scalar_lea.vmem %s1, 74
    %156 = vst.msk [vmem:[%s155] sm:$0x4] %vm150, %v149
    %s157 = scalar_lea.vmem %s1, 105
    %158 = vst.msk [vmem:[%s157] sm:$0x8] %vm150, %v149
    %v159 = vld [vmem:[#allocation0] sm:$0xf]
    %160 = vrot.lane.b32.xlu0 %v159, 115
    %v161 = vpop.permute.xlu0 %160
    %vm162 = vcmask 7168
    %s163 = scalar_lea.vmem %s1, 13
    %164 = vst.msk [vmem:[%s163] sm:$0x1] %vm162, %v161
    %s165 = scalar_lea.vmem %s1, 44
    %166 = vst.msk [vmem:[%s165] sm:$0x2] %vm162, %v161
    %s167 = scalar_lea.vmem %s1, 75
    %168 = vst.msk [vmem:[%s167] sm:$0x4] %vm162, %v161
    %s169 = scalar_lea.vmem %s1, 106
    %170 = vst.msk [vmem:[%s169] sm:$0x8] %vm162, %v161
    %v171 = vld [vmem:[#allocation0] sm:$0xf]
    %172 = vrot.lane.b32.xlu0 %v171, 114
    %v173 = vpop.permute.xlu0 %172
    %vm174 = vcmask 7168
    %s175 = scalar_lea.vmem %s1, 14
    %176 = vst.msk [vmem:[%s175] sm:$0x1] %vm174, %v173
    %s177 = scalar_lea.vmem %s1, 45
    %178 = vst.msk [vmem:[%s177] sm:$0x2] %vm174, %v173
    %s179 = scalar_lea.vmem %s1, 76
    %180 = vst.msk [vmem:[%s179] sm:$0x4] %vm174, %v173
    %s181 = scalar_lea.vmem %s1, 107
    %182 = vst.msk [vmem:[%s181] sm:$0x8] %vm174, %v173
    %v183 = vld [vmem:[#allocation0] sm:$0xf]
    %184 = vrot.lane.b32.xlu0 %v183, 113
    %v185 = vpop.permute.xlu0 %184
    %vm186 = vcmask 7168
    %s187 = scalar_lea.vmem %s1, 15
    %188 = vst.msk [vmem:[%s187] sm:$0x1] %vm186, %v185
    %s189 = scalar_lea.vmem %s1, 46
    %190 = vst.msk [vmem:[%s189] sm:$0x2] %vm186, %v185
    %s191 = scalar_lea.vmem %s1, 77
    %192 = vst.msk [vmem:[%s191] sm:$0x4] %vm186, %v185
    %s193 = scalar_lea.vmem %s1, 108
    %194 = vst.msk [vmem:[%s193] sm:$0x8] %vm186, %v185
    %v195 = vld [vmem:[#allocation0] sm:$0xf]
    %196 = vrot.lane.b32.xlu0 %v195, 112
    %v197 = vpop.permute.xlu0 %196
    %vm198 = vcmask 7168
    %s199 = scalar_lea.vmem %s1, 16
    %200 = vst.msk [vmem:[%s199] sm:$0x1] %vm198, %v197
    %s201 = scalar_lea.vmem %s1, 47
    %202 = vst.msk [vmem:[%s201] sm:$0x2] %vm198, %v197
    %s203 = scalar_lea.vmem %s1, 78
    %204 = vst.msk [vmem:[%s203] sm:$0x4] %vm198, %v197
    %s205 = scalar_lea.vmem %s1, 109
    %206 = vst.msk [vmem:[%s205] sm:$0x8] %vm198, %v197
    %v207 = vld [vmem:[#allocation0] sm:$0xf]
    %208 = vrot.lane.b32.xlu0 %v207, 111
    %v209 = vpop.permute.xlu0 %208
    %vm210 = vcmask 7168
    %s211 = scalar_lea.vmem %s1, 17
    %212 = vst.msk [vmem:[%s211] sm:$0x1] %vm210, %v209
    %s213 = scalar_lea.vmem %s1, 48
    %214 = vst.msk [vmem:[%s213] sm:$0x2] %vm210, %v209
    %s215 = scalar_lea.vmem %s1, 79
    %216 = vst.msk [vmem:[%s215] sm:$0x4] %vm210, %v209
    %s217 = scalar_lea.vmem %s1, 110
    %218 = vst.msk [vmem:[%s217] sm:$0x8] %vm210, %v209
    %v219 = vld [vmem:[#allocation0] sm:$0xf]
    %220 = vrot.lane.b32.xlu0 %v219, 110
    %v221 = vpop.permute.xlu0 %220
    %vm222 = vcmask 7168
    %s223 = scalar_lea.vmem %s1, 18
    %224 = vst.msk [vmem:[%s223] sm:$0x1] %vm222, %v221
    %s225 = scalar_lea.vmem %s1, 49
    %226 = vst.msk [vmem:[%s225] sm:$0x2] %vm222, %v221
    %s227 = scalar_lea.vmem %s1, 80
    %228 = vst.msk [vmem:[%s227] sm:$0x4] %vm222, %v221
    %s229 = scalar_lea.vmem %s1, 111
    %230 = vst.msk [vmem:[%s229] sm:$0x8] %vm222, %v221
    %v231 = vld [vmem:[#allocation0] sm:$0xf]
    %232 = vrot.lane.b32.xlu0 %v231, 109
    %v233 = vpop.permute.xlu0 %232
    %vm234 = vcmask 7168
    %s235 = scalar_lea.vmem %s1, 19
    %236 = vst.msk [vmem:[%s235] sm:$0x1] %vm234, %v233
    %s237 = scalar_lea.vmem %s1, 50
    %238 = vst.msk [vmem:[%s237] sm:$0x2] %vm234, %v233
    %s239 = scalar_lea.vmem %s1, 81
    %240 = vst.msk [vmem:[%s239] sm:$0x4] %vm234, %v233
    %s241 = scalar_lea.vmem %s1, 112
    %242 = vst.msk [vmem:[%s241] sm:$0x8] %vm234, %v233
    %v243 = vld [vmem:[#allocation0] sm:$0xf]
    %244 = vrot.lane.b32.xlu0 %v243, 108
    %v245 = vpop.permute.xlu0 %244
    %vm246 = vcmask 7168
    %s247 = scalar_lea.vmem %s1, 20
    %248 = vst.msk [vmem:[%s247] sm:$0x1] %vm246, %v245
    %s249 = scalar_lea.vmem %s1, 51
    %250 = vst.msk [vmem:[%s249] sm:$0x2] %vm246, %v245
    %s251 = scalar_lea.vmem %s1, 82
    %252 = vst.msk [vmem:[%s251] sm:$0x4] %vm246, %v245
    %s253 = scalar_lea.vmem %s1, 113
    %254 = vst.msk [vmem:[%s253] sm:$0x8] %vm246, %v245
    %v255 = vld [vmem:[#allocation0] sm:$0xf]
    %256 = vrot.lane.b32.xlu0 %v255, 107
    %v257 = vpop.permute.xlu0 %256
    %vm258 = vcmask 7168
    %s259 = scalar_lea.vmem %s1, 21
    %260 = vst.msk [vmem:[%s259] sm:$0x1] %vm258, %v257
    %s261 = scalar_lea.vmem %s1, 52
    %262 = vst.msk [vmem:[%s261] sm:$0x2] %vm258, %v257
    %s263 = scalar_lea.vmem %s1, 83
    %264 = vst.msk [vmem:[%s263] sm:$0x4] %vm258, %v257
    %s265 = scalar_lea.vmem %s1, 114
    %266 = vst.msk [vmem:[%s265] sm:$0x8] %vm258, %v257
    %v267 = vld [vmem:[#allocation0] sm:$0xf]
    %268 = vrot.lane.b32.xlu0 %v267, 106
    %v269 = vpop.permute.xlu0 %268
    %vm270 = vcmask 7168
    %s271 = scalar_lea.vmem %s1, 22
    %272 = vst.msk [vmem:[%s271] sm:$0x1] %vm270, %v269
    %s273 = scalar_lea.vmem %s1, 53
    %274 = vst.msk [vmem:[%s273] sm:$0x2] %vm270, %v269
    %s275 = scalar_lea.vmem %s1, 84
    %276 = vst.msk [vmem:[%s275] sm:$0x4] %vm270, %v269
    %s277 = scalar_lea.vmem %s1, 115
    %278 = vst.msk [vmem:[%s277] sm:$0x8] %vm270, %v269
    %v279 = vld [vmem:[#allocation0] sm:$0xf]
    %280 = vrot.lane.b32.xlu0 %v279, 105
    %v281 = vpop.permute.xlu0 %280
    %vm282 = vcmask 7168
    %s283 = scalar_lea.vmem %s1, 23
    %284 = vst.msk [vmem:[%s283] sm:$0x1] %vm282, %v281
    %s285 = scalar_lea.vmem %s1, 54
    %286 = vst.msk [vmem:[%s285] sm:$0x2] %vm282, %v281
    %s287 = scalar_lea.vmem %s1, 85
    %288 = vst.msk [vmem:[%s287] sm:$0x4] %vm282, %v281
    %s289 = scalar_lea.vmem %s1, 116
    %290 = vst.msk [vmem:[%s289] sm:$0x8] %vm282, %v281
    %v291 = vld [vmem:[#allocation0] sm:$0xf]
    %292 = vrot.lane.b32.xlu0 %v291, 104
    %v293 = vpop.permute.xlu0 %292
    %vm294 = vcmask 7168
    %s295 = scalar_lea.vmem %s1, 24
    %296 = vst.msk [vmem:[%s295] sm:$0x1] %vm294, %v293
    %s297 = scalar_lea.vmem %s1, 55
    %298 = vst.msk [vmem:[%s297] sm:$0x2] %vm294, %v293
    %s299 = scalar_lea.vmem %s1, 86
    %300 = vst.msk [vmem:[%s299] sm:$0x4] %vm294, %v293
    %s301 = scalar_lea.vmem %s1, 117
    %302 = vst.msk [vmem:[%s301] sm:$0x8] %vm294, %v293
    %v303 = vld [vmem:[#allocation0] sm:$0xf]
    %304 = vrot.lane.b32.xlu0 %v303, 103
    %v305 = vpop.permute.xlu0 %304
    %vm306 = vcmask 7168
    %s307 = scalar_lea.vmem %s1, 25
    %308 = vst.msk [vmem:[%s307] sm:$0x1] %vm306, %v305
    %s309 = scalar_lea.vmem %s1, 56
    %310 = vst.msk [vmem:[%s309] sm:$0x2] %vm306, %v305
    %s311 = scalar_lea.vmem %s1, 87
    %312 = vst.msk [vmem:[%s311] sm:$0x4] %vm306, %v305
    %s313 = scalar_lea.vmem %s1, 118
    %314 = vst.msk [vmem:[%s313] sm:$0x8] %vm306, %v305
    %v315 = vld [vmem:[#allocation0] sm:$0xf]
    %316 = vrot.lane.b32.xlu0 %v315, 102
    %v317 = vpop.permute.xlu0 %316
    %vm318 = vcmask 7168
    %s319 = scalar_lea.vmem %s1, 26
    %320 = vst.msk [vmem:[%s319] sm:$0x1] %vm318, %v317
    %s321 = scalar_lea.vmem %s1, 57
    %322 = vst.msk [vmem:[%s321] sm:$0x2] %vm318, %v317
    %s323 = scalar_lea.vmem %s1, 88
    %324 = vst.msk [vmem:[%s323] sm:$0x4] %vm318, %v317
    %s325 = scalar_lea.vmem %s1, 119
    %326 = vst.msk [vmem:[%s325] sm:$0x8] %vm318, %v317
    %v327 = vld [vmem:[#allocation0] sm:$0xf]
    %328 = vrot.lane.b32.xlu0 %v327, 101
    %v329 = vpop.permute.xlu0 %328
    %vm330 = vcmask 7168
    %s331 = scalar_lea.vmem %s1, 27
    %332 = vst.msk [vmem:[%s331] sm:$0x1] %vm330, %v329
    %s333 = scalar_lea.vmem %s1, 58
    %334 = vst.msk [vmem:[%s333] sm:$0x2] %vm330, %v329
    %s335 = scalar_lea.vmem %s1, 89
    %336 = vst.msk [vmem:[%s335] sm:$0x4] %vm330, %v329
    %s337 = scalar_lea.vmem %s1, 120
    %338 = vst.msk [vmem:[%s337] sm:$0x8] %vm330, %v329
    %v339 = vld [vmem:[#allocation0] sm:$0xf]
    %340 = vrot.lane.b32.xlu0 %v339, 100
    %v341 = vpop.permute.xlu0 %340
    %vm342 = vcmask 7168
    %s343 = scalar_lea.vmem %s1, 28
    %344 = vst.msk [vmem:[%s343] sm:$0x1] %vm342, %v341
    %s345 = scalar_lea.vmem %s1, 59
    %346 = vst.msk [vmem:[%s345] sm:$0x2] %vm342, %v341
    %s347 = scalar_lea.vmem %s1, 90
    %348 = vst.msk [vmem:[%s347] sm:$0x4] %vm342, %v341
    %s349 = scalar_lea.vmem %s1, 121
    %350 = vst.msk [vmem:[%s349] sm:$0x8] %vm342, %v341
    %v351 = vld [vmem:[#allocation0] sm:$0xf]
    %352 = vrot.lane.b32.xlu0 %v351, 99
    %v353 = vpop.permute.xlu0 %352
    %vm354 = vcmask 7168
    %s355 = scalar_lea.vmem %s1, 29
    %356 = vst.msk [vmem:[%s355] sm:$0x1] %vm354, %v353
    %s357 = scalar_lea.vmem %s1, 60
    %358 = vst.msk [vmem:[%s357] sm:$0x2] %vm354, %v353
    %s359 = scalar_lea.vmem %s1, 91
    %360 = vst.msk [vmem:[%s359] sm:$0x4] %vm354, %v353
    %s361 = scalar_lea.vmem %s1, 122
    %362 = vst.msk [vmem:[%s361] sm:$0x8] %vm354, %v353
    %v363 = vld [vmem:[#allocation0] sm:$0xf]
    %364 = vrot.lane.b32.xlu0 %v363, 98
    %v365 = vpop.permute.xlu0 %364
    %vm366 = vcmask 7168
    %s367 = scalar_lea.vmem %s1, 30
    %368 = vst.msk [vmem:[%s367] sm:$0x1] %vm366, %v365
    %s369 = scalar_lea.vmem %s1, 61
    %370 = vst.msk [vmem:[%s369] sm:$0x2] %vm366, %v365
    %s371 = scalar_lea.vmem %s1, 92
    %372 = vst.msk [vmem:[%s371] sm:$0x4] %vm366, %v365
    %s373 = scalar_lea.vmem %s1, 123
    %374 = vst.msk [vmem:[%s373] sm:$0x8] %vm366, %v365
    %v375 = vld [vmem:[#allocation0] sm:$0xf]
    %376 = vrot.lane.b32.xlu0 %v375, 97
    %v377 = vpop.permute.xlu0 %376
    %vm378 = vcmask 7168
    %s379 = scalar_lea.vmem %s1, 31
    %380 = vst.msk [vmem:[%s379] sm:$0x1] %vm378, %v377
    %s381 = scalar_lea.vmem %s1, 62
    %382 = vst.msk [vmem:[%s381] sm:$0x2] %vm378, %v377
    %s383 = scalar_lea.vmem %s1, 93
    %384 = vst.msk [vmem:[%s383] sm:$0x4] %vm378, %v377
    %s385 = scalar_lea.vmem %s1, 124
    %386 = vst.msk [vmem:[%s385] sm:$0x8] %vm378, %v377

// kernel: _lambda_.2
$region0: #{_lambda_.2}
  #allocation0 [shape = 'u32[]', space=smem, size = 0x4, offset = 0x4, fixed_abs, tag = 'smem constant byte address 0x4 - core index']
  #allocation1 [shape = 'u32[144,128]{1,0:T(1,128)}', space=vmem, size = 0x12000, scoped, tag = 'internal scratch']
  %s0 = inlined_call_operand.vmem [shape: bf16[4,16,256], index: 0, kind: input, shape index: {}]
  %s1 = inlined_call_operand.vmem [shape: bf16[64,64], index: 1, kind: input, shape index: {}]
  %s2 = inlined_call_operand.vmem [shape: f32[64,1], index: 2, kind: input, shape index: {}]
  %s3 = inlined_call_operand.vmem [shape: f32[64,1], index: 3, kind: input, shape index: {}]
  %s4 = inlined_call_operand.vmem [shape: bf16[4,32,256], index: 4, kind: output, shape index: {0}]
  %s5 = inlined_call_operand.hbm [shape: f32[4,32,256], index: 5, kind: output, shape index: {1}]
  %6 = xla_tuple %s4, %s5
  %s7 = sld [smem:[#allocation0]]
  $region57: #{_lambda_.2} parent=0
    _
  %s9 = ssub.s32 1, %s7
  %s10 = scalar_select 0, %s9, %s7
  $region1: #{_lambda_.2} parent=0
    #allocation2 [shape = 'u8[131072]{0}', space=vmem, size = 0x20000, scoped, tag = 'output window, operand 1']
    #allocation3 [shape = 's32[2]{0}', space=sflag, size = 0x8, scoped, tag = 'scoped memory for _lambda_.2']
    %11 = vsyncpa [#allocation3], 0
    %s12 = scalar_lea.sflag [#allocation3], 1
    %13 = vsyncpa %s12, 0
    loop: start=0, step=1, limit=4
    $region2: #{_lambda_.2} parent=1 // loop_pre_header
      _
    $region3: #{_lambda_.2} parent=1 // loop_header
      %s15 = sphi 0, %s19
      %p16 = scmp.ge.s32.totalorder %s15, 4
      %s25 = sphi 0, %s27
      %s28 = sphi 0, %s25
      %s29 = sphi 0, %s28
      %s45 = sphi 0, %s29
      %s49 = sphi 0, %s49
      %s51 = sphi 0, %s49
      %s52 = sphi 0, %s51
      %s66 = sphi 0, %s52
      %s70 = sphi 0, %s70
      %s72 = sphi 0, %s70
      %s73 = sphi 0, %s72
      %s87 = sphi 0, %s73
      %s91 = sphi 0, %s91
      %s93 = sphi 0, %s91
      %s94 = sphi 0, %s93
      %s108 = sphi 0, %s94
      %s114 = sphi 0, %s116
      %s117 = sphi 0, %s114
      %s118 = sphi 0, %s117
      %s134 = sphi 0, %s118
      %s140 = sphi 0, %s142
      %s143 = sphi 0, %s140
      %s144 = sphi 0, %s143
      %s160 = sphi 0, %s144
    $region4: #{_lambda_.2} parent=1 // loop_header_branch
      %18 = sbr.rel (%p16) target = $region8
    $region5: #{_lambda_.2} parent=1 // loop_body
      %s20 = ssub.s32 %s15, 1
      %s21 = ssub.s32 %s15, 2
      %s22 = sadd.s32 %s15, 1
      %s23 = ssub.s32 %s15, %s22
      %p24 = scmp.eq.s32.totalorder %s23, 0
      %s26 = sadd.s32 %s25, 1
      %s27 = scalar_select %p24, %s25, %s26
      %p30 = pneg %p24
      %p31 = scmp.eq.s32.totalorder %s15, 1
      %p32 = por %p30, %p31
      %p33 = scmp.ne.s32.totalorder %s25, %s28
      %p34 = scmp.eq.s32.totalorder %s15, 0
      %p35 = por %p33, %p34
      %p36 = scmp.ne.s32.totalorder %s25, %s28
      %p37 = scmp.eq.s32.totalorder %s20, 1
      %p38 = por %p36, %p37
      %p39 = scmp.ne.s32.totalorder %s28, %s29
      %p40 = scmp.eq.s32.totalorder %s20, 0
      %p41 = por %p39, %p40
      %p42 = scmp.ne.s32.totalorder %s28, %s29
      %p43 = scmp.eq.s32.totalorder %s21, 1
      %p44 = por %p42, %p43
      %p46 = scmp.ne.s32.totalorder %s29, %s45
      %p47 = scmp.eq.s32.totalorder %s21, 0
      %p48 = por %p46, %p47
      %s50 = sadd.s32 %s49, 1
      %p53 = scmp.eq.s32.totalorder %s15, 1
      %p54 = scmp.ne.s32.totalorder %s49, %s51
      %p55 = scmp.eq.s32.totalorder %s15, 0
      %p56 = por %p54, %p55
      %p57 = scmp.ne.s32.totalorder %s49, %s51
      %p58 = scmp.eq.s32.totalorder %s20, 1
      %p59 = por %p57, %p58
      %p60 = scmp.ne.s32.totalorder %s51, %s52
      %p61 = scmp.eq.s32.totalorder %s20, 0
      %p62 = por %p60, %p61
      %p63 = scmp.ne.s32.totalorder %s51, %s52
      %p64 = scmp.eq.s32.totalorder %s21, 1
      %p65 = por %p63, %p64
      %p67 = scmp.ne.s32.totalorder %s52, %s66
      %p68 = scmp.eq.s32.totalorder %s21, 0
      %p69 = por %p67, %p68
      %s71 = sadd.s32 %s70, 1
      %p74 = scmp.eq.s32.totalorder %s15, 1
      %p75 = scmp.ne.s32.totalorder %s70, %s72
      %p76 = scmp.eq.s32.totalorder %s15, 0
      %p77 = por %p75, %p76
      %p78 = scmp.ne.s32.totalorder %s70, %s72
      %p79 = scmp.eq.s32.totalorder %s20, 1
      %p80 = por %p78, %p79
      %p81 = scmp.ne.s32.totalorder %s72, %s73
      %p82 = scmp.eq.s32.totalorder %s20, 0
      %p83 = por %p81, %p82
      %p84 = scmp.ne.s32.totalorder %s72, %s73
      %p85 = scmp.eq.s32.totalorder %s21, 1
      %p86 = por %p84, %p85
      %p88 = scmp.ne.s32.totalorder %s73, %s87
      %p89 = scmp.eq.s32.totalorder %s21, 0
      %p90 = por %p88, %p89
      %s92 = sadd.s32 %s91, 1
      %p95 = scmp.eq.s32.totalorder %s15, 1
      %p96 = scmp.ne.s32.totalorder %s91, %s93
      %p97 = scmp.eq.s32.totalorder %s15, 0
      %p98 = por %p96, %p97
      %p99 = scmp.ne.s32.totalorder %s91, %s93
      %p100 = scmp.eq.s32.totalorder %s20, 1
      %p101 = por %p99, %p100
      %p102 = scmp.ne.s32.totalorder %s93, %s94
      %p103 = scmp.eq.s32.totalorder %s20, 0
      %p104 = por %p102, %p103
      %p105 = scmp.ne.s32.totalorder %s93, %s94
      %p106 = scmp.eq.s32.totalorder %s21, 1
      %p107 = por %p105, %p106
      %p109 = scmp.ne.s32.totalorder %s94, %s108
      %p110 = scmp.eq.s32.totalorder %s21, 0
      %p111 = por %p109, %p110
      %s112 = ssub.s32 %s15, %s22
      %p113 = scmp.eq.s32.totalorder %s112, 0
      %s115 = sadd.s32 %s114, 1
      %s116 = scalar_select %p113, %s114, %s115
      %p119 = pneg %p113
      %p120 = scmp.eq.s32.totalorder %s15, 1
      %p121 = por %p119, %p120
      %p122 = scmp.ne.s32.totalorder %s114, %s117
      %p123 = scmp.eq.s32.totalorder %s15, 0
      %p124 = por %p122, %p123
      %p125 = scmp.ne.s32.totalorder %s114, %s117
      %p126 = scmp.eq.s32.totalorder %s20, 1
      %p127 = por %p125, %p126
      %p128 = scmp.ne.s32.totalorder %s117, %s118
      %p129 = scmp.eq.s32.totalorder %s20, 0
      %p130 = por %p128, %p129
      %p131 = scmp.ne.s32.totalorder %s117, %s118
      %p132 = scmp.eq.s32.totalorder %s21, 1
      %p133 = por %p131, %p132
      %p135 = scmp.ne.s32.totalorder %s118, %s134
      %p136 = scmp.eq.s32.totalorder %s21, 0
      %p137 = por %p135, %p136
      %s138 = ssub.s32 %s15, %s22
      %p139 = scmp.eq.s32.totalorder %s138, 0
      %s141 = sadd.s32 %s140, 1
      %s142 = scalar_select %p139, %s140, %s141
      %p145 = pneg %p139
      %p146 = scmp.eq.s32.totalorder %s15, 1
      %p147 = por %p145, %p146
      %p148 = scmp.ne.s32.totalorder %s140, %s143
      %p149 = scmp.eq.s32.totalorder %s15, 0
      %p150 = por %p148, %p149
      %p151 = scmp.ne.s32.totalorder %s140, %s143
      %p152 = scmp.eq.s32.totalorder %s20, 1
      %p153 = por %p151, %p152
      %p154 = scmp.ne.s32.totalorder %s143, %s144
      %p155 = scmp.eq.s32.totalorder %s20, 0
      %p156 = por %p154, %p155
      %p157 = scmp.ne.s32.totalorder %s143, %s144
      %p158 = scmp.eq.s32.totalorder %s21, 1
      %p159 = por %p157, %p158
      %p161 = scmp.ne.s32.totalorder %s144, %s160
      %p162 = scmp.eq.s32.totalorder %s21, 0
      %p163 = por %p161, %p162
      %p164 = scmp.le.s32.totalorder 1, %s15
      %p165 = scmp.lt.s32.totalorder %s15, 3
      %p166 = pnand %p164, %p165
      %p167 = pneg %p166
      // Predicated region
      $region9: #{_lambda_.2} parent=5 // pred_check
        _
      $region10: #{_lambda_.2} parent=5 // pred_check_branch
        %169 = sbr.rel (%p166) target = $region12
      $region11: #{_lambda_.2} parent=5 // pred_region
        %s170 = ssub.s32 %s15, 1
        // Predicated region
        $region13: #{_lambda_.2} parent=11 // pred_check
          %p171 = pneg %p62
        $region14: #{_lambda_.2} parent=11 // pred_check_branch
          %173 = sbr.rel (%p171) target = $region16
        $region15: #{_lambda_.2} parent=11 // pred_region
          _
        $region16: #{_lambda_.2} parent=11 // pred_fallthru
          _
        // Predicated region
        $region17: #{_lambda_.2} parent=11 // pred_check
          %p174 = pneg %p83
        $region18: #{_lambda_.2} parent=11 // pred_check_branch
          %176 = sbr.rel (%p174) target = $region20
        $region19: #{_lambda_.2} parent=11 // pred_region
          _
        $region20: #{_lambda_.2} parent=11 // pred_fallthru
          _
        // Predicated region
        $region21: #{_lambda_.2} parent=11 // pred_check
          %p177 = pneg %p104
        $region22: #{_lambda_.2} parent=11 // pred_check_branch
          %179 = sbr.rel (%p177) target = $region24
        $region23: #{_lambda_.2} parent=11 // pred_region
          _
        $region24: #{_lambda_.2} parent=11 // pred_fallthru
          _
      $region12: #{_lambda_.2} parent=5 // pred_fallthru
        _
      %p180 = scmp.lt.s32.totalorder %s15, 2
      // Predicated region
      $region25: #{_lambda_.2} parent=5 // pred_check
        %p181 = pneg %p180
      $region26: #{_lambda_.2} parent=5 // pred_check_branch
        %183 = sbr.rel (%p181) target = $region28
      $region27: #{_lambda_.2} parent=5 // pred_region
        // Predicated region
        $region29: #{_lambda_.2} parent=27 // pred_check
          %p184 = pneg %p35
        $region30: #{_lambda_.2} parent=27 // pred_check_branch
          %186 = sbr.rel (%p184) target = $region32
        $region31: #{_lambda_.2} parent=27 // pred_region
          %s187 = smul.u32 2, %s15
          %p188 = scmp.lt.s32.totalorder %s187, 3
          %s189 = scalar_select %p188, %s187, 3
          %s190 = smul.addr %s189, 4
          %s191 = smul.addr %s190, 4
          %s192 = scalar_lea.vmem %s0, %s191
          %s193 = smul.u32 2, %s15
        $region32: #{_lambda_.2} parent=27 // pred_fallthru
          _
      $region28: #{_lambda_.2} parent=5 // pred_fallthru
        _
      %p194 = scmp.le.s32.totalorder 1, %s15
      %p195 = scmp.lt.s32.totalorder %s15, 3
      %p196 = pnand %p194, %p195
      %p197 = pneg %p196
      // Predicated region
      $region33: #{_lambda_.2} parent=5 // pred_check
        _
      $region34: #{_lambda_.2} parent=5 // pred_check_branch
        %199 = sbr.rel (%p196) target = $region36
      $region35: #{_lambda_.2} parent=5 // pred_region
        %s200 = ssub.s32 %s15, 1
        %s201 = smul.u32 2, %s20
        %p202 = scmp.lt.s32.totalorder %s201, 3
        %s203 = scalar_select %p202, %s201, 3
        %s204 = smul.addr %s203, 4
        %s205 = smul.addr %s204, 4
        %s206 = scalar_lea.vmem %s0, %s205
        %p207 = pneg %p41
        %p208 = pneg %p38
        %p209 = pneg %p62
        %p210 = pneg %p59
        %p211 = pneg %p83
        %p212 = pneg %p80
        %p213 = pneg %p104
        %p214 = pneg %p101
        %p215 = pneg %p130
        %p216 = pneg %p127
        %s217 = smul.u32 2, %s20
        %p218 = scmp.lt.s32.totalorder %s217, 3
        %s219 = scalar_select %p218, %s217, 3
        %s220 = smul.addr %s219, 8
        %s221 = smul.addr %s220, 4
        %s222 = scalar_lea.vmem %s4, %s221
        %p223 = pneg %p156
        %p224 = pneg %p153
        %s225 = sand.u32 %s143, 1
        %s226 = scalar_lea.sflag [#allocation3], %s225
        %s227 = sand.u32 %s143, 1
        %s228 = smul.addr %s227, 128
        %s229 = scalar_lea.vmem [#allocation2], %s228
        %s230 = smul.u32 2, %s20
        %p231 = scmp.lt.s32.totalorder %s230, 3
        %s232 = scalar_select %p231, %s230, 3
        %s233 = smul.addr %s232, 4
        %s234 = smul.addr %s233, 4
        %s235 = scalar_lea.vmem %s0, %s234
        %s236 = smul.u32 2, %s20
        %s237 = smul.u32 2, %s20
        %p238 = scmp.lt.s32.totalorder %s237, 3
        %s239 = scalar_select %p238, %s237, 3
        %s240 = smul.addr %s239, 8
        %s241 = smul.addr %s240, 4
        %s242 = scalar_lea.vmem %s4, %s241
        %s243 = smul.u32 2, %s20
        %s244 = smul.u32 2, %s20
        %v246 = vlaneseq
        %v247 = vand.u32 %v246, 127
        %v248 = vadd.s32 %v247, 128
        %vm249 = vcmp.lt.s32.totalorder %v247, 0
        %v250 = vsub.s32 0, %v247
        %v251 = vsel %vm249, %v250, %v247
        %v252 = vshrl.u32 %v251, 4
        %v253 = vand.u32 %v251, 15
        %v254 = vsub.s32 0, %v253
        %v255 = vsel %vm249, %v254, %v253
        %vm256 = vcmp.lt.s32.totalorder %v248, 0
        %v257 = vsub.s32 0, %v248
        %v258 = vsel %vm256, %v257, %v248
        %v259 = vshrl.u32 %v258, 4
        %v260 = vand.u32 %v258, 15
        %v261 = vsub.s32 0, %v260
        %v262 = vsel %vm256, %v261, %v260
        %vm263 = vcmp.ne.s32.totalorder %v255, 0
        %vm264 = vcmp.ne.s32.totalorder %v262, 0
        %vm265 = vcmp.lt.s32.totalorder %v255, 0
        %vm266 = vcmp.lt.s32.totalorder %v262, 0
        %vm267 = vmand %vm265, %vm263
        %vm268 = vmand %vm266, %vm264
        %v269 = vadd.s32 %v255, 16
        %v270 = vadd.s32 %v262, 16
        %v271 = vsel %vm267, %v269, %v255
        %v272 = vsel %vm268, %v270, %v262
        %vm273 = vcmp.ne.s32.totalorder %v271, 0
        %vm274 = vcmp.ne.s32.totalorder %v272, 0
        %vm275 = vcmp.ge.s32.totalorder %v247, 16
        %vm276 = vcmp.ge.s32.totalorder %v248, 16
        %v277 = vld [vmem:[%s1] sm:$0xf]
        %v278 = vld [vmem:[%s1 + $0x4] sm:$0xf]
        %v279 = vld [vmem:[%s1 + $0x8] sm:$0xf]
        %v280 = vld [vmem:[%s1 + $0xc] sm:$0xf]
        %v281 = vld [vmem:[%s1 + $0x10] sm:$0xf]
        %v282 = vld [vmem:[%s1 + $0x14] sm:$0xf]
        %v283 = vld [vmem:[%s1 + $0x18] sm:$0xf]
        %v284 = vld [vmem:[%s1 + $0x1c] sm:$0xf]
        %v285 = vld [vmem:[%s2] sm:$0xff]
        %v286 = vld [vmem:[%s2 + $0x8] sm:$0xff]
        %v287 = vld [vmem:[%s2 + $0x10] sm:$0xff]
        %v288 = vld [vmem:[%s2 + $0x18] sm:$0xff]
        %v289 = vld [vmem:[%s2 + $0x20] sm:$0xff]
        %v290 = vld [vmem:[%s2 + $0x28] sm:$0xff]
        %v291 = vld [vmem:[%s2 + $0x30] sm:$0xff]
        %v292 = vld [vmem:[%s2 + $0x38] sm:$0xff]
        %v293 = vld [vmem:[%s3] sm:$0xff]
        %v294 = vld [vmem:[%s3 + $0x8] sm:$0xff]
        %v295 = vld [vmem:[%s3 + $0x10] sm:$0xff]
        %v296 = vld [vmem:[%s3 + $0x18] sm:$0xff]
        %v297 = vld [vmem:[%s3 + $0x20] sm:$0xff]
        %v298 = vld [vmem:[%s3 + $0x28] sm:$0xff]
        %v299 = vld [vmem:[%s3 + $0x30] sm:$0xff]
        %v300 = vld [vmem:[%s3 + $0x38] sm:$0xff]
        %v301 = vld [vmem:[%s235] sm:$0xff]
        %v302 = vld [vmem:[%s235 + $0x8] sm:$0xff]
        %v303 = vunpack.c.l.bf16 %v301
        %v304 = vunpack.c.h.bf16 %v301
        %v305 = vunpack.c.l.bf16 %v302
        %v306 = vunpack.c.h.bf16 %v302
        %307 = vrot.lane.b32.xlu0 %v303, 1
        %v308 = vpop.permute.xlu0 %307
        %309 = vrot.lane.b32.xlu0 %v305, 1
        %v310 = vpop.permute.xlu0 %309
        %311 = vrot.lane.b32.xlu0 %v304, 1
        %v312 = vpop.permute.xlu0 %311
        %313 = vrot.lane.b32.xlu0 %v306, 1
        %v314 = vpop.permute.xlu0 %313
        %vm315 = vcmp.lt.s32.totalorder %v247, 1
        %v316 = vsel %vm315, %v308, %v312
        %v317 = vsel %vm315, %v310, %v314
        %v318 = vsel %vm315, %v312, %v308
        %v319 = vsel %vm315, %v314, %v310
        %v320 = vsel %vm273, %v318, 0.0
        %v321 = vsel %vm274, %v316, 0.0
        %v322 = vsel %vm273, %v319, 0.0
        %v323 = vsel %vm274, %v317, 0.0
        %324 = vrot.lane.b32.xlu0 %v303, 16
        %v325 = vpop.permute.xlu0 %324
        %326 = vrot.lane.b32.xlu0 %v305, 16
        %v327 = vpop.permute.xlu0 %326
        %328 = vrot.lane.b32.xlu0 %v304, 16
        %v329 = vpop.permute.xlu0 %328
        %330 = vrot.lane.b32.xlu0 %v306, 16
        %v331 = vpop.permute.xlu0 %330
        %vm332 = vcmp.lt.s32.totalorder %v247, 16
        %v333 = vsel %vm332, %v325, %v329
        %v334 = vsel %vm332, %v327, %v331
        %v335 = vsel %vm332, %v329, %v325
        %v336 = vsel %vm332, %v331, %v327
        %v337 = vsel %vm275, %v335, 0.0
        %v338 = vsel %vm276, %v333, 0.0
        %v339 = vsel %vm275, %v336, 0.0
        %v340 = vsel %vm276, %v334, 0.0
        %vm341 = vmand %vm273, %vm275
        %vm342 = vmand %vm274, %vm276
        %343 = vrot.lane.b32.xlu0 %v303, 17
        %v344 = vpop.permute.xlu0 %343
        %345 = vrot.lane.b32.xlu0 %v305, 17
        %v346 = vpop.permute.xlu0 %345
        %347 = vrot.lane.b32.xlu0 %v304, 17
        %v348 = vpop.permute.xlu0 %347
        %349 = vrot.lane.b32.xlu0 %v306, 17
        %v350 = vpop.permute.xlu0 %349
        %vm351 = vcmp.lt.s32.totalorder %v247, 17
        %v352 = vsel %vm351, %v344, %v348
        %v353 = vsel %vm351, %v346, %v350
        %v354 = vsel %vm351, %v348, %v344
        %v355 = vsel %vm351, %v350, %v346
        %v356 = vsel %vm341, %v354, 0.0
        %v357 = vsel %vm342, %v352, 0.0
        %v358 = vsel %vm341, %v355, 0.0
        %v359 = vsel %vm342, %v353, 0.0
        %v360 = vpack.c.bf16 %v305, %v303
        %v361 = vpack.c.bf16 %v306, %v304
        %v362 = vpack.c.bf16 %v322, %v320
        %v363 = vpack.c.bf16 %v323, %v321
        %v364 = vpack.c.bf16 %v339, %v337
        %v365 = vpack.c.bf16 %v340, %v338
        %v366 = vpack.c.bf16 %v358, %v356
        %v367 = vpack.c.bf16 %v359, %v357
        %v376 = vunpack.c.l.b16 %v277
        %v377 = vunpack.c.l.b16 %v278
        %v378 = vunpack.c.l.b16 %v279
        %v379 = vunpack.c.l.b16 %v280
        %v380 = vunpack.c.l.b16 %v281
        %v381 = vunpack.c.l.b16 %v282
        %v382 = vunpack.c.l.b16 %v283
        %v383 = vunpack.c.l.b16 %v284
        %v384 = vpack.c.b16 %v377, %v376
        %v385 = vpack.c.b16 %v379, %v378
        %v386 = vpack.c.b16 %v381, %v380
        %v387 = vpack.c.b16 %v383, %v382
        %vm388 = vcmask 523264
        %v390 = vsel %vm388, %v384, 0
        %v393 = vsel %vm388, %v385, 0
        %v396 = vsel %vm388, %v386, 0
        %v399 = vsel %vm388, %v387, 0
        %401 = vmatprep.subr.bf16.mxu0 %v361
        %402 = vmatpush1.bf16.msra.mxu0 %v360
        %403 = vmatprep.subr.bf16.mxu0 %v363
        %404 = vmatpush1.bf16.msra.mxu0 %v362
        %405 = vmatprep.subr.bf16.mxu0 %v365
        %406 = vmatpush1.bf16.msra.mxu0 %v364
        %407 = vmatprep.subr.bf16.mxu0 %v367
        %408 = vmatpush1.bf16.msra.mxu0 %v366
        %409 = vmatprep.subr.bf16.mxu0 0
        %410 = vmatpush1.bf16.msra.mxu0 0
        %411 = vmatprep.subr.bf16.mxu0 0
        %412 = vmatpush1.bf16.msra.mxu0 0
        %413 = vmatprep.subr.bf16.mxu0 0
        %414 = vmatpush1.bf16.msra.mxu0 0
        %415 = vmatprep.subr.bf16.mxu0 0
        %416 = vmatpush1.bf16.msra.mxu0 0
        %417 = vmatprep.subr.bf16.mxu0 0
        %418 = vmatpush1.bf16.msra.mxu0 0
        %419 = vmatprep.subr.bf16.mxu0 0
        %420 = vmatpush1.bf16.msra.mxu0 0
        %421 = vmatprep.subr.bf16.mxu0 0
        %422 = vmatpush1.bf16.msra.mxu0 0
        %423 = vmatprep.subr.bf16.mxu0 0
        %424 = vmatpush1.bf16.msra.mxu0 0
        %425 = vmatprep.subr.bf16.mxu0 0
        %426 = vmatpush1.bf16.msra.mxu0 0
        %427 = vmatprep.subr.bf16.mxu0 0
        %428 = vmatpush1.bf16.msra.mxu0 0
        %429 = vmatprep.subr.bf16.mxu0 0
        %430 = vmatpush1.bf16.msra.mxu0 0
        %431 = vmatprep.subr.bf16.mxu0 0
        %432 = vmatpush1.bf16.msra.mxu0 0
        %433 = vmatprep.mubr.bf16.mxu0 0
        %434 = vmatmul.mubr.bf16.gmra.mrb[0].mxu0 %v390
        %v435 = vpop.f32.mrb[0].mxu0
        %v436 = vadd.f32 0.0, %v435
        %v437 = vpop.f32.mrb[0].mxu0
        %v438 = vadd.f32 0.0, %v437
        %v439 = vpop.f32.mrb[0].mxu0
        %v440 = vadd.f32 0.0, %v439
        %v441 = vpop.f32.mrb[0].mxu0
        %v442 = vadd.f32 0.0, %v441
        %443 = vmatprep.mubr.bf16.mxu0 0
        %444 = vmatmul.mubr.bf16.gmra.mrb[0].mxu0 %v393
        %v445 = vpop.f32.mrb[0].mxu0
        %v446 = vadd.f32 0.0, %v445
        %v447 = vpop.f32.mrb[0].mxu0
        %v448 = vadd.f32 0.0, %v447
        %v449 = vpop.f32.mrb[0].mxu0
        %v450 = vadd.f32 0.0, %v449
        %v451 = vpop.f32.mrb[0].mxu0
        %v452 = vadd.f32 0.0, %v451
        %453 = vmatprep.mubr.bf16.mxu0 0
        %454 = vmatmul.mubr.bf16.gmra.mrb[0].mxu0 %v396
        %v455 = vpop.f32.mrb[0].mxu0
        %v456 = vadd.f32 0.0, %v455
        %v457 = vpop.f32.mrb[0].mxu0
        %v458 = vadd.f32 0.0, %v457
        %v459 = vpop.f32.mrb[0].mxu0
        %v460 = vadd.f32 0.0, %v459
        %v461 = vpop.f32.mrb[0].mxu0
        %v462 = vadd.f32 0.0, %v461
        %463 = vmatprep.mubr.bf16.mxu0 0
        %464 = vmatmul.mubr.bf16.gmra.mrb[0].mxu0 %v399
        %v465 = vpop.f32.mrb[0].mxu0
        %v466 = vadd.f32 0.0, %v465
        %v467 = vpop.f32.mrb[0].mxu0
        %v468 = vadd.f32 0.0, %v467
        %v469 = vpop.f32.mrb[0].mxu0
        %v470 = vadd.f32 0.0, %v469
        %v471 = vpop.f32.mrb[0].mxu0
        %v472 = vadd.f32 0.0, %v471
        %473 = vdwg.mxu0
        %v474 = vadd.f32 %v436, %v438
        %v475 = vadd.f32 %v474, %v440
        %v476 = vadd.f32 %v475, %v442
        %v477 = vadd.f32 %v476, %v446
        %v478 = vadd.f32 %v477, %v448
        %v479 = vadd.f32 %v478, %v450
        %v480 = vadd.f32 %v479, %v452
        %481 = vadd.xlane.f32.xlu0 %v480
        %v482 = vpop.xlane.xlu0 %481
        %v483 = vrot.slane %v482, 4
        %v484 = vadd.f32 %v482, %v483
        %v485 = vrot.slane %v484, 2
        %v486 = vadd.f32 %v484, %v485
        %v487 = vrot.slane %v486, 1
        %v488 = vadd.f32 %v486, %v487
        %s489 = vtos %v488
        %v490 = vmul.f32 %v436, %v436
        %v491 = vmul.f32 %v438, %v438
        %v492 = vmul.f32 %v440, %v440
        %v493 = vmul.f32 %v442, %v442
        %v494 = vmul.f32 %v446, %v446
        %v495 = vmul.f32 %v448, %v448
        %v496 = vmul.f32 %v450, %v450
        %v497 = vmul.f32 %v452, %v452
        %v498 = vadd.f32 %v490, %v491
        %v499 = vadd.f32 %v498, %v492
        %v500 = vadd.f32 %v499, %v493
        %v501 = vadd.f32 %v500, %v494
        %v502 = vadd.f32 %v501, %v495
        %v503 = vadd.f32 %v502, %v496
        %v504 = vadd.f32 %v503, %v497
        %505 = vadd.xlane.f32.xlu0 %v504
        %v506 = vpop.xlane.xlu0 %505
        %v507 = vrot.slane %v506, 4
        %v508 = vadd.f32 %v506, %v507
        %v509 = vrot.slane %v508, 2
        %v510 = vadd.f32 %v508, %v509
        %v511 = vrot.slane %v510, 1
        %v512 = vadd.f32 %v510, %v511
        %s513 = vtos %v512
        %v514 = vrcp.pop 8192.0
        %s515 = vtos %v514
        %s516 = smul.f32 %s489, %s515
        %v517 = vrcp.pop 8192.0
        %s518 = vtos %v517
        %s519 = smul.f32 %s513, %s518
        %s520 = smul.f32 %s516, %s516
        %s521 = ssub.f32 %s519, %s520
        %s522 = smax.f32 %s521, 0.0
        %v523 = vstv %s516
        %v524 = vsub.f32 %v436, %v523
        %v525 = vsub.f32 %v438, %v523
        %v526 = vsub.f32 %v440, %v523
        %v527 = vsub.f32 %v442, %v523
        %v528 = vsub.f32 %v446, %v523
        %v529 = vsub.f32 %v448, %v523
        %v530 = vsub.f32 %v450, %v523
        %v531 = vsub.f32 %v452, %v523
        %s532 = sadd.f32 %s522, 1e-05
        %v533 = vstv %s532
        %v534 = vrsqrt.pop %v533
        %s535 = vtos %v534
        %v536 = vstv %s535
        %v537 = vmul.f32 %v524, %v536
        %v538 = vmul.f32 %v525, %v536
        %v539 = vmul.f32 %v526, %v536
        %v540 = vmul.f32 %v527, %v536
        %v541 = vmul.f32 %v528, %v536
        %v542 = vmul.f32 %v529, %v536
        %v543 = vmul.f32 %v530, %v536
        %v544 = vmul.f32 %v531, %v536
        %546 = vset.pattern.permute.xlu0 0
        %547 = vperm.xlu0 %546, %v285
        %v548 = vpop.permute.xlu0 %547
        %551 = vset.pattern.permute.xlu0 0
        %552 = vperm.xlu0 %551, %v286
        %v553 = vpop.permute.xlu0 %552
        %556 = vset.pattern.permute.xlu0 0
        %557 = vperm.xlu0 %556, %v287
        %v558 = vpop.permute.xlu0 %557
        %561 = vset.pattern.permute.xlu0 0
        %562 = vperm.xlu0 %561, %v288
        %v563 = vpop.permute.xlu0 %562
        %v565 = vmul.f32 %v537, %v548
        %v566 = vmul.f32 %v538, %v548
        %v567 = vmul.f32 %v539, %v553
        %v568 = vmul.f32 %v540, %v553
        %v569 = vmul.f32 %v541, %v558
        %v570 = vmul.f32 %v542, %v558
        %v571 = vmul.f32 %v543, %v563
        %v572 = vmul.f32 %v544, %v563
        %574 = vset.pattern.permute.xlu0 0
        %575 = vperm.xlu0 %574, %v293
        %v576 = vpop.permute.xlu0 %575
        %579 = vset.pattern.permute.xlu0 0
        %580 = vperm.xlu0 %579, %v294
        %v581 = vpop.permute.xlu0 %580
        %584 = vset.pattern.permute.xlu0 0
        %585 = vperm.xlu0 %584, %v295
        %v586 = vpop.permute.xlu0 %585
        %589 = vset.pattern.permute.xlu0 0
        %590 = vperm.xlu0 %589, %v296
        %v591 = vpop.permute.xlu0 %590
        %v593 = vadd.f32 %v565, %v576
        %v594 = vadd.f32 %v566, %v576
        %v595 = vadd.f32 %v567, %v581
        %v596 = vadd.f32 %v568, %v581
        %v597 = vadd.f32 %v569, %v586
        %v598 = vadd.f32 %v570, %v586
        %v599 = vadd.f32 %v571, %v591
        %v600 = vadd.f32 %v572, %v591
        %v601 = vsub.f32 0.0, %v593
        %v602 = vsub.f32 0.0, %v594
        %v603 = vsub.f32 0.0, %v595
        %v604 = vsub.f32 0.0, %v596
        %v605 = vsub.f32 0.0, %v597
        %v606 = vsub.f32 0.0, %v598
        %v607 = vsub.f32 0.0, %v599
        %v608 = vsub.f32 0.0, %v600
        %v609 = vmul.f32 %v601, 1.442695
        %v610 = vpow.pop %v609
        %v611 = vmul.f32 %v602, 1.442695
        %v612 = vpow.pop %v611
        %v613 = vmul.f32 %v603, 1.442695
        %v614 = vpow.pop %v613
        %v615 = vmul.f32 %v604, 1.442695
        %v616 = vpow.pop %v615
        %v617 = vmul.f32 %v605, 1.442695
        %v618 = vpow.pop %v617
        %v619 = vmul.f32 %v606, 1.442695
        %v620 = vpow.pop %v619
        %v621 = vmul.f32 %v607, 1.442695
        %v622 = vpow.pop %v621
        %v623 = vmul.f32 %v608, 1.442695
        %v624 = vpow.pop %v623
        %v625 = vadd.f32 %v610, 1.0
        %v626 = vadd.f32 %v612, 1.0
        %v627 = vadd.f32 %v614, 1.0
        %v628 = vadd.f32 %v616, 1.0
        %v629 = vadd.f32 %v618, 1.0
        %v630 = vadd.f32 %v620, 1.0
        %v631 = vadd.f32 %v622, 1.0
        %v632 = vadd.f32 %v624, 1.0
        %v633 = vrcp.pop %v625
        %v634 = vrcp.pop %v626
        %v635 = vrcp.pop %v627
        %v636 = vrcp.pop %v628
        %v637 = vrcp.pop %v629
        %v638 = vrcp.pop %v630
        %v639 = vrcp.pop %v631
        %v640 = vrcp.pop %v632
        %v641 = vmul.f32 %v593, %v633
        %v642 = vmul.f32 %v594, %v634
        %v643 = vmul.f32 %v595, %v635
        %v644 = vmul.f32 %v596, %v636
        %v645 = vmul.f32 %v597, %v637
        %v646 = vmul.f32 %v598, %v638
        %v647 = vmul.f32 %v599, %v639
        %v648 = vmul.f32 %v600, %v640
        %v649 = vpack.c.bf16 %v643, %v641
        %v650 = vpack.c.bf16 %v644, %v642
        %v651 = vpack.c.bf16 %v647, %v645
        %v652 = vpack.c.bf16 %v648, %v646
        %v657 = vunpack.c.l.b16 %v649
        %v658 = vunpack.c.l.b16 %v650
        %v659 = vunpack.c.h.b16 %v649
        %v660 = vunpack.c.h.b16 %v650
        %v661 = vunpack.c.l.b16 %v651
        %v662 = vunpack.c.l.b16 %v652
        %v663 = vunpack.c.h.b16 %v651
        %v664 = vunpack.c.h.b16 %v652
        %v665 = vpack.c.b16 %v658, %v657
        %v666 = vpack.c.b16 %v660, %v659
        %v667 = vpack.c.b16 %v662, %v661
        %v668 = vpack.c.b16 %v664, %v663
        %673 = vst [vmem:[%s242] sm:$0xff] %v665
        %674 = vst [vmem:[%s242 + $0x8] sm:$0xff] %v666
        %675 = vst [vmem:[%s242 + $0x10] sm:$0xff] %v667
        %676 = vst [vmem:[%s242 + $0x18] sm:$0xff] %v668
        %v677 = vadd.f32 %v456, %v458
        %v678 = vadd.f32 %v677, %v460
        %v679 = vadd.f32 %v678, %v462
        %v680 = vadd.f32 %v679, %v466
        %v681 = vadd.f32 %v680, %v468
        %v682 = vadd.f32 %v681, %v470
        %v683 = vadd.f32 %v682, %v472
        %684 = vadd.xlane.f32.xlu0 %v683
        %v685 = vpop.xlane.xlu0 %684
        %v686 = vrot.slane %v685, 4
        %v687 = vadd.f32 %v685, %v686
        %v688 = vrot.slane %v687, 2
        %v689 = vadd.f32 %v687, %v688
        %v690 = vrot.slane %v689, 1
        %v691 = vadd.f32 %v689, %v690
        %s692 = vtos %v691
        %v693 = vmul.f32 %v456, %v456
        %v694 = vmul.f32 %v458, %v458
        %v695 = vmul.f32 %v460, %v460
        %v696 = vmul.f32 %v462, %v462
        %v697 = vmul.f32 %v466, %v466
        %v698 = vmul.f32 %v468, %v468
        %v699 = vmul.f32 %v470, %v470
        %v700 = vmul.f32 %v472, %v472
        %v701 = vadd.f32 %v693, %v694
        %v702 = vadd.f32 %v701, %v695
        %v703 = vadd.f32 %v702, %v696
        %v704 = vadd.f32 %v703, %v697
        %v705 = vadd.f32 %v704, %v698
        %v706 = vadd.f32 %v705, %v699
        %v707 = vadd.f32 %v706, %v700
        %708 = vadd.xlane.f32.xlu0 %v707
        %v709 = vpop.xlane.xlu0 %708
        %v710 = vrot.slane %v709, 4
        %v711 = vadd.f32 %v709, %v710
        %v712 = vrot.slane %v711, 2
        %v713 = vadd.f32 %v711, %v712
        %v714 = vrot.slane %v713, 1
        %v715 = vadd.f32 %v713, %v714
        %s716 = vtos %v715
        %v717 = vrcp.pop 8192.0
        %s718 = vtos %v717
        %s719 = smul.f32 %s692, %s718
        %v720 = vrcp.pop 8192.0
        %s721 = vtos %v720
        %s722 = smul.f32 %s716, %s721
        %s723 = smul.f32 %s719, %s719
        %s724 = ssub.f32 %s722, %s723
        %s725 = smax.f32 %s724, 0.0
        %v726 = vstv %s719
        %v727 = vsub.f32 %v456, %v726
        %v728 = vsub.f32 %v458, %v726
        %v729 = vsub.f32 %v460, %v726
        %v730 = vsub.f32 %v462, %v726
        %v731 = vsub.f32 %v466, %v726
        %v732 = vsub.f32 %v468, %v726
        %v733 = vsub.f32 %v470, %v726
        %v734 = vsub.f32 %v472, %v726
        %s735 = sadd.f32 %s725, 1e-05
        %v736 = vstv %s735
        %v737 = vrsqrt.pop %v736
        %s738 = vtos %v737
        %v739 = vstv %s738
        %v740 = vmul.f32 %v727, %v739
        %v741 = vmul.f32 %v728, %v739
        %v742 = vmul.f32 %v729, %v739
        %v743 = vmul.f32 %v730, %v739
        %v744 = vmul.f32 %v731, %v739
        %v745 = vmul.f32 %v732, %v739
        %v746 = vmul.f32 %v733, %v739
        %v747 = vmul.f32 %v734, %v739
        %749 = vset.pattern.permute.xlu0 0
        %750 = vperm.xlu0 %749, %v289
        %v751 = vpop.permute.xlu0 %750
        %754 = vset.pattern.permute.xlu0 0
        %755 = vperm.xlu0 %754, %v290
        %v756 = vpop.permute.xlu0 %755
        %759 = vset.pattern.permute.xlu0 0
        %760 = vperm.xlu0 %759, %v291
        %v761 = vpop.permute.xlu0 %760
        %764 = vset.pattern.permute.xlu0 0
        %765 = vperm.xlu0 %764, %v292
        %v766 = vpop.permute.xlu0 %765
        %v768 = vmul.f32 %v740, %v751
        %v769 = vmul.f32 %v741, %v751
        %v770 = vmul.f32 %v742, %v756
        %v771 = vmul.f32 %v743, %v756
        %v772 = vmul.f32 %v744, %v761
        %v773 = vmul.f32 %v745, %v761
        %v774 = vmul.f32 %v746, %v766
        %v775 = vmul.f32 %v747, %v766
        %777 = vset.pattern.permute.xlu0 0
        %778 = vperm.xlu0 %777, %v297
        %v779 = vpop.permute.xlu0 %778
        %782 = vset.pattern.permute.xlu0 0
        %783 = vperm.xlu0 %782, %v298
        %v784 = vpop.permute.xlu0 %783
        %787 = vset.pattern.permute.xlu0 0
        %788 = vperm.xlu0 %787, %v299
        %v789 = vpop.permute.xlu0 %788
        %792 = vset.pattern.permute.xlu0 0
        %793 = vperm.xlu0 %792, %v300
        %v794 = vpop.permute.xlu0 %793
        %v796 = vadd.f32 %v768, %v779
        %v797 = vadd.f32 %v769, %v779
        %v798 = vadd.f32 %v770, %v784
        %v799 = vadd.f32 %v771, %v784
        %v800 = vadd.f32 %v772, %v789
        %v801 = vadd.f32 %v773, %v789
        %v802 = vadd.f32 %v774, %v794
        %v803 = vadd.f32 %v775, %v794
        %v804 = vsub.f32 0.0, %v796
        %v805 = vsub.f32 0.0, %v797
        %v806 = vsub.f32 0.0, %v798
        %v807 = vsub.f32 0.0, %v799
        %v808 = vsub.f32 0.0, %v800
        %v809 = vsub.f32 0.0, %v801
        %v810 = vsub.f32 0.0, %v802
        %v811 = vsub.f32 0.0, %v803
        %v812 = vmul.f32 %v804, 1.442695
        %v813 = vpow.pop %v812
        %v814 = vmul.f32 %v805, 1.442695
        %v815 = vpow.pop %v814
        %v816 = vmul.f32 %v806, 1.442695
        %v817 = vpow.pop %v816
        %v818 = vmul.f32 %v807, 1.442695
        %v819 = vpow.pop %v818
        %v820 = vmul.f32 %v808, 1.442695
        %v821 = vpow.pop %v820
        %v822 = vmul.f32 %v809, 1.442695
        %v823 = vpow.pop %v822
        %v824 = vmul.f32 %v810, 1.442695
        %v825 = vpow.pop %v824
        %v826 = vmul.f32 %v811, 1.442695
        %v827 = vpow.pop %v826
        %v828 = vadd.f32 %v813, 1.0
        %v829 = vadd.f32 %v815, 1.0
        %v830 = vadd.f32 %v817, 1.0
        %v831 = vadd.f32 %v819, 1.0
        %v832 = vadd.f32 %v821, 1.0
        %v833 = vadd.f32 %v823, 1.0
        %v834 = vadd.f32 %v825, 1.0
        %v835 = vadd.f32 %v827, 1.0
        %v836 = vrcp.pop %v828
        %v837 = vrcp.pop %v829
        %v838 = vrcp.pop %v830
        %v839 = vrcp.pop %v831
        %v840 = vrcp.pop %v832
        %v841 = vrcp.pop %v833
        %v842 = vrcp.pop %v834
        %v843 = vrcp.pop %v835
        %v844 = vmul.f32 %v796, %v836
        %v845 = vmul.f32 %v797, %v837
        %v846 = vmul.f32 %v798, %v838
        %v847 = vmul.f32 %v799, %v839
        %v848 = vmul.f32 %v800, %v840
        %v849 = vmul.f32 %v801, %v841
        %v850 = vmul.f32 %v802, %v842
        %v851 = vmul.f32 %v803, %v843
        %852 = vst [vmem:[%s229] sm:$0xff] %v844
        %853 = vst [vmem:[%s229 + $0x8] sm:$0xff] %v845
        %854 = vst [vmem:[%s229 + $0x10] sm:$0xff] %v846
        %855 = vst [vmem:[%s229 + $0x18] sm:$0xff] %v847
        %856 = vst [vmem:[%s229 + $0x20] sm:$0xff] %v848
        %857 = vst [vmem:[%s229 + $0x28] sm:$0xff] %v849
        %858 = vst [vmem:[%s229 + $0x30] sm:$0xff] %v850
        %859 = vst [vmem:[%s229 + $0x38] sm:$0xff] %v851
        %s860 = scalar_lea.vmem %s235, 16
        %v861 = vld [vmem:[%s860] sm:$0xff]
        %v862 = vld [vmem:[%s860 + $0x8] sm:$0xff]
        %v863 = vunpack.c.l.bf16 %v861
        %v864 = vunpack.c.h.bf16 %v861
        %v865 = vunpack.c.l.bf16 %v862
        %v866 = vunpack.c.h.bf16 %v862
        %867 = vrot.lane.b32.xlu0 %v863, 1
        %v868 = vpop.permute.xlu0 %867
        %869 = vrot.lane.b32.xlu0 %v865, 1
        %v870 = vpop.permute.xlu0 %869
        %871 = vrot.lane.b32.xlu0 %v864, 1
        %v872 = vpop.permute.xlu0 %871
        %873 = vrot.lane.b32.xlu0 %v866, 1
        %v874 = vpop.permute.xlu0 %873
        %v875 = vsel %vm315, %v868, %v872
        %v876 = vsel %vm315, %v870, %v874
        %v877 = vsel %vm315, %v872, %v868
        %v878 = vsel %vm315, %v874, %v870
        %v879 = vsel %vm273, %v877, 0.0
        %v880 = vsel %vm274, %v875, 0.0
        %v881 = vsel %vm273, %v878, 0.0
        %v882 = vsel %vm274, %v876, 0.0
        %883 = vrot.lane.b32.xlu0 %v863, 16
        %v884 = vpop.permute.xlu0 %883
        %885 = vrot.lane.b32.xlu0 %v865, 16
        %v886 = vpop.permute.xlu0 %885
        %887 = vrot.lane.b32.xlu0 %v864, 16
        %v888 = vpop.permute.xlu0 %887
        %889 = vrot.lane.b32.xlu0 %v866, 16
        %v890 = vpop.permute.xlu0 %889
        %v891 = vsel %vm332, %v884, %v888
        %v892 = vsel %vm332, %v886, %v890
        %v893 = vsel %vm332, %v888, %v884
        %v894 = vsel %vm332, %v890, %v886
        %v895 = vsel %vm275, %v893, 0.0
        %v896 = vsel %vm276, %v891, 0.0
        %v897 = vsel %vm275, %v894, 0.0
        %v898 = vsel %vm276, %v892, 0.0
        %899 = vrot.lane.b32.xlu0 %v863, 17
        %v900 = vpop.permute.xlu0 %899
        %901 = vrot.lane.b32.xlu0 %v865, 17
        %v902 = vpop.permute.xlu0 %901
        %903 = vrot.lane.b32.xlu0 %v864, 17
        %v904 = vpop.permute.xlu0 %903
        %905 = vrot.lane.b32.xlu0 %v866, 17
        %v906 = vpop.permute.xlu0 %905
        %v907 = vsel %vm351, %v900, %v904
        %v908 = vsel %vm351, %v902, %v906
        %v909 = vsel %vm351, %v904, %v900
        %v910 = vsel %vm351, %v906, %v902
        %v911 = vsel %vm341, %v909, 0.0
        %v912 = vsel %vm342, %v907, 0.0
        %v913 = vsel %vm341, %v910, 0.0
        %v914 = vsel %vm342, %v908, 0.0
        %v915 = vpack.c.bf16 %v865, %v863
        %v916 = vpack.c.bf16 %v866, %v864
        %v917 = vpack.c.bf16 %v881, %v879
        %v918 = vpack.c.bf16 %v882, %v880
        %v919 = vpack.c.bf16 %v897, %v895
        %v920 = vpack.c.bf16 %v898, %v896
        %v921 = vpack.c.bf16 %v913, %v911
        %v922 = vpack.c.bf16 %v914, %v912
        %923 = vmatprep.subr.bf16.mxu0 %v916
        %924 = vmatpush1.bf16.msra.mxu0 %v915
        %925 = vmatprep.subr.bf16.mxu0 %v918
        %926 = vmatpush1.bf16.msra.mxu0 %v917
        %927 = vmatprep.subr.bf16.mxu0 %v920
        %928 = vmatpush1.bf16.msra.mxu0 %v919
        %929 = vmatprep.subr.bf16.mxu0 %v922
        %930 = vmatpush1.bf16.msra.mxu0 %v921
        %931 = vmatprep.subr.bf16.mxu0 0
        %932 = vmatpush1.bf16.msra.mxu0 0
        %933 = vmatprep.subr.bf16.mxu0 0
        %934 = vmatpush1.bf16.msra.mxu0 0
        %935 = vmatprep.subr.bf16.mxu0 0
        %936 = vmatpush1.bf16.msra.mxu0 0
        %937 = vmatprep.subr.bf16.mxu0 0
        %938 = vmatpush1.bf16.msra.mxu0 0
        %939 = vmatprep.subr.bf16.mxu0 0
        %940 = vmatpush1.bf16.msra.mxu0 0
        %941 = vmatprep.subr.bf16.mxu0 0
        %942 = vmatpush1.bf16.msra.mxu0 0
        %943 = vmatprep.subr.bf16.mxu0 0
        %944 = vmatpush1.bf16.msra.mxu0 0
        %945 = vmatprep.subr.bf16.mxu0 0
        %946 = vmatpush1.bf16.msra.mxu0 0
        %947 = vmatprep.subr.bf16.mxu0 0
        %948 = vmatpush1.bf16.msra.mxu0 0
        %949 = vmatprep.subr.bf16.mxu0 0
        %950 = vmatpush1.bf16.msra.mxu0 0
        %951 = vmatprep.subr.bf16.mxu0 0
        %952 = vmatpush1.bf16.msra.mxu0 0
        %953 = vmatprep.subr.bf16.mxu0 0
        %954 = vmatpush1.bf16.msra.mxu0 0
        %955 = vmatprep.mubr.bf16.mxu0 0
        %956 = vmatmul.mubr.bf16.gmra.mrb[0].mxu0 %v390
        %v957 = vpop.f32.mrb[0].mxu0
        %v958 = vadd.f32 0.0, %v957
        %v959 = vpop.f32.mrb[0].mxu0
        %v960 = vadd.f32 0.0, %v959
        %v961 = vpop.f32.mrb[0].mxu0
        %v962 = vadd.f32 0.0, %v961
        %v963 = vpop.f32.mrb[0].mxu0
        %v964 = vadd.f32 0.0, %v963
        %965 = vmatprep.mubr.bf16.mxu0 0
        %966 = vmatmul.mubr.bf16.gmra.mrb[0].mxu0 %v393
        %v967 = vpop.f32.mrb[0].mxu0
        %v968 = vadd.f32 0.0, %v967
        %v969 = vpop.f32.mrb[0].mxu0
        %v970 = vadd.f32 0.0, %v969
        %v971 = vpop.f32.mrb[0].mxu0
        %v972 = vadd.f32 0.0, %v971
        %v973 = vpop.f32.mrb[0].mxu0
        %v974 = vadd.f32 0.0, %v973
        %975 = vmatprep.mubr.bf16.mxu0 0
        %976 = vmatmul.mubr.bf16.gmra.mrb[0].mxu0 %v396
        %v977 = vpop.f32.mrb[0].mxu0
        %v978 = vadd.f32 0.0, %v977
        %v979 = vpop.f32.mrb[0].mxu0
        %v980 = vadd.f32 0.0, %v979
        %v981 = vpop.f32.mrb[0].mxu0
        %v982 = vadd.f32 0.0, %v981
        %v983 = vpop.f32.mrb[0].mxu0
        %v984 = vadd.f32 0.0, %v983
        %985 = vmatprep.mubr.bf16.mxu0 0
        %986 = vmatmul.mubr.bf16.gmra.mrb[0].mxu0 %v399
        %v987 = vpop.f32.mrb[0].mxu0
        %v988 = vadd.f32 0.0, %v987
        %v989 = vpop.f32.mrb[0].mxu0
        %v990 = vadd.f32 0.0, %v989
        %v991 = vpop.f32.mrb[0].mxu0
        %v992 = vadd.f32 0.0, %v991
        %v993 = vpop.f32.mrb[0].mxu0
        %v994 = vadd.f32 0.0, %v993
        %995 = vdwg.mxu0
        %v996 = vadd.f32 %v958, %v960
        %v997 = vadd.f32 %v996, %v962
        %v998 = vadd.f32 %v997, %v964
        %v999 = vadd.f32 %v998, %v968
        %v1000 = vadd.f32 %v999, %v970
        %v1001 = vadd.f32 %v1000, %v972
        %v1002 = vadd.f32 %v1001, %v974
        %1003 = vadd.xlane.f32.xlu0 %v1002
        %v1004 = vpop.xlane.xlu0 %1003
        %v1005 = vrot.slane %v1004, 4
        %v1006 = vadd.f32 %v1004, %v1005
        %v1007 = vrot.slane %v1006, 2
        %v1008 = vadd.f32 %v1006, %v1007
        %v1009 = vrot.slane %v1008, 1
        %v1010 = vadd.f32 %v1008, %v1009
        %s1011 = vtos %v1010
        %v1012 = vmul.f32 %v958, %v958
        %v1013 = vmul.f32 %v960, %v960
        %v1014 = vmul.f32 %v962, %v962
        %v1015 = vmul.f32 %v964, %v964
        %v1016 = vmul.f32 %v968, %v968
        %v1017 = vmul.f32 %v970, %v970
        %v1018 = vmul.f32 %v972, %v972
        %v1019 = vmul.f32 %v974, %v974
        %v1020 = vadd.f32 %v1012, %v1013
        %v1021 = vadd.f32 %v1020, %v1014
        %v1022 = vadd.f32 %v1021, %v1015
        %v1023 = vadd.f32 %v1022, %v1016
        %v1024 = vadd.f32 %v1023, %v1017
        %v1025 = vadd.f32 %v1024, %v1018
        %v1026 = vadd.f32 %v1025, %v1019
        %1027 = vadd.xlane.f32.xlu0 %v1026
        %v1028 = vpop.xlane.xlu0 %1027
        %v1029 = vrot.slane %v1028, 4
        %v1030 = vadd.f32 %v1028, %v1029
        %v1031 = vrot.slane %v1030, 2
        %v1032 = vadd.f32 %v1030, %v1031
        %v1033 = vrot.slane %v1032, 1
        %v1034 = vadd.f32 %v1032, %v1033
        %s1035 = vtos %v1034
        %v1036 = vrcp.pop 8192.0
        %s1037 = vtos %v1036
        %s1038 = smul.f32 %s1011, %s1037
        %v1039 = vrcp.pop 8192.0
        %s1040 = vtos %v1039
        %s1041 = smul.f32 %s1035, %s1040
        %s1042 = smul.f32 %s1038, %s1038
        %s1043 = ssub.f32 %s1041, %s1042
        %s1044 = smax.f32 %s1043, 0.0
        %v1045 = vstv %s1038
        %v1046 = vsub.f32 %v958, %v1045
        %v1047 = vsub.f32 %v960, %v1045
        %v1048 = vsub.f32 %v962, %v1045
        %v1049 = vsub.f32 %v964, %v1045
        %v1050 = vsub.f32 %v968, %v1045
        %v1051 = vsub.f32 %v970, %v1045
        %v1052 = vsub.f32 %v972, %v1045
        %v1053 = vsub.f32 %v974, %v1045
        %s1054 = sadd.f32 %s1044, 1e-05
        %v1055 = vstv %s1054
        %v1056 = vrsqrt.pop %v1055
        %s1057 = vtos %v1056
        %v1058 = vstv %s1057
        %v1059 = vmul.f32 %v1046, %v1058
        %v1060 = vmul.f32 %v1047, %v1058
        %v1061 = vmul.f32 %v1048, %v1058
        %v1062 = vmul.f32 %v1049, %v1058
        %v1063 = vmul.f32 %v1050, %v1058
        %v1064 = vmul.f32 %v1051, %v1058
        %v1065 = vmul.f32 %v1052, %v1058
        %v1066 = vmul.f32 %v1053, %v1058
        %v1067 = vmul.f32 %v1059, %v548
        %v1068 = vmul.f32 %v1060, %v548
        %v1069 = vmul.f32 %v1061, %v553
        %v1070 = vmul.f32 %v1062, %v553
        %v1071 = vmul.f32 %v1063, %v558
        %v1072 = vmul.f32 %v1064, %v558
        %v1073 = vmul.f32 %v1065, %v563
        %v1074 = vmul.f32 %v1066, %v563
        %v1075 = vadd.f32 %v1067, %v576
        %v1076 = vadd.f32 %v1068, %v576
        %v1077 = vadd.f32 %v1069, %v581
        %v1078 = vadd.f32 %v1070, %v581
        %v1079 = vadd.f32 %v1071, %v586
        %v1080 = vadd.f32 %v1072, %v586
        %v1081 = vadd.f32 %v1073, %v591
        %v1082 = vadd.f32 %v1074, %v591
        %v1083 = vsub.f32 0.0, %v1075
        %v1084 = vsub.f32 0.0, %v1076
        %v1085 = vsub.f32 0.0, %v1077
        %v1086 = vsub.f32 0.0, %v1078
        %v1087 = vsub.f32 0.0, %v1079
        %v1088 = vsub.f32 0.0, %v1080
        %v1089 = vsub.f32 0.0, %v1081
        %v1090 = vsub.f32 0.0, %v1082
        %v1091 = vmul.f32 %v1083, 1.442695
        %v1092 = vpow.pop %v1091
        %v1093 = vmul.f32 %v1084, 1.442695
        %v1094 = vpow.pop %v1093
        %v1095 = vmul.f32 %v1085, 1.442695
        %v1096 = vpow.pop %v1095
        %v1097 = vmul.f32 %v1086, 1.442695
        %v1098 = vpow.pop %v1097
        %v1099 = vmul.f32 %v1087, 1.442695
        %v1100 = vpow.pop %v1099
        %v1101 = vmul.f32 %v1088, 1.442695
        %v1102 = vpow.pop %v1101
        %v1103 = vmul.f32 %v1089, 1.442695
        %v1104 = vpow.pop %v1103
        %v1105 = vmul.f32 %v1090, 1.442695
        %v1106 = vpow.pop %v1105
        %v1107 = vadd.f32 %v1092, 1.0
        %v1108 = vadd.f32 %v1094, 1.0
        %v1109 = vadd.f32 %v1096, 1.0
        %v1110 = vadd.f32 %v1098, 1.0
        %v1111 = vadd.f32 %v1100, 1.0
        %v1112 = vadd.f32 %v1102, 1.0
        %v1113 = vadd.f32 %v1104, 1.0
        %v1114 = vadd.f32 %v1106, 1.0
        %v1115 = vrcp.pop %v1107
        %v1116 = vrcp.pop %v1108
        %v1117 = vrcp.pop %v1109
        %v1118 = vrcp.pop %v1110
        %v1119 = vrcp.pop %v1111
        %v1120 = vrcp.pop %v1112
        %v1121 = vrcp.pop %v1113
        %v1122 = vrcp.pop %v1114
        %v1123 = vmul.f32 %v1075, %v1115
        %v1124 = vmul.f32 %v1076, %v1116
        %v1125 = vmul.f32 %v1077, %v1117
        %v1126 = vmul.f32 %v1078, %v1118
        %v1127 = vmul.f32 %v1079, %v1119
        %v1128 = vmul.f32 %v1080, %v1120
        %v1129 = vmul.f32 %v1081, %v1121
        %v1130 = vmul.f32 %v1082, %v1122
        %v1131 = vpack.c.bf16 %v1125, %v1123
        %v1132 = vpack.c.bf16 %v1126, %v1124
        %v1133 = vpack.c.bf16 %v1129, %v1127
        %v1134 = vpack.c.bf16 %v1130, %v1128
        %v1139 = vunpack.c.l.b16 %v1131
        %v1140 = vunpack.c.l.b16 %v1132
        %v1141 = vunpack.c.h.b16 %v1131
        %v1142 = vunpack.c.h.b16 %v1132
        %v1143 = vunpack.c.l.b16 %v1133
        %v1144 = vunpack.c.l.b16 %v1134
        %v1145 = vunpack.c.h.b16 %v1133
        %v1146 = vunpack.c.h.b16 %v1134
        %v1147 = vpack.c.b16 %v1140, %v1139
        %v1148 = vpack.c.b16 %v1142, %v1141
        %v1149 = vpack.c.b16 %v1144, %v1143
        %v1150 = vpack.c.b16 %v1146, %v1145
        %s1155 = scalar_lea.vmem %s242, 32
        %1156 = vst [vmem:[%s1155] sm:$0xff] %v1147
        %1157 = vst [vmem:[%s1155 + $0x8] sm:$0xff] %v1148
        %1158 = vst [vmem:[%s1155 + $0x10] sm:$0xff] %v1149
        %1159 = vst [vmem:[%s1155 + $0x18] sm:$0xff] %v1150
        %v1160 = vadd.f32 %v978, %v980
        %v1161 = vadd.f32 %v1160, %v982
        %v1162 = vadd.f32 %v1161, %v984
        %v1163 = vadd.f32 %v1162, %v988
        %v1164 = vadd.f32 %v1163, %v990
        %v1165 = vadd.f32 %v1164, %v992
        %v1166 = vadd.f32 %v1165, %v994
        %1167 = vadd.xlane.f32.xlu0 %v1166
        %v1168 = vpop.xlane.xlu0 %1167
        %v1169 = vrot.slane %v1168, 4
        %v1170 = vadd.f32 %v1168, %v1169
        %v1171 = vrot.slane %v1170, 2
        %v1172 = vadd.f32 %v1170, %v1171
        %v1173 = vrot.slane %v1172, 1
        %v1174 = vadd.f32 %v1172, %v1173
        %s1175 = vtos %v1174
        %v1176 = vmul.f32 %v978, %v978
        %v1177 = vmul.f32 %v980, %v980
        %v1178 = vmul.f32 %v982, %v982
        %v1179 = vmul.f32 %v984, %v984
        %v1180 = vmul.f32 %v988, %v988
        %v1181 = vmul.f32 %v990, %v990
        %v1182 = vmul.f32 %v992, %v992
        %v1183 = vmul.f32 %v994, %v994
        %v1184 = vadd.f32 %v1176, %v1177
        %v1185 = vadd.f32 %v1184, %v1178
        %v1186 = vadd.f32 %v1185, %v1179
        %v1187 = vadd.f32 %v1186, %v1180
        %v1188 = vadd.f32 %v1187, %v1181
        %v1189 = vadd.f32 %v1188, %v1182
        %v1190 = vadd.f32 %v1189, %v1183
        %1191 = vadd.xlane.f32.xlu0 %v1190
        %v1192 = vpop.xlane.xlu0 %1191
        %v1193 = vrot.slane %v1192, 4
        %v1194 = vadd.f32 %v1192, %v1193
        %v1195 = vrot.slane %v1194, 2
        %v1196 = vadd.f32 %v1194, %v1195
        %v1197 = vrot.slane %v1196, 1
        %v1198 = vadd.f32 %v1196, %v1197
        %s1199 = vtos %v1198
        %v1200 = vrcp.pop 8192.0
        %s1201 = vtos %v1200
        %s1202 = smul.f32 %s1175, %s1201
        %v1203 = vrcp.pop 8192.0
        %s1204 = vtos %v1203
        %s1205 = smul.f32 %s1199, %s1204
        %s1206 = smul.f32 %s1202, %s1202
        %s1207 = ssub.f32 %s1205, %s1206
        %s1208 = smax.f32 %s1207, 0.0
        %v1209 = vstv %s1202
        %v1210 = vsub.f32 %v978, %v1209
        %v1211 = vsub.f32 %v980, %v1209
        %v1212 = vsub.f32 %v982, %v1209
        %v1213 = vsub.f32 %v984, %v1209
        %v1214 = vsub.f32 %v988, %v1209
        %v1215 = vsub.f32 %v990, %v1209
        %v1216 = vsub.f32 %v992, %v1209
        %v1217 = vsub.f32 %v994, %v1209
        %s1218 = sadd.f32 %s1208, 1e-05
        %v1219 = vstv %s1218
        %v1220 = vrsqrt.pop %v1219
        %s1221 = vtos %v1220
        %v1222 = vstv %s1221
        %v1223 = vmul.f32 %v1210, %v1222
        %v1224 = vmul.f32 %v1211, %v1222
        %v1225 = vmul.f32 %v1212, %v1222
        %v1226 = vmul.f32 %v1213, %v1222
        %v1227 = vmul.f32 %v1214, %v1222
        %v1228 = vmul.f32 %v1215, %v1222
        %v1229 = vmul.f32 %v1216, %v1222
        %v1230 = vmul.f32 %v1217, %v1222
        %v1231 = vmul.f32 %v1223, %v751
        %v1232 = vmul.f32 %v1224, %v751
        %v1233 = vmul.f32 %v1225, %v756
        %v1234 = vmul.f32 %v1226, %v756
        %v1235 = vmul.f32 %v1227, %v761
        %v1236 = vmul.f32 %v1228, %v761
        %v1237 = vmul.f32 %v1229, %v766
        %v1238 = vmul.f32 %v1230, %v766
        %v1239 = vadd.f32 %v1231, %v779
        %v1240 = vadd.f32 %v1232, %v779
        %v1241 = vadd.f32 %v1233, %v784
        %v1242 = vadd.f32 %v1234, %v784
        %v1243 = vadd.f32 %v1235, %v789
        %v1244 = vadd.f32 %v1236, %v789
        %v1245 = vadd.f32 %v1237, %v794
        %v1246 = vadd.f32 %v1238, %v794
        %v1247 = vsub.f32 0.0, %v1239
        %v1248 = vsub.f32 0.0, %v1240
        %v1249 = vsub.f32 0.0, %v1241
        %v1250 = vsub.f32 0.0, %v1242
        %v1251 = vsub.f32 0.0, %v1243
        %v1252 = vsub.f32 0.0, %v1244
        %v1253 = vsub.f32 0.0, %v1245
        %v1254 = vsub.f32 0.0, %v1246
        %v1255 = vmul.f32 %v1247, 1.442695
        %v1256 = vpow.pop %v1255
        %v1257 = vmul.f32 %v1248, 1.442695
        %v1258 = vpow.pop %v1257
        %v1259 = vmul.f32 %v1249, 1.442695
        %v1260 = vpow.pop %v1259
        %v1261 = vmul.f32 %v1250, 1.442695
        %v1262 = vpow.pop %v1261
        %v1263 = vmul.f32 %v1251, 1.442695
        %v1264 = vpow.pop %v1263
        %v1265 = vmul.f32 %v1252, 1.442695
        %v1266 = vpow.pop %v1265
        %v1267 = vmul.f32 %v1253, 1.442695
        %v1268 = vpow.pop %v1267
        %v1269 = vmul.f32 %v1254, 1.442695
        %v1270 = vpow.pop %v1269
        %v1271 = vadd.f32 %v1256, 1.0
        %v1272 = vadd.f32 %v1258, 1.0
        %v1273 = vadd.f32 %v1260, 1.0
        %v1274 = vadd.f32 %v1262, 1.0
        %v1275 = vadd.f32 %v1264, 1.0
        %v1276 = vadd.f32 %v1266, 1.0
        %v1277 = vadd.f32 %v1268, 1.0
        %v1278 = vadd.f32 %v1270, 1.0
        %v1279 = vrcp.pop %v1271
        %v1280 = vrcp.pop %v1272
        %v1281 = vrcp.pop %v1273
        %v1282 = vrcp.pop %v1274
        %v1283 = vrcp.pop %v1275
        %v1284 = vrcp.pop %v1276
        %v1285 = vrcp.pop %v1277
        %v1286 = vrcp.pop %v1278
        %v1287 = vmul.f32 %v1239, %v1279
        %v1288 = vmul.f32 %v1240, %v1280
        %v1289 = vmul.f32 %v1241, %v1281
        %v1290 = vmul.f32 %v1242, %v1282
        %v1291 = vmul.f32 %v1243, %v1283
        %v1292 = vmul.f32 %v1244, %v1284
        %v1293 = vmul.f32 %v1245, %v1285
        %v1294 = vmul.f32 %v1246, %v1286
        %s1295 = scalar_lea.vmem %s229, 64 [#allocation2]
        %1296 = vst [vmem:[%s1295] sm:$0xff] %v1287
        %1297 = vst [vmem:[%s1295 + $0x8] sm:$0xff] %v1288
        %1298 = vst [vmem:[%s1295 + $0x10] sm:$0xff] %v1289
        %1299 = vst [vmem:[%s1295 + $0x18] sm:$0xff] %v1290
        %1300 = vst [vmem:[%s1295 + $0x20] sm:$0xff] %v1291
        %1301 = vst [vmem:[%s1295 + $0x28] sm:$0xff] %v1292
        %1302 = vst [vmem:[%s1295 + $0x30] sm:$0xff] %v1293
        %1303 = vst [vmem:[%s1295 + $0x38] sm:$0xff] %v1294
        %s1304 = smul.u32 2, %s20
        %p1305 = scmp.lt.s32.totalorder %s1304, 3
        %s1306 = scalar_select %p1305, %s1304, 3
        %s1307 = smul.addr %s1306, 8
        %s1308 = smul.addr %s1307, 4
        %s1309 = scalar_lea.vmem %s4, %s1308
        %s1310 = sand.u32 %s143, 1
        %s1311 = scalar_lea.sflag [#allocation3], %s1310
        %s1312 = sand.u32 %s143, 1
        %s1313 = smul.addr %s1312, 128
        %s1314 = scalar_lea.vmem [#allocation2], %s1313
        // Predicated region
        $region37: #{_lambda_.2} parent=35 // pred_check
          %p1315 = pneg %p127
        $region38: #{_lambda_.2} parent=35 // pred_check_branch
          %1317 = sbr.rel (%p1315) target = $region40
        $region39: #{_lambda_.2} parent=35 // pred_region
          %s1318 = smul.u32 2, %s20
        $region40: #{_lambda_.2} parent=35 // pred_fallthru
          _
        // Predicated region
        $region41: #{_lambda_.2} parent=35 // pred_check
          %p1319 = pneg %p153
        $region42: #{_lambda_.2} parent=35 // pred_check_branch
          %1321 = sbr.rel (%p1319) target = $region44
        $region43: #{_lambda_.2} parent=35 // pred_region
          %s1322 = smul.u32 2, %s20
          %s1324 = ssub.s32 2048, 2048
          %1325 = vsyncadd %s1311, %s1324
          %s1326 = smul.addr %s1322, 8
          %s1327 = smul.addr %s1326, 128
          %s1328 = scalar_lea.hbm %s5, %s1327
          %s1329 = sshll.u32 %s1314, 4
          %s1330 = int_to_ptr.vmem [resolvable:$true] %s1329
          %1335 = dma.vmem_to_hbm [thread:$0]  %s1330, 2048, %s1328, %s1311, 256, 256, 16
        $region44: #{_lambda_.2} parent=35 // pred_fallthru
          _
      $region36: #{_lambda_.2} parent=5 // pred_fallthru
        _
      %p1336 = scmp.le.s32.totalorder 2, %s15
      // Predicated region
      $region45: #{_lambda_.2} parent=5 // pred_check
        %p1337 = pneg %p1336
      $region46: #{_lambda_.2} parent=5 // pred_check_branch
        %1339 = sbr.rel (%p1337) target = $region48
      $region47: #{_lambda_.2} parent=5 // pred_region
        %s1340 = ssub.s32 %s15, 2
        // Predicated region
        $region49: #{_lambda_.2} parent=47 // pred_check
          %p1341 = pneg %p133
        $region50: #{_lambda_.2} parent=47 // pred_check_branch
          %1343 = sbr.rel (%p1341) target = $region52
        $region51: #{_lambda_.2} parent=47 // pred_region
          %s1344 = smul.u32 2, %s21
          %p1345 = scmp.lt.s32.totalorder %s1344, 3
          %s1346 = scalar_select %p1345, %s1344, 3
          %s1347 = smul.addr %s1346, 8
          %s1348 = smul.addr %s1347, 4
          %s1349 = scalar_lea.vmem %s4, %s1348
        $region52: #{_lambda_.2} parent=47 // pred_fallthru
          _
        // Predicated region
        $region53: #{_lambda_.2} parent=47 // pred_check
          %p1350 = pneg %p159
        $region54: #{_lambda_.2} parent=47 // pred_check_branch
          %1352 = sbr.rel (%p1350) target = $region56
        $region55: #{_lambda_.2} parent=47 // pred_region
          %s1353 = sand.u32 %s144, 1
          %s1354 = scalar_lea.sflag [#allocation3], %s1353
          %s1355 = sand.u32 %s144, 1
          %s1356 = smul.addr %s1355, 128
          %s1357 = scalar_lea.vmem [#allocation2], %s1356
          %1358 = dma.done %s1354, 2048
        $region56: #{_lambda_.2} parent=47 // pred_fallthru
          _
      $region48: #{_lambda_.2} parent=5 // pred_fallthru
        _
    $region6: #{_lambda_.2} parent=1 // loop_footer
      %s19 = sadd.s32 1, %s15
    $region7: #{_lambda_.2} parent=1 // loop_footer_branch
      %14 = sbr.rel target = $region3
    $region8: #{_lambda_.2} parent=1 // loop_exit
      _
    %1359 = vsyncpa [#allocation3], 1
    %s1360 = scalar_lea.sflag [#allocation3], 1
    %1361 = vsyncpa %s1360, 1

// kernel: _lambda_.3
$region0: #{_lambda_.3}
  #allocation0 [shape = 'u32[]', space=smem, size = 0x4, offset = 0x4, fixed_abs, tag = 'smem constant byte address 0x4 - core index']
  #allocation1 [shape = 'u32[144,128]{1,0:T(1,128)}', space=vmem, size = 0x12000, scoped, tag = 'internal scratch']
  %s0 = inlined_call_operand.vmem [shape: bf16[8,32,256], index: 0, kind: input, shape index: {}]
  %s1 = inlined_call_operand.vmem [shape: bf16[128,128], index: 1, kind: input, shape index: {}]
  %s2 = inlined_call_operand.vmem [shape: f32[128,1], index: 2, kind: input, shape index: {}]
  %s3 = inlined_call_operand.vmem [shape: f32[128,1], index: 3, kind: input, shape index: {}]
  %s4 = inlined_call_operand.vmem [shape: bf16[16,128], index: 4, kind: input, shape index: {}]
  %s5 = inlined_call_operand.vmem [shape: f32[8,16,256], index: 5, kind: output, shape index: {}]
  %s6 = sld [smem:[#allocation0]]
  $region53: #{_lambda_.3} parent=0
    _
  %s8 = ssub.s32 1, %s6
  %s9 = scalar_select 0, %s8, %s6
  loop: start=0, step=1, limit=4
  $region2: #{_lambda_.3} parent=0 // loop_pre_header
    _
  $region3: #{_lambda_.3} parent=0 // loop_header
    %s11 = sphi 0, %s15
    %p12 = scmp.ge.s32.totalorder %s11, 4
    %s21 = sphi 0, %s23
    %s24 = sphi 0, %s21
    %s25 = sphi 0, %s24
    %s41 = sphi 0, %s25
    %s45 = sphi 0, %s45
    %s47 = sphi 0, %s45
    %s48 = sphi 0, %s47
    %s62 = sphi 0, %s48
    %s66 = sphi 0, %s66
    %s68 = sphi 0, %s66
    %s69 = sphi 0, %s68
    %s83 = sphi 0, %s69
    %s87 = sphi 0, %s87
    %s89 = sphi 0, %s87
    %s90 = sphi 0, %s89
    %s104 = sphi 0, %s90
    %s108 = sphi 0, %s108
    %s110 = sphi 0, %s108
    %s111 = sphi 0, %s110
    %s125 = sphi 0, %s111
    %s131 = sphi 0, %s133
    %s134 = sphi 0, %s131
    %s135 = sphi 0, %s134
    %s151 = sphi 0, %s135
  $region4: #{_lambda_.3} parent=0 // loop_header_branch
    %14 = sbr.rel (%p12) target = $region8
  $region5: #{_lambda_.3} parent=0 // loop_body
    %s16 = ssub.s32 %s11, 1
    %s17 = ssub.s32 %s11, 2
    %s18 = sadd.s32 %s11, 1
    %s19 = ssub.s32 %s11, %s18
    %p20 = scmp.eq.s32.totalorder %s19, 0
    %s22 = sadd.s32 %s21, 1
    %s23 = scalar_select %p20, %s21, %s22
    %p26 = pneg %p20
    %p27 = scmp.eq.s32.totalorder %s11, 1
    %p28 = por %p26, %p27
    %p29 = scmp.ne.s32.totalorder %s21, %s24
    %p30 = scmp.eq.s32.totalorder %s11, 0
    %p31 = por %p29, %p30
    %p32 = scmp.ne.s32.totalorder %s21, %s24
    %p33 = scmp.eq.s32.totalorder %s16, 1
    %p34 = por %p32, %p33
    %p35 = scmp.ne.s32.totalorder %s24, %s25
    %p36 = scmp.eq.s32.totalorder %s16, 0
    %p37 = por %p35, %p36
    %p38 = scmp.ne.s32.totalorder %s24, %s25
    %p39 = scmp.eq.s32.totalorder %s17, 1
    %p40 = por %p38, %p39
    %p42 = scmp.ne.s32.totalorder %s25, %s41
    %p43 = scmp.eq.s32.totalorder %s17, 0
    %p44 = por %p42, %p43
    %s46 = sadd.s32 %s45, 1
    %p49 = scmp.eq.s32.totalorder %s11, 1
    %p50 = scmp.ne.s32.totalorder %s45, %s47
    %p51 = scmp.eq.s32.totalorder %s11, 0
    %p52 = por %p50, %p51
    %p53 = scmp.ne.s32.totalorder %s45, %s47
    %p54 = scmp.eq.s32.totalorder %s16, 1
    %p55 = por %p53, %p54
    %p56 = scmp.ne.s32.totalorder %s47, %s48
    %p57 = scmp.eq.s32.totalorder %s16, 0
    %p58 = por %p56, %p57
    %p59 = scmp.ne.s32.totalorder %s47, %s48
    %p60 = scmp.eq.s32.totalorder %s17, 1
    %p61 = por %p59, %p60
    %p63 = scmp.ne.s32.totalorder %s48, %s62
    %p64 = scmp.eq.s32.totalorder %s17, 0
    %p65 = por %p63, %p64
    %s67 = sadd.s32 %s66, 1
    %p70 = scmp.eq.s32.totalorder %s11, 1
    %p71 = scmp.ne.s32.totalorder %s66, %s68
    %p72 = scmp.eq.s32.totalorder %s11, 0
    %p73 = por %p71, %p72
    %p74 = scmp.ne.s32.totalorder %s66, %s68
    %p75 = scmp.eq.s32.totalorder %s16, 1
    %p76 = por %p74, %p75
    %p77 = scmp.ne.s32.totalorder %s68, %s69
    %p78 = scmp.eq.s32.totalorder %s16, 0
    %p79 = por %p77, %p78
    %p80 = scmp.ne.s32.totalorder %s68, %s69
    %p81 = scmp.eq.s32.totalorder %s17, 1
    %p82 = por %p80, %p81
    %p84 = scmp.ne.s32.totalorder %s69, %s83
    %p85 = scmp.eq.s32.totalorder %s17, 0
    %p86 = por %p84, %p85
    %s88 = sadd.s32 %s87, 1
    %p91 = scmp.eq.s32.totalorder %s11, 1
    %p92 = scmp.ne.s32.totalorder %s87, %s89
    %p93 = scmp.eq.s32.totalorder %s11, 0
    %p94 = por %p92, %p93
    %p95 = scmp.ne.s32.totalorder %s87, %s89
    %p96 = scmp.eq.s32.totalorder %s16, 1
    %p97 = por %p95, %p96
    %p98 = scmp.ne.s32.totalorder %s89, %s90
    %p99 = scmp.eq.s32.totalorder %s16, 0
    %p100 = por %p98, %p99
    %p101 = scmp.ne.s32.totalorder %s89, %s90
    %p102 = scmp.eq.s32.totalorder %s17, 1
    %p103 = por %p101, %p102
    %p105 = scmp.ne.s32.totalorder %s90, %s104
    %p106 = scmp.eq.s32.totalorder %s17, 0
    %p107 = por %p105, %p106
    %s109 = sadd.s32 %s108, 1
    %p112 = scmp.eq.s32.totalorder %s11, 1
    %p113 = scmp.ne.s32.totalorder %s108, %s110
    %p114 = scmp.eq.s32.totalorder %s11, 0
    %p115 = por %p113, %p114
    %p116 = scmp.ne.s32.totalorder %s108, %s110
    %p117 = scmp.eq.s32.totalorder %s16, 1
    %p118 = por %p116, %p117
    %p119 = scmp.ne.s32.totalorder %s110, %s111
    %p120 = scmp.eq.s32.totalorder %s16, 0
    %p121 = por %p119, %p120
    %p122 = scmp.ne.s32.totalorder %s110, %s111
    %p123 = scmp.eq.s32.totalorder %s17, 1
    %p124 = por %p122, %p123
    %p126 = scmp.ne.s32.totalorder %s111, %s125
    %p127 = scmp.eq.s32.totalorder %s17, 0
    %p128 = por %p126, %p127
    %s129 = ssub.s32 %s11, %s18
    %p130 = scmp.eq.s32.totalorder %s129, 0
    %s132 = sadd.s32 %s131, 1
    %s133 = scalar_select %p130, %s131, %s132
    %p136 = pneg %p130
    %p137 = scmp.eq.s32.totalorder %s11, 1
    %p138 = por %p136, %p137
    %p139 = scmp.ne.s32.totalorder %s131, %s134
    %p140 = scmp.eq.s32.totalorder %s11, 0
    %p141 = por %p139, %p140
    %p142 = scmp.ne.s32.totalorder %s131, %s134
    %p143 = scmp.eq.s32.totalorder %s16, 1
    %p144 = por %p142, %p143
    %p145 = scmp.ne.s32.totalorder %s134, %s135
    %p146 = scmp.eq.s32.totalorder %s16, 0
    %p147 = por %p145, %p146
    %p148 = scmp.ne.s32.totalorder %s134, %s135
    %p149 = scmp.eq.s32.totalorder %s17, 1
    %p150 = por %p148, %p149
    %p152 = scmp.ne.s32.totalorder %s135, %s151
    %p153 = scmp.eq.s32.totalorder %s17, 0
    %p154 = por %p152, %p153
    %p155 = scmp.le.s32.totalorder 1, %s11
    %p156 = scmp.lt.s32.totalorder %s11, 3
    %p157 = pnand %p155, %p156
    %p158 = pneg %p157
    // Predicated region
    $region9: #{_lambda_.3} parent=5 // pred_check
      _
    $region10: #{_lambda_.3} parent=5 // pred_check_branch
      %160 = sbr.rel (%p157) target = $region12
    $region11: #{_lambda_.3} parent=5 // pred_region
      %s161 = ssub.s32 %s11, 1
      // Predicated region
      $region13: #{_lambda_.3} parent=11 // pred_check
        %p162 = pneg %p58
      $region14: #{_lambda_.3} parent=11 // pred_check_branch
        %164 = sbr.rel (%p162) target = $region16
      $region15: #{_lambda_.3} parent=11 // pred_region
        _
      $region16: #{_lambda_.3} parent=11 // pred_fallthru
        _
      // Predicated region
      $region17: #{_lambda_.3} parent=11 // pred_check
        %p165 = pneg %p79
      $region18: #{_lambda_.3} parent=11 // pred_check_branch
        %167 = sbr.rel (%p165) target = $region20
      $region19: #{_lambda_.3} parent=11 // pred_region
        _
      $region20: #{_lambda_.3} parent=11 // pred_fallthru
        _
      // Predicated region
      $region21: #{_lambda_.3} parent=11 // pred_check
        %p168 = pneg %p100
      $region22: #{_lambda_.3} parent=11 // pred_check_branch
        %170 = sbr.rel (%p168) target = $region24
      $region23: #{_lambda_.3} parent=11 // pred_region
        _
      $region24: #{_lambda_.3} parent=11 // pred_fallthru
        _
      // Predicated region
      $region25: #{_lambda_.3} parent=11 // pred_check
        %p171 = pneg %p121
      $region26: #{_lambda_.3} parent=11 // pred_check_branch
        %173 = sbr.rel (%p171) target = $region28
      $region27: #{_lambda_.3} parent=11 // pred_region
        _
      $region28: #{_lambda_.3} parent=11 // pred_fallthru
        _
    $region12: #{_lambda_.3} parent=5 // pred_fallthru
      _
    %p174 = scmp.lt.s32.totalorder %s11, 2
    // Predicated region
    $region29: #{_lambda_.3} parent=5 // pred_check
      %p175 = pneg %p174
    $region30: #{_lambda_.3} parent=5 // pred_check_branch
      %177 = sbr.rel (%p175) target = $region32
    $region31: #{_lambda_.3} parent=5 // pred_region
      // Predicated region
      $region33: #{_lambda_.3} parent=31 // pred_check
        %p178 = pneg %p31
      $region34: #{_lambda_.3} parent=31 // pred_check_branch
        %180 = sbr.rel (%p178) target = $region36
      $region35: #{_lambda_.3} parent=31 // pred_region
        %s181 = smul.u32 4, %s11
        %p182 = scmp.lt.s32.totalorder %s181, 7
        %s183 = scalar_select %p182, %s181, 7
        %s184 = smul.addr %s183, 8
        %s185 = smul.addr %s184, 4
        %s186 = scalar_lea.vmem %s0, %s185
        %s187 = smul.u32 4, %s11
      $region36: #{_lambda_.3} parent=31 // pred_fallthru
        _
    $region32: #{_lambda_.3} parent=5 // pred_fallthru
      _
    %p188 = scmp.le.s32.totalorder 1, %s11
    %p189 = scmp.lt.s32.totalorder %s11, 3
    %p190 = pnand %p188, %p189
    %p191 = pneg %p190
    // Predicated region
    $region37: #{_lambda_.3} parent=5 // pred_check
      _
    $region38: #{_lambda_.3} parent=5 // pred_check_branch
      %193 = sbr.rel (%p190) target = $region40
    $region39: #{_lambda_.3} parent=5 // pred_region
      %s194 = ssub.s32 %s11, 1
      %s195 = smul.u32 4, %s16
      %p196 = scmp.lt.s32.totalorder %s195, 7
      %s197 = scalar_select %p196, %s195, 7
      %s198 = smul.addr %s197, 8
      %s199 = smul.addr %s198, 4
      %s200 = scalar_lea.vmem %s0, %s199
      %p201 = pneg %p37
      %p202 = pneg %p34
      %p203 = pneg %p58
      %p204 = pneg %p55
      %p205 = pneg %p79
      %p206 = pneg %p76
      %p207 = pneg %p100
      %p208 = pneg %p97
      %p209 = pneg %p121
      %p210 = pneg %p118
      %p211 = pneg %p147
      %p212 = pneg %p144
      %s213 = smul.u32 4, %s16
      %p214 = scmp.lt.s32.totalorder %s213, 7
      %s215 = scalar_select %p214, %s213, 7
      %s216 = smul.addr %s215, 4
      %s217 = smul.addr %s216, 8
      %s218 = scalar_lea.vmem %s5, %s217
      %s219 = smul.u32 4, %s16
      %p220 = scmp.lt.s32.totalorder %s219, 7
      %s221 = scalar_select %p220, %s219, 7
      %s222 = smul.addr %s221, 8
      %s223 = smul.addr %s222, 4
      %s224 = scalar_lea.vmem %s0, %s223
      %s225 = smul.u32 4, %s16
      %s226 = smul.u32 4, %s16
      %p227 = scmp.lt.s32.totalorder %s226, 7
      %s228 = scalar_select %p227, %s226, 7
      %s229 = smul.addr %s228, 4
      %s230 = smul.addr %s229, 8
      %s231 = scalar_lea.vmem %s5, %s230
      %s232 = smul.u32 4, %s16
      %v234 = vlaneseq
      %v235 = vand.u32 %v234, 127
      %v236 = vadd.s32 %v235, 128
      %vm237 = vcmp.lt.s32.totalorder %v235, 0
      %v238 = vsub.s32 0, %v235
      %v239 = vsel %vm237, %v238, %v235
      %v240 = vshrl.u32 %v239, 4
      %v241 = vand.u32 %v239, 15
      %v242 = vsub.s32 0, %v241
      %v243 = vsel %vm237, %v242, %v241
      %vm244 = vcmp.lt.s32.totalorder %v236, 0
      %v245 = vsub.s32 0, %v236
      %v246 = vsel %vm244, %v245, %v236
      %v247 = vshrl.u32 %v246, 4
      %v248 = vand.u32 %v246, 15
      %v249 = vsub.s32 0, %v248
      %v250 = vsel %vm244, %v249, %v248
      %vm251 = vcmp.ne.s32.totalorder %v243, 0
      %vm252 = vcmp.ne.s32.totalorder %v250, 0
      %vm253 = vcmp.lt.s32.totalorder %v243, 0
      %vm254 = vcmp.lt.s32.totalorder %v250, 0
      %vm255 = vmand %vm253, %vm251
      %vm256 = vmand %vm254, %vm252
      %v257 = vadd.s32 %v243, 16
      %v258 = vadd.s32 %v250, 16
      %v259 = vsel %vm255, %v257, %v243
      %v260 = vsel %vm256, %v258, %v250
      %vm261 = vcmp.ne.s32.totalorder %v259, 15
      %vm262 = vcmp.ne.s32.totalorder %v260, 15
      %vm263 = vcmp.lt.s32.totalorder %v235, 240
      %vm264 = vcmp.lt.s32.totalorder %v236, 240
      %v265 = vld [vmem:[%s1] sm:$0xf]
      %v266 = vld [vmem:[%s1 + $0x4] sm:$0xf]
      %v267 = vld [vmem:[%s1 + $0x8] sm:$0xf]
      %v268 = vld [vmem:[%s1 + $0xc] sm:$0xf]
      %v269 = vld [vmem:[%s1 + $0x10] sm:$0xf]
      %v270 = vld [vmem:[%s1 + $0x14] sm:$0xf]
      %v271 = vld [vmem:[%s1 + $0x18] sm:$0xf]
      %v272 = vld [vmem:[%s1 + $0x1c] sm:$0xf]
      %v273 = vld [vmem:[%s1 + $0x20] sm:$0xf]
      %v274 = vld [vmem:[%s1 + $0x24] sm:$0xf]
      %v275 = vld [vmem:[%s1 + $0x28] sm:$0xf]
      %v276 = vld [vmem:[%s1 + $0x2c] sm:$0xf]
      %v277 = vld [vmem:[%s1 + $0x30] sm:$0xf]
      %v278 = vld [vmem:[%s1 + $0x34] sm:$0xf]
      %v279 = vld [vmem:[%s1 + $0x38] sm:$0xf]
      %v280 = vld [vmem:[%s1 + $0x3c] sm:$0xf]
      %v281 = vld [vmem:[%s4] sm:$0xf]
      %v282 = vld [vmem:[%s4 + $0x4] sm:$0xf]
      %v283 = vld [vmem:[%s2] sm:$0xff]
      %v284 = vld [vmem:[%s2 + $0x8] sm:$0xff]
      %v285 = vld [vmem:[%s2 + $0x10] sm:$0xff]
      %v286 = vld [vmem:[%s2 + $0x18] sm:$0xff]
      %v287 = vld [vmem:[%s2 + $0x20] sm:$0xff]
      %v288 = vld [vmem:[%s2 + $0x28] sm:$0xff]
      %v289 = vld [vmem:[%s2 + $0x30] sm:$0xff]
      %v290 = vld [vmem:[%s2 + $0x38] sm:$0xff]
      %v291 = vld [vmem:[%s2 + $0x40] sm:$0xff]
      %v292 = vld [vmem:[%s2 + $0x48] sm:$0xff]
      %v293 = vld [vmem:[%s2 + $0x50] sm:$0xff]
      %v294 = vld [vmem:[%s2 + $0x58] sm:$0xff]
      %v295 = vld [vmem:[%s2 + $0x60] sm:$0xff]
      %v296 = vld [vmem:[%s2 + $0x68] sm:$0xff]
      %v297 = vld [vmem:[%s2 + $0x70] sm:$0xff]
      %v298 = vld [vmem:[%s2 + $0x78] sm:$0xff]
      %v299 = vld [vmem:[%s3] sm:$0xff]
      %v300 = vld [vmem:[%s3 + $0x8] sm:$0xff]
      %v301 = vld [vmem:[%s3 + $0x10] sm:$0xff]
      %v302 = vld [vmem:[%s3 + $0x18] sm:$0xff]
      %v303 = vld [vmem:[%s3 + $0x20] sm:$0xff]
      %v304 = vld [vmem:[%s3 + $0x28] sm:$0xff]
      %v305 = vld [vmem:[%s3 + $0x30] sm:$0xff]
      %v306 = vld [vmem:[%s3 + $0x38] sm:$0xff]
      %v307 = vld [vmem:[%s3 + $0x40] sm:$0xff]
      %v308 = vld [vmem:[%s3 + $0x48] sm:$0xff]
      %v309 = vld [vmem:[%s3 + $0x50] sm:$0xff]
      %v310 = vld [vmem:[%s3 + $0x58] sm:$0xff]
      %v311 = vld [vmem:[%s3 + $0x60] sm:$0xff]
      %v312 = vld [vmem:[%s3 + $0x68] sm:$0xff]
      %v313 = vld [vmem:[%s3 + $0x70] sm:$0xff]
      %v314 = vld [vmem:[%s3 + $0x78] sm:$0xff]
      %v315 = vld [vmem:[%s224] sm:$0xff]
      %v316 = vld [vmem:[%s224 + $0x8] sm:$0xff]
      %v317 = vld [vmem:[%s224 + $0x10] sm:$0xff]
      %v318 = vld [vmem:[%s224 + $0x18] sm:$0xff]
      %v319 = vunpack.c.l.bf16 %v315
      %v320 = vunpack.c.h.bf16 %v315
      %v321 = vunpack.c.l.bf16 %v316
      %v322 = vunpack.c.h.bf16 %v316
      %v323 = vunpack.c.l.bf16 %v317
      %v324 = vunpack.c.h.bf16 %v317
      %v325 = vunpack.c.l.bf16 %v318
      %v326 = vunpack.c.h.bf16 %v318
      %327 = vrot.lane.b32.xlu0 %v319, 127
      %v328 = vpop.permute.xlu0 %327
      %329 = vrot.lane.b32.xlu0 %v321, 127
      %v330 = vpop.permute.xlu0 %329
      %331 = vrot.lane.b32.xlu0 %v323, 127
      %v332 = vpop.permute.xlu0 %331
      %333 = vrot.lane.b32.xlu0 %v325, 127
      %v334 = vpop.permute.xlu0 %333
      %335 = vrot.lane.b32.xlu0 %v320, 127
      %v336 = vpop.permute.xlu0 %335
      %337 = vrot.lane.b32.xlu0 %v322, 127
      %v338 = vpop.permute.xlu0 %337
      %339 = vrot.lane.b32.xlu0 %v324, 127
      %v340 = vpop.permute.xlu0 %339
      %341 = vrot.lane.b32.xlu0 %v326, 127
      %v342 = vpop.permute.xlu0 %341
      %vm343 = vcmp.lt.s32.totalorder %v235, 127
      %v344 = vsel %vm343, %v328, %v336
      %v345 = vsel %vm343, %v330, %v338
      %v346 = vsel %vm343, %v332, %v340
      %v347 = vsel %vm343, %v334, %v342
      %v348 = vsel %vm343, %v336, %v328
      %v349 = vsel %vm343, %v338, %v330
      %v350 = vsel %vm343, %v340, %v332
      %v351 = vsel %vm343, %v342, %v334
      %v352 = vsel %vm261, %v344, 0.0
      %v353 = vsel %vm262, %v348, 0.0
      %v354 = vsel %vm261, %v345, 0.0
      %v355 = vsel %vm262, %v349, 0.0
      %v356 = vsel %vm261, %v346, 0.0
      %v357 = vsel %vm262, %v350, 0.0
      %v358 = vsel %vm261, %v347, 0.0
      %v359 = vsel %vm262, %v351, 0.0
      %360 = vrot.lane.b32.xlu0 %v319, 112
      %v361 = vpop.permute.xlu0 %360
      %362 = vrot.lane.b32.xlu0 %v321, 112
      %v363 = vpop.permute.xlu0 %362
      %364 = vrot.lane.b32.xlu0 %v323, 112
      %v365 = vpop.permute.xlu0 %364
      %366 = vrot.lane.b32.xlu0 %v325, 112
      %v367 = vpop.permute.xlu0 %366
      %368 = vrot.lane.b32.xlu0 %v320, 112
      %v369 = vpop.permute.xlu0 %368
      %370 = vrot.lane.b32.xlu0 %v322, 112
      %v371 = vpop.permute.xlu0 %370
      %372 = vrot.lane.b32.xlu0 %v324, 112
      %v373 = vpop.permute.xlu0 %372
      %374 = vrot.lane.b32.xlu0 %v326, 112
      %v375 = vpop.permute.xlu0 %374
      %vm376 = vcmp.lt.s32.totalorder %v235, 112
      %v377 = vsel %vm376, %v361, %v369
      %v378 = vsel %vm376, %v363, %v371
      %v379 = vsel %vm376, %v365, %v373
      %v380 = vsel %vm376, %v367, %v375
      %v381 = vsel %vm376, %v369, %v361
      %v382 = vsel %vm376, %v371, %v363
      %v383 = vsel %vm376, %v373, %v365
      %v384 = vsel %vm376, %v375, %v367
      %v385 = vsel %vm263, %v377, 0.0
      %v386 = vsel %vm264, %v381, 0.0
      %v387 = vsel %vm263, %v378, 0.0
      %v388 = vsel %vm264, %v382, 0.0
      %v389 = vsel %vm263, %v379, 0.0
      %v390 = vsel %vm264, %v383, 0.0
      %v391 = vsel %vm263, %v380, 0.0
      %v392 = vsel %vm264, %v384, 0.0
      %vm393 = vmand %vm261, %vm263
      %vm394 = vmand %vm262, %vm264
      %395 = vrot.lane.b32.xlu0 %v319, 111
      %v396 = vpop.permute.xlu0 %395
      %397 = vrot.lane.b32.xlu0 %v321, 111
      %v398 = vpop.permute.xlu0 %397
      %399 = vrot.lane.b32.xlu0 %v323, 111
      %v400 = vpop.permute.xlu0 %399
      %401 = vrot.lane.b32.xlu0 %v325, 111
      %v402 = vpop.permute.xlu0 %401
      %403 = vrot.lane.b32.xlu0 %v320, 111
      %v404 = vpop.permute.xlu0 %403
      %405 = vrot.lane.b32.xlu0 %v322, 111
      %v406 = vpop.permute.xlu0 %405
      %407 = vrot.lane.b32.xlu0 %v324, 111
      %v408 = vpop.permute.xlu0 %407
      %409 = vrot.lane.b32.xlu0 %v326, 111
      %v410 = vpop.permute.xlu0 %409
      %vm411 = vcmp.lt.s32.totalorder %v235, 111
      %v412 = vsel %vm411, %v396, %v404
      %v413 = vsel %vm411, %v398, %v406
      %v414 = vsel %vm411, %v400, %v408
      %v415 = vsel %vm411, %v402, %v410
      %v416 = vsel %vm411, %v404, %v396
      %v417 = vsel %vm411, %v406, %v398
      %v418 = vsel %vm411, %v408, %v400
      %v419 = vsel %vm411, %v410, %v402
      %v420 = vsel %vm393, %v412, 0.0
      %v421 = vsel %vm394, %v416, 0.0
      %v422 = vsel %vm393, %v413, 0.0
      %v423 = vsel %vm394, %v417, 0.0
      %v424 = vsel %vm393, %v414, 0.0
      %v425 = vsel %vm394, %v418, 0.0
      %v426 = vsel %vm393, %v415, 0.0
      %v427 = vsel %vm394, %v419, 0.0
      %v428 = vpack.c.bf16 %v321, %v319
      %v429 = vpack.c.bf16 %v322, %v320
      %v430 = vpack.c.bf16 %v325, %v323
      %v431 = vpack.c.bf16 %v326, %v324
      %v432 = vpack.c.bf16 %v354, %v352
      %v433 = vpack.c.bf16 %v355, %v353
      %v434 = vpack.c.bf16 %v358, %v356
      %v435 = vpack.c.bf16 %v359, %v357
      %v436 = vpack.c.bf16 %v387, %v385
      %v437 = vpack.c.bf16 %v388, %v386
      %v438 = vpack.c.bf16 %v391, %v389
      %v439 = vpack.c.bf16 %v392, %v390
      %v440 = vpack.c.bf16 %v422, %v420
      %v441 = vpack.c.bf16 %v423, %v421
      %v442 = vpack.c.bf16 %v426, %v424
      %v443 = vpack.c.bf16 %v427, %v425
      %v460 = vunpack.c.l.b16 %v265
      %v461 = vunpack.c.l.b16 %v266
      %v462 = vunpack.c.l.b16 %v267
      %v463 = vunpack.c.l.b16 %v268
      %v464 = vunpack.c.l.b16 %v269
      %v465 = vunpack.c.l.b16 %v270
      %v466 = vunpack.c.l.b16 %v271
      %v467 = vunpack.c.l.b16 %v272
      %v468 = vunpack.c.l.b16 %v273
      %v469 = vunpack.c.l.b16 %v274
      %v470 = vunpack.c.l.b16 %v275
      %v471 = vunpack.c.l.b16 %v276
      %v472 = vunpack.c.l.b16 %v277
      %v473 = vunpack.c.l.b16 %v278
      %v474 = vunpack.c.l.b16 %v279
      %v475 = vunpack.c.l.b16 %v280
      %v476 = vpack.c.b16 %v461, %v460
      %v477 = vpack.c.b16 %v463, %v462
      %v478 = vpack.c.b16 %v465, %v464
      %v479 = vpack.c.b16 %v467, %v466
      %v480 = vpack.c.b16 %v469, %v468
      %v481 = vpack.c.b16 %v471, %v470
      %v482 = vpack.c.b16 %v473, %v472
      %v483 = vpack.c.b16 %v475, %v474
      %492 = vmatprep.subr.bf16.mxu0 %v429
      %493 = vmatpush1.bf16.msra.mxu0 %v428
      %494 = vmatprep.subr.bf16.mxu0 %v431
      %495 = vmatpush1.bf16.msra.mxu0 %v430
      %496 = vmatprep.subr.bf16.mxu0 %v433
      %497 = vmatpush1.bf16.msra.mxu0 %v432
      %498 = vmatprep.subr.bf16.mxu0 %v435
      %499 = vmatpush1.bf16.msra.mxu0 %v434
      %500 = vmatprep.subr.bf16.mxu0 %v437
      %501 = vmatpush1.bf16.msra.mxu0 %v436
      %502 = vmatprep.subr.bf16.mxu0 %v439
      %503 = vmatpush1.bf16.msra.mxu0 %v438
      %504 = vmatprep.subr.bf16.mxu0 %v441
      %505 = vmatpush1.bf16.msra.mxu0 %v440
      %506 = vmatprep.subr.bf16.mxu0 %v443
      %507 = vmatpush1.bf16.msra.mxu0 %v442
      %508 = vmatprep.subr.bf16.mxu0 0
      %509 = vmatpush1.bf16.msra.mxu0 0
      %510 = vmatprep.subr.bf16.mxu0 0
      %511 = vmatpush1.bf16.msra.mxu0 0
      %512 = vmatprep.subr.bf16.mxu0 0
      %513 = vmatpush1.bf16.msra.mxu0 0
      %514 = vmatprep.subr.bf16.mxu0 0
      %515 = vmatpush1.bf16.msra.mxu0 0
      %516 = vmatprep.subr.bf16.mxu0 0
      %517 = vmatpush1.bf16.msra.mxu0 0
      %518 = vmatprep.subr.bf16.mxu0 0
      %519 = vmatpush1.bf16.msra.mxu0 0
      %520 = vmatprep.subr.bf16.mxu0 0
      %521 = vmatpush1.bf16.msra.mxu0 0
      %522 = vmatprep.subr.bf16.mxu0 0
      %523 = vmatpush1.bf16.msra.mxu0 0
      %524 = vmatprep.mubr.bf16.mxu0 0
      %525 = vmatmul.mubr.bf16.gmra.mrb[0].mxu0 %v476
      %v526 = vpop.f32.mrb[0].mxu0
      %v527 = vadd.f32 0.0, %v526
      %v528 = vpop.f32.mrb[0].mxu0
      %v529 = vadd.f32 0.0, %v528
      %v530 = vpop.f32.mrb[0].mxu0
      %v531 = vadd.f32 0.0, %v530
      %v532 = vpop.f32.mrb[0].mxu0
      %v533 = vadd.f32 0.0, %v532
      %534 = vmatprep.mubr.bf16.mxu0 0
      %535 = vmatmul.mubr.bf16.gmra.mrb[0].mxu0 %v477
      %v536 = vpop.f32.mrb[0].mxu0
      %v537 = vadd.f32 0.0, %v536
      %v538 = vpop.f32.mrb[0].mxu0
      %v539 = vadd.f32 0.0, %v538
      %v540 = vpop.f32.mrb[0].mxu0
      %v541 = vadd.f32 0.0, %v540
      %v542 = vpop.f32.mrb[0].mxu0
      %v543 = vadd.f32 0.0, %v542
      %544 = vmatprep.mubr.bf16.mxu0 0
      %545 = vmatmul.mubr.bf16.gmra.mrb[0].mxu0 %v478
      %v546 = vpop.f32.mrb[0].mxu0
      %v547 = vadd.f32 0.0, %v546
      %v548 = vpop.f32.mrb[0].mxu0
      %v549 = vadd.f32 0.0, %v548
      %v550 = vpop.f32.mrb[0].mxu0
      %v551 = vadd.f32 0.0, %v550
      %v552 = vpop.f32.mrb[0].mxu0
      %v553 = vadd.f32 0.0, %v552
      %554 = vmatprep.mubr.bf16.mxu0 0
      %555 = vmatmul.mubr.bf16.gmra.mrb[0].mxu0 %v479
      %v556 = vpop.f32.mrb[0].mxu0
      %v557 = vadd.f32 0.0, %v556
      %v558 = vpop.f32.mrb[0].mxu0
      %v559 = vadd.f32 0.0, %v558
      %v560 = vpop.f32.mrb[0].mxu0
      %v561 = vadd.f32 0.0, %v560
      %v562 = vpop.f32.mrb[0].mxu0
      %v563 = vadd.f32 0.0, %v562
      %564 = vmatprep.mubr.bf16.mxu0 0
      %565 = vmatmul.mubr.bf16.gmra.mrb[0].mxu0 %v480
      %v566 = vpop.f32.mrb[0].mxu0
      %v567 = vadd.f32 0.0, %v566
      %v568 = vpop.f32.mrb[0].mxu0
      %v569 = vadd.f32 0.0, %v568
      %v570 = vpop.f32.mrb[0].mxu0
      %v571 = vadd.f32 0.0, %v570
      %v572 = vpop.f32.mrb[0].mxu0
      %v573 = vadd.f32 0.0, %v572
      %574 = vmatprep.mubr.bf16.mxu0 0
      %575 = vmatmul.mubr.bf16.gmra.mrb[0].mxu0 %v481
      %v576 = vpop.f32.mrb[0].mxu0
      %v577 = vadd.f32 0.0, %v576
      %v578 = vpop.f32.mrb[0].mxu0
      %v579 = vadd.f32 0.0, %v578
      %v580 = vpop.f32.mrb[0].mxu0
      %v581 = vadd.f32 0.0, %v580
      %v582 = vpop.f32.mrb[0].mxu0
      %v583 = vadd.f32 0.0, %v582
      %584 = vmatprep.mubr.bf16.mxu0 0
      %585 = vmatmul.mubr.bf16.gmra.mrb[0].mxu0 %v482
      %v586 = vpop.f32.mrb[0].mxu0
      %v587 = vadd.f32 0.0, %v586
      %v588 = vpop.f32.mrb[0].mxu0
      %v589 = vadd.f32 0.0, %v588
      %v590 = vpop.f32.mrb[0].mxu0
      %v591 = vadd.f32 0.0, %v590
      %v592 = vpop.f32.mrb[0].mxu0
      %v593 = vadd.f32 0.0, %v592
      %594 = vmatprep.mubr.bf16.mxu0 0
      %595 = vmatmul.mubr.bf16.gmra.mrb[0].mxu0 %v483
      %v596 = vpop.f32.mrb[0].mxu0
      %v597 = vadd.f32 0.0, %v596
      %v598 = vpop.f32.mrb[0].mxu0
      %v599 = vadd.f32 0.0, %v598
      %v600 = vpop.f32.mrb[0].mxu0
      %v601 = vadd.f32 0.0, %v600
      %v602 = vpop.f32.mrb[0].mxu0
      %v603 = vadd.f32 0.0, %v602
      %604 = vdwg.mxu0
      %v605 = vadd.f32 %v527, %v529
      %v606 = vadd.f32 %v605, %v531
      %v607 = vadd.f32 %v606, %v533
      %v608 = vadd.f32 %v607, %v537
      %v609 = vadd.f32 %v608, %v539
      %v610 = vadd.f32 %v609, %v541
      %v611 = vadd.f32 %v610, %v543
      %v612 = vadd.f32 %v611, %v547
      %v613 = vadd.f32 %v612, %v549
      %v614 = vadd.f32 %v613, %v551
      %v615 = vadd.f32 %v614, %v553
      %v616 = vadd.f32 %v615, %v557
      %v617 = vadd.f32 %v616, %v559
      %v618 = vadd.f32 %v617, %v561
      %v619 = vadd.f32 %v618, %v563
      %v620 = vadd.f32 %v619, %v567
      %v621 = vadd.f32 %v620, %v569
      %v622 = vadd.f32 %v621, %v571
      %v623 = vadd.f32 %v622, %v573
      %v624 = vadd.f32 %v623, %v577
      %v625 = vadd.f32 %v624, %v579
      %v626 = vadd.f32 %v625, %v581
      %v627 = vadd.f32 %v626, %v583
      %v628 = vadd.f32 %v627, %v587
      %v629 = vadd.f32 %v628, %v589
      %v630 = vadd.f32 %v629, %v591
      %v631 = vadd.f32 %v630, %v593
      %v632 = vadd.f32 %v631, %v597
      %v633 = vadd.f32 %v632, %v599
      %v634 = vadd.f32 %v633, %v601
      %v635 = vadd.f32 %v634, %v603
      %636 = vadd.xlane.f32.xlu0 %v635
      %v637 = vpop.xlane.xlu0 %636
      %v638 = vrot.slane %v637, 4
      %v639 = vadd.f32 %v637, %v638
      %v640 = vrot.slane %v639, 2
      %v641 = vadd.f32 %v639, %v640
      %v642 = vrot.slane %v641, 1
      %v643 = vadd.f32 %v641, %v642
      %s644 = vtos %v643
      %v645 = vmul.f32 %v527, %v527
      %v646 = vmul.f32 %v529, %v529
      %v647 = vmul.f32 %v531, %v531
      %v648 = vmul.f32 %v533, %v533
      %v649 = vmul.f32 %v537, %v537
      %v650 = vmul.f32 %v539, %v539
      %v651 = vmul.f32 %v541, %v541
      %v652 = vmul.f32 %v543, %v543
      %v653 = vmul.f32 %v547, %v547
      %v654 = vmul.f32 %v549, %v549
      %v655 = vmul.f32 %v551, %v551
      %v656 = vmul.f32 %v553, %v553
      %v657 = vmul.f32 %v557, %v557
      %v658 = vmul.f32 %v559, %v559
      %v659 = vmul.f32 %v561, %v561
      %v660 = vmul.f32 %v563, %v563
      %v661 = vmul.f32 %v567, %v567
      %v662 = vmul.f32 %v569, %v569
      %v663 = vmul.f32 %v571, %v571
      %v664 = vmul.f32 %v573, %v573
      %v665 = vmul.f32 %v577, %v577
      %v666 = vmul.f32 %v579, %v579
      %v667 = vmul.f32 %v581, %v581
      %v668 = vmul.f32 %v583, %v583
      %v669 = vmul.f32 %v587, %v587
      %v670 = vmul.f32 %v589, %v589
      %v671 = vmul.f32 %v591, %v591
      %v672 = vmul.f32 %v593, %v593
      %v673 = vmul.f32 %v597, %v597
      %v674 = vmul.f32 %v599, %v599
      %v675 = vmul.f32 %v601, %v601
      %v676 = vmul.f32 %v603, %v603
      %v677 = vadd.f32 %v645, %v646
      %v678 = vadd.f32 %v677, %v647
      %v679 = vadd.f32 %v678, %v648
      %v680 = vadd.f32 %v679, %v649
      %v681 = vadd.f32 %v680, %v650
      %v682 = vadd.f32 %v681, %v651
      %v683 = vadd.f32 %v682, %v652
      %v684 = vadd.f32 %v683, %v653
      %v685 = vadd.f32 %v684, %v654
      %v686 = vadd.f32 %v685, %v655
      %v687 = vadd.f32 %v686, %v656
      %v688 = vadd.f32 %v687, %v657
      %v689 = vadd.f32 %v688, %v658
      %v690 = vadd.f32 %v689, %v659
      %v691 = vadd.f32 %v690, %v660
      %v692 = vadd.f32 %v691, %v661
      %v693 = vadd.f32 %v692, %v662
      %v694 = vadd.f32 %v693, %v663
      %v695 = vadd.f32 %v694, %v664
      %v696 = vadd.f32 %v695, %v665
      %v697 = vadd.f32 %v696, %v666
      %v698 = vadd.f32 %v697, %v667
      %v699 = vadd.f32 %v698, %v668
      %v700 = vadd.f32 %v699, %v669
      %v701 = vadd.f32 %v700, %v670
      %v702 = vadd.f32 %v701, %v671
      %v703 = vadd.f32 %v702, %v672
      %v704 = vadd.f32 %v703, %v673
      %v705 = vadd.f32 %v704, %v674
      %v706 = vadd.f32 %v705, %v675
      %v707 = vadd.f32 %v706, %v676
      %708 = vadd.xlane.f32.xlu0 %v707
      %v709 = vpop.xlane.xlu0 %708
      %v710 = vrot.slane %v709, 4
      %v711 = vadd.f32 %v709, %v710
      %v712 = vrot.slane %v711, 2
      %v713 = vadd.f32 %v711, %v712
      %v714 = vrot.slane %v713, 1
      %v715 = vadd.f32 %v713, %v714
      %s716 = vtos %v715
      %v717 = vrcp.pop 32768.0
      %s718 = vtos %v717
      %s719 = smul.f32 %s644, %s718
      %v720 = vrcp.pop 32768.0
      %s721 = vtos %v720
      %s722 = smul.f32 %s716, %s721
      %s723 = smul.f32 %s719, %s719
      %s724 = ssub.f32 %s722, %s723
      %s725 = smax.f32 %s724, 0.0
      %v726 = vstv %s719
      %v727 = vsub.f32 %v527, %v726
      %v728 = vsub.f32 %v529, %v726
      %v729 = vsub.f32 %v531, %v726
      %v730 = vsub.f32 %v533, %v726
      %v731 = vsub.f32 %v537, %v726
      %v732 = vsub.f32 %v539, %v726
      %v733 = vsub.f32 %v541, %v726
      %v734 = vsub.f32 %v543, %v726
      %v735 = vsub.f32 %v547, %v726
      %v736 = vsub.f32 %v549, %v726
      %v737 = vsub.f32 %v551, %v726
      %v738 = vsub.f32 %v553, %v726
      %v739 = vsub.f32 %v557, %v726
      %v740 = vsub.f32 %v559, %v726
      %v741 = vsub.f32 %v561, %v726
      %v742 = vsub.f32 %v563, %v726
      %v743 = vsub.f32 %v567, %v726
      %v744 = vsub.f32 %v569, %v726
      %v745 = vsub.f32 %v571, %v726
      %v746 = vsub.f32 %v573, %v726
      %v747 = vsub.f32 %v577, %v726
      %v748 = vsub.f32 %v579, %v726
      %v749 = vsub.f32 %v581, %v726
      %v750 = vsub.f32 %v583, %v726
      %v751 = vsub.f32 %v587, %v726
      %v752 = vsub.f32 %v589, %v726
      %v753 = vsub.f32 %v591, %v726
      %v754 = vsub.f32 %v593, %v726
      %v755 = vsub.f32 %v597, %v726
      %v756 = vsub.f32 %v599, %v726
      %v757 = vsub.f32 %v601, %v726
      %v758 = vsub.f32 %v603, %v726
      %s759 = sadd.f32 %s725, 1e-05
      %v760 = vstv %s759
      %v761 = vrsqrt.pop %v760
      %s762 = vtos %v761
      %v763 = vstv %s762
      %v764 = vmul.f32 %v727, %v763
      %v765 = vmul.f32 %v728, %v763
      %v766 = vmul.f32 %v729, %v763
      %v767 = vmul.f32 %v730, %v763
      %v768 = vmul.f32 %v731, %v763
      %v769 = vmul.f32 %v732, %v763
      %v770 = vmul.f32 %v733, %v763
      %v771 = vmul.f32 %v734, %v763
      %v772 = vmul.f32 %v735, %v763
      %v773 = vmul.f32 %v736, %v763
      %v774 = vmul.f32 %v737, %v763
      %v775 = vmul.f32 %v738, %v763
      %v776 = vmul.f32 %v739, %v763
      %v777 = vmul.f32 %v740, %v763
      %v778 = vmul.f32 %v741, %v763
      %v779 = vmul.f32 %v742, %v763
      %v780 = vmul.f32 %v743, %v763
      %v781 = vmul.f32 %v744, %v763
      %v782 = vmul.f32 %v745, %v763
      %v783 = vmul.f32 %v746, %v763
      %v784 = vmul.f32 %v747, %v763
      %v785 = vmul.f32 %v748, %v763
      %v786 = vmul.f32 %v749, %v763
      %v787 = vmul.f32 %v750, %v763
      %v788 = vmul.f32 %v751, %v763
      %v789 = vmul.f32 %v752, %v763
      %v790 = vmul.f32 %v753, %v763
      %v791 = vmul.f32 %v754, %v763
      %v792 = vmul.f32 %v755, %v763
      %v793 = vmul.f32 %v756, %v763
      %v794 = vmul.f32 %v757, %v763
      %v795 = vmul.f32 %v758, %v763
      %797 = vset.pattern.permute.xlu0 0
      %798 = vperm.xlu0 %797, %v283
      %v799 = vpop.permute.xlu0 %798
      %802 = vset.pattern.permute.xlu0 0
      %803 = vperm.xlu0 %802, %v284
      %v804 = vpop.permute.xlu0 %803
      %807 = vset.pattern.permute.xlu0 0
      %808 = vperm.xlu0 %807, %v285
      %v809 = vpop.permute.xlu0 %808
      %812 = vset.pattern.permute.xlu0 0
      %813 = vperm.xlu0 %812, %v286
      %v814 = vpop.permute.xlu0 %813
      %817 = vset.pattern.permute.xlu0 0
      %818 = vperm.xlu0 %817, %v287
      %v819 = vpop.permute.xlu0 %818
      %822 = vset.pattern.permute.xlu0 0
      %823 = vperm.xlu0 %822, %v288
      %v824 = vpop.permute.xlu0 %823
      %827 = vset.pattern.permute.xlu0 0
      %828 = vperm.xlu0 %827, %v289
      %v829 = vpop.permute.xlu0 %828
      %832 = vset.pattern.permute.xlu0 0
      %833 = vperm.xlu0 %832, %v290
      %v834 = vpop.permute.xlu0 %833
      %837 = vset.pattern.permute.xlu0 0
      %838 = vperm.xlu0 %837, %v291
      %v839 = vpop.permute.xlu0 %838
      %842 = vset.pattern.permute.xlu0 0
      %843 = vperm.xlu0 %842, %v292
      %v844 = vpop.permute.xlu0 %843
      %847 = vset.pattern.permute.xlu0 0
      %848 = vperm.xlu0 %847, %v293
      %v849 = vpop.permute.xlu0 %848
      %852 = vset.pattern.permute.xlu0 0
      %853 = vperm.xlu0 %852, %v294
      %v854 = vpop.permute.xlu0 %853
      %857 = vset.pattern.permute.xlu0 0
      %858 = vperm.xlu0 %857, %v295
      %v859 = vpop.permute.xlu0 %858
      %862 = vset.pattern.permute.xlu0 0
      %863 = vperm.xlu0 %862, %v296
      %v864 = vpop.permute.xlu0 %863
      %867 = vset.pattern.permute.xlu0 0
      %868 = vperm.xlu0 %867, %v297
      %v869 = vpop.permute.xlu0 %868
      %872 = vset.pattern.permute.xlu0 0
      %873 = vperm.xlu0 %872, %v298
      %v874 = vpop.permute.xlu0 %873
      %v876 = vmul.f32 %v764, %v799
      %v877 = vmul.f32 %v765, %v799
      %v878 = vmul.f32 %v766, %v804
      %v879 = vmul.f32 %v767, %v804
      %v880 = vmul.f32 %v768, %v809
      %v881 = vmul.f32 %v769, %v809
      %v882 = vmul.f32 %v770, %v814
      %v883 = vmul.f32 %v771, %v814
      %v884 = vmul.f32 %v772, %v819
      %v885 = vmul.f32 %v773, %v819
      %v886 = vmul.f32 %v774, %v824
      %v887 = vmul.f32 %v775, %v824
      %v888 = vmul.f32 %v776, %v829
      %v889 = vmul.f32 %v777, %v829
      %v890 = vmul.f32 %v778, %v834
      %v891 = vmul.f32 %v779, %v834
      %v892 = vmul.f32 %v780, %v839
      %v893 = vmul.f32 %v781, %v839
      %v894 = vmul.f32 %v782, %v844
      %v895 = vmul.f32 %v783, %v844
      %v896 = vmul.f32 %v784, %v849
      %v897 = vmul.f32 %v785, %v849
      %v898 = vmul.f32 %v786, %v854
      %v899 = vmul.f32 %v787, %v854
      %v900 = vmul.f32 %v788, %v859
      %v901 = vmul.f32 %v789, %v859
      %v902 = vmul.f32 %v790, %v864
      %v903 = vmul.f32 %v791, %v864
      %v904 = vmul.f32 %v792, %v869
      %v905 = vmul.f32 %v793, %v869
      %v906 = vmul.f32 %v794, %v874
      %v907 = vmul.f32 %v795, %v874
      %909 = vset.pattern.permute.xlu0 0
      %910 = vperm.xlu0 %909, %v299
      %v911 = vpop.permute.xlu0 %910
      %914 = vset.pattern.permute.xlu0 0
      %915 = vperm.xlu0 %914, %v300
      %v916 = vpop.permute.xlu0 %915
      %919 = vset.pattern.permute.xlu0 0
      %920 = vperm.xlu0 %919, %v301
      %v921 = vpop.permute.xlu0 %920
      %924 = vset.pattern.permute.xlu0 0
      %925 = vperm.xlu0 %924, %v302
      %v926 = vpop.permute.xlu0 %925
      %929 = vset.pattern.permute.xlu0 0
      %930 = vperm.xlu0 %929, %v303
      %v931 = vpop.permute.xlu0 %930
      %934 = vset.pattern.permute.xlu0 0
      %935 = vperm.xlu0 %934, %v304
      %v936 = vpop.permute.xlu0 %935
      %939 = vset.pattern.permute.xlu0 0
      %940 = vperm.xlu0 %939, %v305
      %v941 = vpop.permute.xlu0 %940
      %944 = vset.pattern.permute.xlu0 0
      %945 = vperm.xlu0 %944, %v306
      %v946 = vpop.permute.xlu0 %945
      %949 = vset.pattern.permute.xlu0 0
      %950 = vperm.xlu0 %949, %v307
      %v951 = vpop.permute.xlu0 %950
      %954 = vset.pattern.permute.xlu0 0
      %955 = vperm.xlu0 %954, %v308
      %v956 = vpop.permute.xlu0 %955
      %959 = vset.pattern.permute.xlu0 0
      %960 = vperm.xlu0 %959, %v309
      %v961 = vpop.permute.xlu0 %960
      %964 = vset.pattern.permute.xlu0 0
      %965 = vperm.xlu0 %964, %v310
      %v966 = vpop.permute.xlu0 %965
      %969 = vset.pattern.permute.xlu0 0
      %970 = vperm.xlu0 %969, %v311
      %v971 = vpop.permute.xlu0 %970
      %974 = vset.pattern.permute.xlu0 0
      %975 = vperm.xlu0 %974, %v312
      %v976 = vpop.permute.xlu0 %975
      %979 = vset.pattern.permute.xlu0 0
      %980 = vperm.xlu0 %979, %v313
      %v981 = vpop.permute.xlu0 %980
      %984 = vset.pattern.permute.xlu0 0
      %985 = vperm.xlu0 %984, %v314
      %v986 = vpop.permute.xlu0 %985
      %v988 = vadd.f32 %v876, %v911
      %v989 = vadd.f32 %v877, %v911
      %v990 = vadd.f32 %v878, %v916
      %v991 = vadd.f32 %v879, %v916
      %v992 = vadd.f32 %v880, %v921
      %v993 = vadd.f32 %v881, %v921
      %v994 = vadd.f32 %v882, %v926
      %v995 = vadd.f32 %v883, %v926
      %v996 = vadd.f32 %v884, %v931
      %v997 = vadd.f32 %v885, %v931
      %v998 = vadd.f32 %v886, %v936
      %v999 = vadd.f32 %v887, %v936
      %v1000 = vadd.f32 %v888, %v941
      %v1001 = vadd.f32 %v889, %v941
      %v1002 = vadd.f32 %v890, %v946
      %v1003 = vadd.f32 %v891, %v946
      %v1004 = vadd.f32 %v892, %v951
      %v1005 = vadd.f32 %v893, %v951
      %v1006 = vadd.f32 %v894, %v956
      %v1007 = vadd.f32 %v895, %v956
      %v1008 = vadd.f32 %v896, %v961
      %v1009 = vadd.f32 %v897, %v961
      %v1010 = vadd.f32 %v898, %v966
      %v1011 = vadd.f32 %v899, %v966
      %v1012 = vadd.f32 %v900, %v971
      %v1013 = vadd.f32 %v901, %v971
      %v1014 = vadd.f32 %v902, %v976
      %v1015 = vadd.f32 %v903, %v976
      %v1016 = vadd.f32 %v904, %v981
      %v1017 = vadd.f32 %v905, %v981
      %v1018 = vadd.f32 %v906, %v986
      %v1019 = vadd.f32 %v907, %v986
      %v1020 = vsub.f32 0.0, %v988
      %v1021 = vsub.f32 0.0, %v989
      %v1022 = vsub.f32 0.0, %v990
      %v1023 = vsub.f32 0.0, %v991
      %v1024 = vsub.f32 0.0, %v992
      %v1025 = vsub.f32 0.0, %v993
      %v1026 = vsub.f32 0.0, %v994
      %v1027 = vsub.f32 0.0, %v995
      %v1028 = vsub.f32 0.0, %v996
      %v1029 = vsub.f32 0.0, %v997
      %v1030 = vsub.f32 0.0, %v998
      %v1031 = vsub.f32 0.0, %v999
      %v1032 = vsub.f32 0.0, %v1000
      %v1033 = vsub.f32 0.0, %v1001
      %v1034 = vsub.f32 0.0, %v1002
      %v1035 = vsub.f32 0.0, %v1003
      %v1036 = vsub.f32 0.0, %v1004
      %v1037 = vsub.f32 0.0, %v1005
      %v1038 = vsub.f32 0.0, %v1006
      %v1039 = vsub.f32 0.0, %v1007
      %v1040 = vsub.f32 0.0, %v1008
      %v1041 = vsub.f32 0.0, %v1009
      %v1042 = vsub.f32 0.0, %v1010
      %v1043 = vsub.f32 0.0, %v1011
      %v1044 = vsub.f32 0.0, %v1012
      %v1045 = vsub.f32 0.0, %v1013
      %v1046 = vsub.f32 0.0, %v1014
      %v1047 = vsub.f32 0.0, %v1015
      %v1048 = vsub.f32 0.0, %v1016
      %v1049 = vsub.f32 0.0, %v1017
      %v1050 = vsub.f32 0.0, %v1018
      %v1051 = vsub.f32 0.0, %v1019
      %v1052 = vmul.f32 %v1020, 1.442695
      %v1053 = vpow.pop %v1052
      %v1054 = vmul.f32 %v1021, 1.442695
      %v1055 = vpow.pop %v1054
      %v1056 = vmul.f32 %v1022, 1.442695
      %v1057 = vpow.pop %v1056
      %v1058 = vmul.f32 %v1023, 1.442695
      %v1059 = vpow.pop %v1058
      %v1060 = vmul.f32 %v1024, 1.442695
      %v1061 = vpow.pop %v1060
      %v1062 = vmul.f32 %v1025, 1.442695
      %v1063 = vpow.pop %v1062
      %v1064 = vmul.f32 %v1026, 1.442695
      %v1065 = vpow.pop %v1064
      %v1066 = vmul.f32 %v1027, 1.442695
      %v1067 = vpow.pop %v1066
      %v1068 = vmul.f32 %v1028, 1.442695
      %v1069 = vpow.pop %v1068
      %v1070 = vmul.f32 %v1029, 1.442695
      %v1071 = vpow.pop %v1070
      %v1072 = vmul.f32 %v1030, 1.442695
      %v1073 = vpow.pop %v1072
      %v1074 = vmul.f32 %v1031, 1.442695
      %v1075 = vpow.pop %v1074
      %v1076 = vmul.f32 %v1032, 1.442695
      %v1077 = vpow.pop %v1076
      %v1078 = vmul.f32 %v1033, 1.442695
      %v1079 = vpow.pop %v1078
      %v1080 = vmul.f32 %v1034, 1.442695
      %v1081 = vpow.pop %v1080
      %v1082 = vmul.f32 %v1035, 1.442695
      %v1083 = vpow.pop %v1082
      %v1084 = vmul.f32 %v1036, 1.442695
      %v1085 = vpow.pop %v1084
      %v1086 = vmul.f32 %v1037, 1.442695
      %v1087 = vpow.pop %v1086
      %v1088 = vmul.f32 %v1038, 1.442695
      %v1089 = vpow.pop %v1088
      %v1090 = vmul.f32 %v1039, 1.442695
      %v1091 = vpow.pop %v1090
      %v1092 = vmul.f32 %v1040, 1.442695
      %v1093 = vpow.pop %v1092
      %v1094 = vmul.f32 %v1041, 1.442695
      %v1095 = vpow.pop %v1094
      %v1096 = vmul.f32 %v1042, 1.442695
      %v1097 = vpow.pop %v1096
      %v1098 = vmul.f32 %v1043, 1.442695
      %v1099 = vpow.pop %v1098
      %v1100 = vmul.f32 %v1044, 1.442695
      %v1101 = vpow.pop %v1100
      %v1102 = vmul.f32 %v1045, 1.442695
      %v1103 = vpow.pop %v1102
      %v1104 = vmul.f32 %v1046, 1.442695
      %v1105 = vpow.pop %v1104
      %v1106 = vmul.f32 %v1047, 1.442695
      %v1107 = vpow.pop %v1106
      %v1108 = vmul.f32 %v1048, 1.442695
      %v1109 = vpow.pop %v1108
      %v1110 = vmul.f32 %v1049, 1.442695
      %v1111 = vpow.pop %v1110
      %v1112 = vmul.f32 %v1050, 1.442695
      %v1113 = vpow.pop %v1112
      %v1114 = vmul.f32 %v1051, 1.442695
      %v1115 = vpow.pop %v1114
      %v1116 = vadd.f32 %v1053, 1.0
      %v1117 = vadd.f32 %v1055, 1.0
      %v1118 = vadd.f32 %v1057, 1.0
      %v1119 = vadd.f32 %v1059, 1.0
      %v1120 = vadd.f32 %v1061, 1.0
      %v1121 = vadd.f32 %v1063, 1.0
      %v1122 = vadd.f32 %v1065, 1.0
      %v1123 = vadd.f32 %v1067, 1.0
      %v1124 = vadd.f32 %v1069, 1.0
      %v1125 = vadd.f32 %v1071, 1.0
      %v1126 = vadd.f32 %v1073, 1.0
      %v1127 = vadd.f32 %v1075, 1.0
      %v1128 = vadd.f32 %v1077, 1.0
      %v1129 = vadd.f32 %v1079, 1.0
      %v1130 = vadd.f32 %v1081, 1.0
      %v1131 = vadd.f32 %v1083, 1.0
      %v1132 = vadd.f32 %v1085, 1.0
      %v1133 = vadd.f32 %v1087, 1.0
      %v1134 = vadd.f32 %v1089, 1.0
      %v1135 = vadd.f32 %v1091, 1.0
      %v1136 = vadd.f32 %v1093, 1.0
      %v1137 = vadd.f32 %v1095, 1.0
      %v1138 = vadd.f32 %v1097, 1.0
      %v1139 = vadd.f32 %v1099, 1.0
      %v1140 = vadd.f32 %v1101, 1.0
      %v1141 = vadd.f32 %v1103, 1.0
      %v1142 = vadd.f32 %v1105, 1.0
      %v1143 = vadd.f32 %v1107, 1.0
      %v1144 = vadd.f32 %v1109, 1.0
      %v1145 = vadd.f32 %v1111, 1.0
      %v1146 = vadd.f32 %v1113, 1.0
      %v1147 = vadd.f32 %v1115, 1.0
      %v1148 = vrcp.pop %v1116
      %v1149 = vrcp.pop %v1117
      %v1150 = vrcp.pop %v1118
      %v1151 = vrcp.pop %v1119
      %v1152 = vrcp.pop %v1120
      %v1153 = vrcp.pop %v1121
      %v1154 = vrcp.pop %v1122
      %v1155 = vrcp.pop %v1123
      %v1156 = vrcp.pop %v1124
      %v1157 = vrcp.pop %v1125
      %v1158 = vrcp.pop %v1126
      %v1159 = vrcp.pop %v1127
      %v1160 = vrcp.pop %v1128
      %v1161 = vrcp.pop %v1129
      %v1162 = vrcp.pop %v1130
      %v1163 = vrcp.pop %v1131
      %v1164 = vrcp.pop %v1132
      %v1165 = vrcp.pop %v1133
      %v1166 = vrcp.pop %v1134
      %v1167 = vrcp.pop %v1135
      %v1168 = vrcp.pop %v1136
      %v1169 = vrcp.pop %v1137
      %v1170 = vrcp.pop %v1138
      %v1171 = vrcp.pop %v1139
      %v1172 = vrcp.pop %v1140
      %v1173 = vrcp.pop %v1141
      %v1174 = vrcp.pop %v1142
      %v1175 = vrcp.pop %v1143
      %v1176 = vrcp.pop %v1144
      %v1177 = vrcp.pop %v1145
      %v1178 = vrcp.pop %v1146
      %v1179 = vrcp.pop %v1147
      %v1180 = vmul.f32 %v988, %v1148
      %v1181 = vmul.f32 %v989, %v1149
      %v1182 = vmul.f32 %v990, %v1150
      %v1183 = vmul.f32 %v991, %v1151
      %v1184 = vmul.f32 %v992, %v1152
      %v1185 = vmul.f32 %v993, %v1153
      %v1186 = vmul.f32 %v994, %v1154
      %v1187 = vmul.f32 %v995, %v1155
      %v1188 = vmul.f32 %v996, %v1156
      %v1189 = vmul.f32 %v997, %v1157
      %v1190 = vmul.f32 %v998, %v1158
      %v1191 = vmul.f32 %v999, %v1159
      %v1192 = vmul.f32 %v1000, %v1160
      %v1193 = vmul.f32 %v1001, %v1161
      %v1194 = vmul.f32 %v1002, %v1162
      %v1195 = vmul.f32 %v1003, %v1163
      %v1196 = vmul.f32 %v1004, %v1164
      %v1197 = vmul.f32 %v1005, %v1165
      %v1198 = vmul.f32 %v1006, %v1166
      %v1199 = vmul.f32 %v1007, %v1167
      %v1200 = vmul.f32 %v1008, %v1168
      %v1201 = vmul.f32 %v1009, %v1169
      %v1202 = vmul.f32 %v1010, %v1170
      %v1203 = vmul.f32 %v1011, %v1171
      %v1204 = vmul.f32 %v1012, %v1172
      %v1205 = vmul.f32 %v1013, %v1173
      %v1206 = vmul.f32 %v1014, %v1174
      %v1207 = vmul.f32 %v1015, %v1175
      %v1208 = vmul.f32 %v1016, %v1176
      %v1209 = vmul.f32 %v1017, %v1177
      %v1210 = vmul.f32 %v1018, %v1178
      %v1211 = vmul.f32 %v1019, %v1179
      %v1212 = vpack.c.bf16 %v1182, %v1180
      %v1213 = vpack.c.bf16 %v1183, %v1181
      %v1214 = vpack.c.bf16 %v1186, %v1184
      %v1215 = vpack.c.bf16 %v1187, %v1185
      %v1216 = vpack.c.bf16 %v1190, %v1188
      %v1217 = vpack.c.bf16 %v1191, %v1189
      %v1218 = vpack.c.bf16 %v1194, %v1192
      %v1219 = vpack.c.bf16 %v1195, %v1193
      %v1220 = vpack.c.bf16 %v1198, %v1196
      %v1221 = vpack.c.bf16 %v1199, %v1197
      %v1222 = vpack.c.bf16 %v1202, %v1200
      %v1223 = vpack.c.bf16 %v1203, %v1201
      %v1224 = vpack.c.bf16 %v1206, %v1204
      %v1225 = vpack.c.bf16 %v1207, %v1205
      %v1226 = vpack.c.bf16 %v1210, %v1208
      %v1227 = vpack.c.bf16 %v1211, %v1209
      %v1230 = vunpack.c.l.b16 %v281
      %v1231 = vunpack.c.l.b16 %v282
      %v1232 = vpack.c.b16 %v1231, %v1230
      %1234 = vmatprep.subr.bf16.mxu0 %v1213
      %1235 = vmatpush1.bf16.msra.mxu0 %v1212
      %1236 = vmatprep.subr.bf16.mxu0 %v1215
      %1237 = vmatpush1.bf16.msra.mxu0 %v1214
      %1238 = vmatprep.subr.bf16.mxu0 %v1217
      %1239 = vmatpush1.bf16.msra.mxu0 %v1216
      %1240 = vmatprep.subr.bf16.mxu0 %v1219
      %1241 = vmatpush1.bf16.msra.mxu0 %v1218
      %1242 = vmatprep.subr.bf16.mxu0 %v1221
      %1243 = vmatpush1.bf16.msra.mxu0 %v1220
      %1244 = vmatprep.subr.bf16.mxu0 %v1223
      %1245 = vmatpush1.bf16.msra.mxu0 %v1222
      %1246 = vmatprep.subr.bf16.mxu0 %v1225
      %1247 = vmatpush1.bf16.msra.mxu0 %v1224
      %1248 = vmatprep.subr.bf16.mxu0 %v1227
      %1249 = vmatpush1.bf16.msra.mxu0 %v1226
      %1250 = vmatprep.subr.bf16.mxu0 0
      %1251 = vmatpush1.bf16.msra.mxu0 0
      %1252 = vmatprep.subr.bf16.mxu0 0
      %1253 = vmatpush1.bf16.msra.mxu0 0
      %1254 = vmatprep.subr.bf16.mxu0 0
      %1255 = vmatpush1.bf16.msra.mxu0 0
      %1256 = vmatprep.subr.bf16.mxu0 0
      %1257 = vmatpush1.bf16.msra.mxu0 0
      %1258 = vmatprep.subr.bf16.mxu0 0
      %1259 = vmatpush1.bf16.msra.mxu0 0
      %1260 = vmatprep.subr.bf16.mxu0 0
      %1261 = vmatpush1.bf16.msra.mxu0 0
      %1262 = vmatprep.subr.bf16.mxu0 0
      %1263 = vmatpush1.bf16.msra.mxu0 0
      %1264 = vmatprep.subr.bf16.mxu0 0
      %1265 = vmatpush1.bf16.msra.mxu0 0
      %1266 = vmatprep.mubr.bf16.mxu0 0
      %1267 = vmatmul.mubr.bf16.gmra.mrb[0].mxu0 %v1232
      %v1268 = vpop.f32.mrb[0].mxu0
      %v1269 = vadd.f32 0.0, %v1268
      %v1270 = vpop.f32.mrb[0].mxu0
      %v1271 = vadd.f32 0.0, %v1270
      %v1272 = vpop.f32.mrb[0].mxu0
      %v1273 = vadd.f32 0.0, %v1272
      %v1274 = vpop.f32.mrb[0].mxu0
      %v1275 = vadd.f32 0.0, %v1274
      %1276 = vdwg.mxu0
      %v1277 = vsub.f32 0.0, %v1269
      %v1278 = vsub.f32 0.0, %v1271
      %v1279 = vsub.f32 0.0, %v1273
      %v1280 = vsub.f32 0.0, %v1275
      %v1281 = vmul.f32 %v1277, 1.442695
      %v1282 = vpow.pop %v1281
      %v1283 = vmul.f32 %v1278, 1.442695
      %v1284 = vpow.pop %v1283
      %v1285 = vmul.f32 %v1279, 1.442695
      %v1286 = vpow.pop %v1285
      %v1287 = vmul.f32 %v1280, 1.442695
      %v1288 = vpow.pop %v1287
      %v1289 = vadd.f32 %v1282, 1.0
      %v1290 = vadd.f32 %v1284, 1.0
      %v1291 = vadd.f32 %v1286, 1.0
      %v1292 = vadd.f32 %v1288, 1.0
      %v1293 = vrcp.pop %v1289
      %v1294 = vrcp.pop %v1290
      %v1295 = vrcp.pop %v1291
      %v1296 = vrcp.pop %v1292
      %1297 = vst [vmem:[%s231] sm:$0xff] %v1293
      %1298 = vst [vmem:[%s231 + $0x8] sm:$0xff] %v1294
      %1299 = vst [vmem:[%s231 + $0x10] sm:$0xff] %v1295
      %1300 = vst [vmem:[%s231 + $0x18] sm:$0xff] %v1296
      %s1301 = scalar_lea.vmem %s224, 32
      %v1302 = vld [vmem:[%s1301] sm:$0xff]
      %v1303 = vld [vmem:[%s1301 + $0x8] sm:$0xff]
      %v1304 = vld [vmem:[%s1301 + $0x10] sm:$0xff]
      %v1305 = vld [vmem:[%s1301 + $0x18] sm:$0xff]
      %v1306 = vunpack.c.l.bf16 %v1302
      %v1307 = vunpack.c.h.bf16 %v1302
      %v1308 = vunpack.c.l.bf16 %v1303
      %v1309 = vunpack.c.h.bf16 %v1303
      %v1310 = vunpack.c.l.bf16 %v1304
      %v1311 = vunpack.c.h.bf16 %v1304
      %v1312 = vunpack.c.l.bf16 %v1305
      %v1313 = vunpack.c.h.bf16 %v1305
      %1314 = vrot.lane.b32.xlu0 %v1306, 127
      %v1315 = vpop.permute.xlu0 %1314
      %1316 = vrot.lane.b32.xlu0 %v1308, 127
      %v1317 = vpop.permute.xlu0 %1316
      %1318 = vrot.lane.b32.xlu0 %v1310, 127
      %v1319 = vpop.permute.xlu0 %1318
      %1320 = vrot.lane.b32.xlu0 %v1312, 127
      %v1321 = vpop.permute.xlu0 %1320
      %1322 = vrot.lane.b32.xlu0 %v1307, 127
      %v1323 = vpop.permute.xlu0 %1322
      %1324 = vrot.lane.b32.xlu0 %v1309, 127
      %v1325 = vpop.permute.xlu0 %1324
      %1326 = vrot.lane.b32.xlu0 %v1311, 127
      %v1327 = vpop.permute.xlu0 %1326
      %1328 = vrot.lane.b32.xlu0 %v1313, 127
      %v1329 = vpop.permute.xlu0 %1328
      %v1330 = vsel %vm343, %v1315, %v1323
      %v1331 = vsel %vm343, %v1317, %v1325
      %v1332 = vsel %vm343, %v1319, %v1327
      %v1333 = vsel %vm343, %v1321, %v1329
      %v1334 = vsel %vm343, %v1323, %v1315
      %v1335 = vsel %vm343, %v1325, %v1317
      %v1336 = vsel %vm343, %v1327, %v1319
      %v1337 = vsel %vm343, %v1329, %v1321
      %v1338 = vsel %vm261, %v1330, 0.0
      %v1339 = vsel %vm262, %v1334, 0.0
      %v1340 = vsel %vm261, %v1331, 0.0
      %v1341 = vsel %vm262, %v1335, 0.0
      %v1342 = vsel %vm261, %v1332, 0.0
      %v1343 = vsel %vm262, %v1336, 0.0
      %v1344 = vsel %vm261, %v1333, 0.0
      %v1345 = vsel %vm262, %v1337, 0.0
      %1346 = vrot.lane.b32.xlu0 %v1306, 112
      %v1347 = vpop.permute.xlu0 %1346
      %1348 = vrot.lane.b32.xlu0 %v1308, 112
      %v1349 = vpop.permute.xlu0 %1348
      %1350 = vrot.lane.b32.xlu0 %v1310, 112
      %v1351 = vpop.permute.xlu0 %1350
      %1352 = vrot.lane.b32.xlu0 %v1312, 112
      %v1353 = vpop.permute.xlu0 %1352
      %1354 = vrot.lane.b32.xlu0 %v1307, 112
      %v1355 = vpop.permute.xlu0 %1354
      %1356 = vrot.lane.b32.xlu0 %v1309, 112
      %v1357 = vpop.permute.xlu0 %1356
      %1358 = vrot.lane.b32.xlu0 %v1311, 112
      %v1359 = vpop.permute.xlu0 %1358
      %1360 = vrot.lane.b32.xlu0 %v1313, 112
      %v1361 = vpop.permute.xlu0 %1360
      %v1362 = vsel %vm376, %v1347, %v1355
      %v1363 = vsel %vm376, %v1349, %v1357
      %v1364 = vsel %vm376, %v1351, %v1359
      %v1365 = vsel %vm376, %v1353, %v1361
      %v1366 = vsel %vm376, %v1355, %v1347
      %v1367 = vsel %vm376, %v1357, %v1349
      %v1368 = vsel %vm376, %v1359, %v1351
      %v1369 = vsel %vm376, %v1361, %v1353
      %v1370 = vsel %vm263, %v1362, 0.0
      %v1371 = vsel %vm264, %v1366, 0.0
      %v1372 = vsel %vm263, %v1363, 0.0
      %v1373 = vsel %vm264, %v1367, 0.0
      %v1374 = vsel %vm263, %v1364, 0.0
      %v1375 = vsel %vm264, %v1368, 0.0
      %v1376 = vsel %vm263, %v1365, 0.0
      %v1377 = vsel %vm264, %v1369, 0.0
      %1378 = vrot.lane.b32.xlu0 %v1306, 111
      %v1379 = vpop.permute.xlu0 %1378
      %1380 = vrot.lane.b32.xlu0 %v1308, 111
      %v1381 = vpop.permute.xlu0 %1380
      %1382 = vrot.lane.b32.xlu0 %v1310, 111
      %v1383 = vpop.permute.xlu0 %1382
      %1384 = vrot.lane.b32.xlu0 %v1312, 111
      %v1385 = vpop.permute.xlu0 %1384
      %1386 = vrot.lane.b32.xlu0 %v1307, 111
      %v1387 = vpop.permute.xlu0 %1386
      %1388 = vrot.lane.b32.xlu0 %v1309, 111
      %v1389 = vpop.permute.xlu0 %1388
      %1390 = vrot.lane.b32.xlu0 %v1311, 111
      %v1391 = vpop.permute.xlu0 %1390
      %1392 = vrot.lane.b32.xlu0 %v1313, 111
      %v1393 = vpop.permute.xlu0 %1392
      %v1394 = vsel %vm411, %v1379, %v1387
      %v1395 = vsel %vm411, %v1381, %v1389
      %v1396 = vsel %vm411, %v1383, %v1391
      %v1397 = vsel %vm411, %v1385, %v1393
      %v1398 = vsel %vm411, %v1387, %v1379
      %v1399 = vsel %vm411, %v1389, %v1381
      %v1400 = vsel %vm411, %v1391, %v1383
      %v1401 = vsel %vm411, %v1393, %v1385
      %v1402 = vsel %vm393, %v1394, 0.0
      %v1403 = vsel %vm394, %v1398, 0.0
      %v1404 = vsel %vm393, %v1395, 0.0
      %v1405 = vsel %vm394, %v1399, 0.0
      %v1406 = vsel %vm393, %v1396, 0.0
      %v1407 = vsel %vm394, %v1400, 0.0
      %v1408 = vsel %vm393, %v1397, 0.0
      %v1409 = vsel %vm394, %v1401, 0.0
      %v1410 = vpack.c.bf16 %v1308, %v1306
      %v1411 = vpack.c.bf16 %v1309, %v1307
      %v1412 = vpack.c.bf16 %v1312, %v1310
      %v1413 = vpack.c.bf16 %v1313, %v1311
      %v1414 = vpack.c.bf16 %v1340, %v1338
      %v1415 = vpack.c.bf16 %v1341, %v1339
      %v1416 = vpack.c.bf16 %v1344, %v1342
      %v1417 = vpack.c.bf16 %v1345, %v1343
      %v1418 = vpack.c.bf16 %v1372, %v1370
      %v1419 = vpack.c.bf16 %v1373, %v1371
      %v1420 = vpack.c.bf16 %v1376, %v1374
      %v1421 = vpack.c.bf16 %v1377, %v1375
      %v1422 = vpack.c.bf16 %v1404, %v1402
      %v1423 = vpack.c.bf16 %v1405, %v1403
      %v1424 = vpack.c.bf16 %v1408, %v1406
      %v1425 = vpack.c.bf16 %v1409, %v1407
      %1426 = vmatprep.subr.bf16.mxu0 %v1411
      %1427 = vmatpush1.bf16.msra.mxu0 %v1410
      %1428 = vmatprep.subr.bf16.mxu0 %v1413
      %1429 = vmatpush1.bf16.msra.mxu0 %v1412
      %1430 = vmatprep.subr.bf16.mxu0 %v1415
      %1431 = vmatpush1.bf16.msra.mxu0 %v1414
      %1432 = vmatprep.subr.bf16.mxu0 %v1417
      %1433 = vmatpush1.bf16.msra.mxu0 %v1416
      %1434 = vmatprep.subr.bf16.mxu0 %v1419
      %1435 = vmatpush1.bf16.msra.mxu0 %v1418
      %1436 = vmatprep.subr.bf16.mxu0 %v1421
      %1437 = vmatpush1.bf16.msra.mxu0 %v1420
      %1438 = vmatprep.subr.bf16.mxu0 %v1423
      %1439 = vmatpush1.bf16.msra.mxu0 %v1422
      %1440 = vmatprep.subr.bf16.mxu0 %v1425
      %1441 = vmatpush1.bf16.msra.mxu0 %v1424
      %1442 = vmatprep.subr.bf16.mxu0 0
      %1443 = vmatpush1.bf16.msra.mxu0 0
      %1444 = vmatprep.subr.bf16.mxu0 0
      %1445 = vmatpush1.bf16.msra.mxu0 0
      %1446 = vmatprep.subr.bf16.mxu0 0
      %1447 = vmatpush1.bf16.msra.mxu0 0
      %1448 = vmatprep.subr.bf16.mxu0 0
      %1449 = vmatpush1.bf16.msra.mxu0 0
      %1450 = vmatprep.subr.bf16.mxu0 0
      %1451 = vmatpush1.bf16.msra.mxu0 0
      %1452 = vmatprep.subr.bf16.mxu0 0
      %1453 = vmatpush1.bf16.msra.mxu0 0
      %1454 = vmatprep.subr.bf16.mxu0 0
      %1455 = vmatpush1.bf16.msra.mxu0 0
      %1456 = vmatprep.subr.bf16.mxu0 0
      %1457 = vmatpush1.bf16.msra.mxu0 0
      %1458 = vmatprep.mubr.bf16.mxu0 0
      %1459 = vmatmul.mubr.bf16.gmra.mrb[0].mxu0 %v476
      %v1460 = vpop.f32.mrb[0].mxu0
      %v1461 = vadd.f32 0.0, %v1460
      %v1462 = vpop.f32.mrb[0].mxu0
      %v1463 = vadd.f32 0.0, %v1462
      %v1464 = vpop.f32.mrb[0].mxu0
      %v1465 = vadd.f32 0.0, %v1464
      %v1466 = vpop.f32.mrb[0].mxu0
      %v1467 = vadd.f32 0.0, %v1466
      %1468 = vmatprep.mubr.bf16.mxu0 0
      %1469 = vmatmul.mubr.bf16.gmra.mrb[0].mxu0 %v477
      %v1470 = vpop.f32.mrb[0].mxu0
      %v1471 = vadd.f32 0.0, %v1470
      %v1472 = vpop.f32.mrb[0].mxu0
      %v1473 = vadd.f32 0.0, %v1472
      %v1474 = vpop.f32.mrb[0].mxu0
      %v1475 = vadd.f32 0.0, %v1474
      %v1476 = vpop.f32.mrb[0].mxu0
      %v1477 = vadd.f32 0.0, %v1476
      %1478 = vmatprep.mubr.bf16.mxu0 0
      %1479 = vmatmul.mubr.bf16.gmra.mrb[0].mxu0 %v478
      %v1480 = vpop.f32.mrb[0].mxu0
      %v1481 = vadd.f32 0.0, %v1480
      %v1482 = vpop.f32.mrb[0].mxu0
      %v1483 = vadd.f32 0.0, %v1482
      %v1484 = vpop.f32.mrb[0].mxu0
      %v1485 = vadd.f32 0.0, %v1484
      %v1486 = vpop.f32.mrb[0].mxu0
      %v1487 = vadd.f32 0.0, %v1486
      %1488 = vmatprep.mubr.bf16.mxu0 0
      %1489 = vmatmul.mubr.bf16.gmra.mrb[0].mxu0 %v479
      %v1490 = vpop.f32.mrb[0].mxu0
      %v1491 = vadd.f32 0.0, %v1490
      %v1492 = vpop.f32.mrb[0].mxu0
      %v1493 = vadd.f32 0.0, %v1492
      %v1494 = vpop.f32.mrb[0].mxu0
      %v1495 = vadd.f32 0.0, %v1494
      %v1496 = vpop.f32.mrb[0].mxu0
      %v1497 = vadd.f32 0.0, %v1496
      %1498 = vmatprep.mubr.bf16.mxu0 0
      %1499 = vmatmul.mubr.bf16.gmra.mrb[0].mxu0 %v480
      %v1500 = vpop.f32.mrb[0].mxu0
      %v1501 = vadd.f32 0.0, %v1500
      %v1502 = vpop.f32.mrb[0].mxu0
      %v1503 = vadd.f32 0.0, %v1502
      %v1504 = vpop.f32.mrb[0].mxu0
      %v1505 = vadd.f32 0.0, %v1504
      %v1506 = vpop.f32.mrb[0].mxu0
      %v1507 = vadd.f32 0.0, %v1506
      %1508 = vmatprep.mubr.bf16.mxu0 0
      %1509 = vmatmul.mubr.bf16.gmra.mrb[0].mxu0 %v481
      %v1510 = vpop.f32.mrb[0].mxu0
      %v1511 = vadd.f32 0.0, %v1510
      %v1512 = vpop.f32.mrb[0].mxu0
      %v1513 = vadd.f32 0.0, %v1512
      %v1514 = vpop.f32.mrb[0].mxu0
      %v1515 = vadd.f32 0.0, %v1514
      %v1516 = vpop.f32.mrb[0].mxu0
      %v1517 = vadd.f32 0.0, %v1516
      %1518 = vmatprep.mubr.bf16.mxu0 0
      %1519 = vmatmul.mubr.bf16.gmra.mrb[0].mxu0 %v482
      %v1520 = vpop.f32.mrb[0].mxu0
      %v1521 = vadd.f32 0.0, %v1520
      %v1522 = vpop.f32.mrb[0].mxu0
      %v1523 = vadd.f32 0.0, %v1522
      %v1524 = vpop.f32.mrb[0].mxu0
      %v1525 = vadd.f32 0.0, %v1524
      %v1526 = vpop.f32.mrb[0].mxu0
      %v1527 = vadd.f32 0.0, %v1526
      %1528 = vmatprep.mubr.bf16.mxu0 0
      %1529 = vmatmul.mubr.bf16.gmra.mrb[0].mxu0 %v483
      %v1530 = vpop.f32.mrb[0].mxu0
      %v1531 = vadd.f32 0.0, %v1530
      %v1532 = vpop.f32.mrb[0].mxu0
      %v1533 = vadd.f32 0.0, %v1532
      %v1534 = vpop.f32.mrb[0].mxu0
      %v1535 = vadd.f32 0.0, %v1534
      %v1536 = vpop.f32.mrb[0].mxu0
      %v1537 = vadd.f32 0.0, %v1536
      %1538 = vdwg.mxu0
      %v1539 = vadd.f32 %v1461, %v1463
      %v1540 = vadd.f32 %v1539, %v1465
      %v1541 = vadd.f32 %v1540, %v1467
      %v1542 = vadd.f32 %v1541, %v1471
      %v1543 = vadd.f32 %v1542, %v1473
      %v1544 = vadd.f32 %v1543, %v1475
      %v1545 = vadd.f32 %v1544, %v1477
      %v1546 = vadd.f32 %v1545, %v1481
      %v1547 = vadd.f32 %v1546, %v1483
      %v1548 = vadd.f32 %v1547, %v1485
      %v1549 = vadd.f32 %v1548, %v1487
      %v1550 = vadd.f32 %v1549, %v1491
      %v1551 = vadd.f32 %v1550, %v1493
      %v1552 = vadd.f32 %v1551, %v1495
      %v1553 = vadd.f32 %v1552, %v1497
      %v1554 = vadd.f32 %v1553, %v1501
      %v1555 = vadd.f32 %v1554, %v1503
      %v1556 = vadd.f32 %v1555, %v1505
      %v1557 = vadd.f32 %v1556, %v1507
      %v1558 = vadd.f32 %v1557, %v1511
      %v1559 = vadd.f32 %v1558, %v1513
      %v1560 = vadd.f32 %v1559, %v1515
      %v1561 = vadd.f32 %v1560, %v1517
      %v1562 = vadd.f32 %v1561, %v1521
      %v1563 = vadd.f32 %v1562, %v1523
      %v1564 = vadd.f32 %v1563, %v1525
      %v1565 = vadd.f32 %v1564, %v1527
      %v1566 = vadd.f32 %v1565, %v1531
      %v1567 = vadd.f32 %v1566, %v1533
      %v1568 = vadd.f32 %v1567, %v1535
      %v1569 = vadd.f32 %v1568, %v1537
      %1570 = vadd.xlane.f32.xlu0 %v1569
      %v1571 = vpop.xlane.xlu0 %1570
      %v1572 = vrot.slane %v1571, 4
      %v1573 = vadd.f32 %v1571, %v1572
      %v1574 = vrot.slane %v1573, 2
      %v1575 = vadd.f32 %v1573, %v1574
      %v1576 = vrot.slane %v1575, 1
      %v1577 = vadd.f32 %v1575, %v1576
      %s1578 = vtos %v1577
      %v1579 = vmul.f32 %v1461, %v1461
      %v1580 = vmul.f32 %v1463, %v1463
      %v1581 = vmul.f32 %v1465, %v1465
      %v1582 = vmul.f32 %v1467, %v1467
      %v1583 = vmul.f32 %v1471, %v1471
      %v1584 = vmul.f32 %v1473, %v1473
      %v1585 = vmul.f32 %v1475, %v1475
      %v1586 = vmul.f32 %v1477, %v1477
      %v1587 = vmul.f32 %v1481, %v1481
      %v1588 = vmul.f32 %v1483, %v1483
      %v1589 = vmul.f32 %v1485, %v1485
      %v1590 = vmul.f32 %v1487, %v1487
      %v1591 = vmul.f32 %v1491, %v1491
      %v1592 = vmul.f32 %v1493, %v1493
      %v1593 = vmul.f32 %v1495, %v1495
      %v1594 = vmul.f32 %v1497, %v1497
      %v1595 = vmul.f32 %v1501, %v1501
      %v1596 = vmul.f32 %v1503, %v1503
      %v1597 = vmul.f32 %v1505, %v1505
      %v1598 = vmul.f32 %v1507, %v1507
      %v1599 = vmul.f32 %v1511, %v1511
      %v1600 = vmul.f32 %v1513, %v1513
      %v1601 = vmul.f32 %v1515, %v1515
      %v1602 = vmul.f32 %v1517, %v1517
      %v1603 = vmul.f32 %v1521, %v1521
      %v1604 = vmul.f32 %v1523, %v1523
      %v1605 = vmul.f32 %v1525, %v1525
      %v1606 = vmul.f32 %v1527, %v1527
      %v1607 = vmul.f32 %v1531, %v1531
      %v1608 = vmul.f32 %v1533, %v1533
      %v1609 = vmul.f32 %v1535, %v1535
      %v1610 = vmul.f32 %v1537, %v1537
      %v1611 = vadd.f32 %v1579, %v1580
      %v1612 = vadd.f32 %v1611, %v1581
      %v1613 = vadd.f32 %v1612, %v1582
      %v1614 = vadd.f32 %v1613, %v1583
      %v1615 = vadd.f32 %v1614, %v1584
      %v1616 = vadd.f32 %v1615, %v1585
      %v1617 = vadd.f32 %v1616, %v1586
      %v1618 = vadd.f32 %v1617, %v1587
      %v1619 = vadd.f32 %v1618, %v1588
      %v1620 = vadd.f32 %v1619, %v1589
      %v1621 = vadd.f32 %v1620, %v1590
      %v1622 = vadd.f32 %v1621, %v1591
      %v1623 = vadd.f32 %v1622, %v1592
      %v1624 = vadd.f32 %v1623, %v1593
      %v1625 = vadd.f32 %v1624, %v1594
      %v1626 = vadd.f32 %v1625, %v1595
      %v1627 = vadd.f32 %v1626, %v1596
      %v1628 = vadd.f32 %v1627, %v1597
      %v1629 = vadd.f32 %v1628, %v1598
      %v1630 = vadd.f32 %v1629, %v1599
      %v1631 = vadd.f32 %v1630, %v1600
      %v1632 = vadd.f32 %v1631, %v1601
      %v1633 = vadd.f32 %v1632, %v1602
      %v1634 = vadd.f32 %v1633, %v1603
      %v1635 = vadd.f32 %v1634, %v1604
      %v1636 = vadd.f32 %v1635, %v1605
      %v1637 = vadd.f32 %v1636, %v1606
      %v1638 = vadd.f32 %v1637, %v1607
      %v1639 = vadd.f32 %v1638, %v1608
      %v1640 = vadd.f32 %v1639, %v1609
      %v1641 = vadd.f32 %v1640, %v1610
      %1642 = vadd.xlane.f32.xlu0 %v1641
      %v1643 = vpop.xlane.xlu0 %1642
      %v1644 = vrot.slane %v1643, 4
      %v1645 = vadd.f32 %v1643, %v1644
      %v1646 = vrot.slane %v1645, 2
      %v1647 = vadd.f32 %v1645, %v1646
      %v1648 = vrot.slane %v1647, 1
      %v1649 = vadd.f32 %v1647, %v1648
      %s1650 = vtos %v1649
      %v1651 = vrcp.pop 32768.0
      %s1652 = vtos %v1651
      %s1653 = smul.f32 %s1578, %s1652
      %v1654 = vrcp.pop 32768.0
      %s1655 = vtos %v1654
      %s1656 = smul.f32 %s1650, %s1655
      %s1657 = smul.f32 %s1653, %s1653
      %s1658 = ssub.f32 %s1656, %s1657
      %s1659 = smax.f32 %s1658, 0.0
      %v1660 = vstv %s1653
      %v1661 = vsub.f32 %v1461, %v1660
      %v1662 = vsub.f32 %v1463, %v1660
      %v1663 = vsub.f32 %v1465, %v1660
      %v1664 = vsub.f32 %v1467, %v1660
      %v1665 = vsub.f32 %v1471, %v1660
      %v1666 = vsub.f32 %v1473, %v1660
      %v1667 = vsub.f32 %v1475, %v1660
      %v1668 = vsub.f32 %v1477, %v1660
      %v1669 = vsub.f32 %v1481, %v1660
      %v1670 = vsub.f32 %v1483, %v1660
      %v1671 = vsub.f32 %v1485, %v1660
      %v1672 = vsub.f32 %v1487, %v1660
      %v1673 = vsub.f32 %v1491, %v1660
      %v1674 = vsub.f32 %v1493, %v1660
      %v1675 = vsub.f32 %v1495, %v1660
      %v1676 = vsub.f32 %v1497, %v1660
      %v1677 = vsub.f32 %v1501, %v1660
      %v1678 = vsub.f32 %v1503, %v1660
      %v1679 = vsub.f32 %v1505, %v1660
      %v1680 = vsub.f32 %v1507, %v1660
      %v1681 = vsub.f32 %v1511, %v1660
      %v1682 = vsub.f32 %v1513, %v1660
      %v1683 = vsub.f32 %v1515, %v1660
      %v1684 = vsub.f32 %v1517, %v1660
      %v1685 = vsub.f32 %v1521, %v1660
      %v1686 = vsub.f32 %v1523, %v1660
      %v1687 = vsub.f32 %v1525, %v1660
      %v1688 = vsub.f32 %v1527, %v1660
      %v1689 = vsub.f32 %v1531, %v1660
      %v1690 = vsub.f32 %v1533, %v1660
      %v1691 = vsub.f32 %v1535, %v1660
      %v1692 = vsub.f32 %v1537, %v1660
      %s1693 = sadd.f32 %s1659, 1e-05
      %v1694 = vstv %s1693
      %v1695 = vrsqrt.pop %v1694
      %s1696 = vtos %v1695
      %v1697 = vstv %s1696
      %v1698 = vmul.f32 %v1661, %v1697
      %v1699 = vmul.f32 %v1662, %v1697
      %v1700 = vmul.f32 %v1663, %v1697
      %v1701 = vmul.f32 %v1664, %v1697
      %v1702 = vmul.f32 %v1665, %v1697
      %v1703 = vmul.f32 %v1666, %v1697
      %v1704 = vmul.f32 %v1667, %v1697
      %v1705 = vmul.f32 %v1668, %v1697
      %v1706 = vmul.f32 %v1669, %v1697
      %v1707 = vmul.f32 %v1670, %v1697
      %v1708 = vmul.f32 %v1671, %v1697
      %v1709 = vmul.f32 %v1672, %v1697
      %v1710 = vmul.f32 %v1673, %v1697
      %v1711 = vmul.f32 %v1674, %v1697
      %v1712 = vmul.f32 %v1675, %v1697
      %v1713 = vmul.f32 %v1676, %v1697
      %v1714 = vmul.f32 %v1677, %v1697
      %v1715 = vmul.f32 %v1678, %v1697
      %v1716 = vmul.f32 %v1679, %v1697
      %v1717 = vmul.f32 %v1680, %v1697
      %v1718 = vmul.f32 %v1681, %v1697
      %v1719 = vmul.f32 %v1682, %v1697
      %v1720 = vmul.f32 %v1683, %v1697
      %v1721 = vmul.f32 %v1684, %v1697
      %v1722 = vmul.f32 %v1685, %v1697
      %v1723 = vmul.f32 %v1686, %v1697
      %v1724 = vmul.f32 %v1687, %v1697
      %v1725 = vmul.f32 %v1688, %v1697
      %v1726 = vmul.f32 %v1689, %v1697
      %v1727 = vmul.f32 %v1690, %v1697
      %v1728 = vmul.f32 %v1691, %v1697
      %v1729 = vmul.f32 %v1692, %v1697
      %v1730 = vmul.f32 %v1698, %v799
      %v1731 = vmul.f32 %v1699, %v799
      %v1732 = vmul.f32 %v1700, %v804
      %v1733 = vmul.f32 %v1701, %v804
      %v1734 = vmul.f32 %v1702, %v809
      %v1735 = vmul.f32 %v1703, %v809
      %v1736 = vmul.f32 %v1704, %v814
      %v1737 = vmul.f32 %v1705, %v814
      %v1738 = vmul.f32 %v1706, %v819
      %v1739 = vmul.f32 %v1707, %v819
      %v1740 = vmul.f32 %v1708, %v824
      %v1741 = vmul.f32 %v1709, %v824
      %v1742 = vmul.f32 %v1710, %v829
      %v1743 = vmul.f32 %v1711, %v829
      %v1744 = vmul.f32 %v1712, %v834
      %v1745 = vmul.f32 %v1713, %v834
      %v1746 = vmul.f32 %v1714, %v839
      %v1747 = vmul.f32 %v1715, %v839
      %v1748 = vmul.f32 %v1716, %v844
      %v1749 = vmul.f32 %v1717, %v844
      %v1750 = vmul.f32 %v1718, %v849
      %v1751 = vmul.f32 %v1719, %v849
      %v1752 = vmul.f32 %v1720, %v854
      %v1753 = vmul.f32 %v1721, %v854
      %v1754 = vmul.f32 %v1722, %v859
      %v1755 = vmul.f32 %v1723, %v859
      %v1756 = vmul.f32 %v1724, %v864
      %v1757 = vmul.f32 %v1725, %v864
      %v1758 = vmul.f32 %v1726, %v869
      %v1759 = vmul.f32 %v1727, %v869
      %v1760 = vmul.f32 %v1728, %v874
      %v1761 = vmul.f32 %v1729, %v874
      %v1762 = vadd.f32 %v1730, %v911
      %v1763 = vadd.f32 %v1731, %v911
      %v1764 = vadd.f32 %v1732, %v916
      %v1765 = vadd.f32 %v1733, %v916
      %v1766 = vadd.f32 %v1734, %v921
      %v1767 = vadd.f32 %v1735, %v921
      %v1768 = vadd.f32 %v1736, %v926
      %v1769 = vadd.f32 %v1737, %v926
      %v1770 = vadd.f32 %v1738, %v931
      %v1771 = vadd.f32 %v1739, %v931
      %v1772 = vadd.f32 %v1740, %v936
      %v1773 = vadd.f32 %v1741, %v936
      %v1774 = vadd.f32 %v1742, %v941
      %v1775 = vadd.f32 %v1743, %v941
      %v1776 = vadd.f32 %v1744, %v946
      %v1777 = vadd.f32 %v1745, %v946
      %v1778 = vadd.f32 %v1746, %v951
      %v1779 = vadd.f32 %v1747, %v951
      %v1780 = vadd.f32 %v1748, %v956
      %v1781 = vadd.f32 %v1749, %v956
      %v1782 = vadd.f32 %v1750, %v961
      %v1783 = vadd.f32 %v1751, %v961
      %v1784 = vadd.f32 %v1752, %v966
      %v1785 = vadd.f32 %v1753, %v966
      %v1786 = vadd.f32 %v1754, %v971
      %v1787 = vadd.f32 %v1755, %v971
      %v1788 = vadd.f32 %v1756, %v976
      %v1789 = vadd.f32 %v1757, %v976
      %v1790 = vadd.f32 %v1758, %v981
      %v1791 = vadd.f32 %v1759, %v981
      %v1792 = vadd.f32 %v1760, %v986
      %v1793 = vadd.f32 %v1761, %v986
      %v1794 = vsub.f32 0.0, %v1762
      %v1795 = vsub.f32 0.0, %v1763
      %v1796 = vsub.f32 0.0, %v1764
      %v1797 = vsub.f32 0.0, %v1765
      %v1798 = vsub.f32 0.0, %v1766
      %v1799 = vsub.f32 0.0, %v1767
      %v1800 = vsub.f32 0.0, %v1768
      %v1801 = vsub.f32 0.0, %v1769
      %v1802 = vsub.f32 0.0, %v1770
      %v1803 = vsub.f32 0.0, %v1771
      %v1804 = vsub.f32 0.0, %v1772
      %v1805 = vsub.f32 0.0, %v1773
      %v1806 = vsub.f32 0.0, %v1774
      %v1807 = vsub.f32 0.0, %v1775
      %v1808 = vsub.f32 0.0, %v1776
      %v1809 = vsub.f32 0.0, %v1777
      %v1810 = vsub.f32 0.0, %v1778
      %v1811 = vsub.f32 0.0, %v1779
      %v1812 = vsub.f32 0.0, %v1780
      %v1813 = vsub.f32 0.0, %v1781
      %v1814 = vsub.f32 0.0, %v1782
      %v1815 = vsub.f32 0.0, %v1783
      %v1816 = vsub.f32 0.0, %v1784
      %v1817 = vsub.f32 0.0, %v1785
      %v1818 = vsub.f32 0.0, %v1786
      %v1819 = vsub.f32 0.0, %v1787
      %v1820 = vsub.f32 0.0, %v1788
      %v1821 = vsub.f32 0.0, %v1789
      %v1822 = vsub.f32 0.0, %v1790
      %v1823 = vsub.f32 0.0, %v1791
      %v1824 = vsub.f32 0.0, %v1792
      %v1825 = vsub.f32 0.0, %v1793
      %v1826 = vmul.f32 %v1794, 1.442695
      %v1827 = vpow.pop %v1826
      %v1828 = vmul.f32 %v1795, 1.442695
      %v1829 = vpow.pop %v1828
      %v1830 = vmul.f32 %v1796, 1.442695
      %v1831 = vpow.pop %v1830
      %v1832 = vmul.f32 %v1797, 1.442695
      %v1833 = vpow.pop %v1832
      %v1834 = vmul.f32 %v1798, 1.442695
      %v1835 = vpow.pop %v1834
      %v1836 = vmul.f32 %v1799, 1.442695
      %v1837 = vpow.pop %v1836
      %v1838 = vmul.f32 %v1800, 1.442695
      %v1839 = vpow.pop %v1838
      %v1840 = vmul.f32 %v1801, 1.442695
      %v1841 = vpow.pop %v1840
      %v1842 = vmul.f32 %v1802, 1.442695
      %v1843 = vpow.pop %v1842
      %v1844 = vmul.f32 %v1803, 1.442695
      %v1845 = vpow.pop %v1844
      %v1846 = vmul.f32 %v1804, 1.442695
      %v1847 = vpow.pop %v1846
      %v1848 = vmul.f32 %v1805, 1.442695
      %v1849 = vpow.pop %v1848
      %v1850 = vmul.f32 %v1806, 1.442695
      %v1851 = vpow.pop %v1850
      %v1852 = vmul.f32 %v1807, 1.442695
      %v1853 = vpow.pop %v1852
      %v1854 = vmul.f32 %v1808, 1.442695
      %v1855 = vpow.pop %v1854
      %v1856 = vmul.f32 %v1809, 1.442695
      %v1857 = vpow.pop %v1856
      %v1858 = vmul.f32 %v1810, 1.442695
      %v1859 = vpow.pop %v1858
      %v1860 = vmul.f32 %v1811, 1.442695
      %v1861 = vpow.pop %v1860
      %v1862 = vmul.f32 %v1812, 1.442695
      %v1863 = vpow.pop %v1862
      %v1864 = vmul.f32 %v1813, 1.442695
      %v1865 = vpow.pop %v1864
      %v1866 = vmul.f32 %v1814, 1.442695
      %v1867 = vpow.pop %v1866
      %v1868 = vmul.f32 %v1815, 1.442695
      %v1869 = vpow.pop %v1868
      %v1870 = vmul.f32 %v1816, 1.442695
      %v1871 = vpow.pop %v1870
      %v1872 = vmul.f32 %v1817, 1.442695
      %v1873 = vpow.pop %v1872
      %v1874 = vmul.f32 %v1818, 1.442695
      %v1875 = vpow.pop %v1874
      %v1876 = vmul.f32 %v1819, 1.442695
      %v1877 = vpow.pop %v1876
      %v1878 = vmul.f32 %v1820, 1.442695
      %v1879 = vpow.pop %v1878
      %v1880 = vmul.f32 %v1821, 1.442695
      %v1881 = vpow.pop %v1880
      %v1882 = vmul.f32 %v1822, 1.442695
      %v1883 = vpow.pop %v1882
      %v1884 = vmul.f32 %v1823, 1.442695
      %v1885 = vpow.pop %v1884
      %v1886 = vmul.f32 %v1824, 1.442695
      %v1887 = vpow.pop %v1886
      %v1888 = vmul.f32 %v1825, 1.442695
      %v1889 = vpow.pop %v1888
      %v1890 = vadd.f32 %v1827, 1.0
      %v1891 = vadd.f32 %v1829, 1.0
      %v1892 = vadd.f32 %v1831, 1.0
      %v1893 = vadd.f32 %v1833, 1.0
      %v1894 = vadd.f32 %v1835, 1.0
      %v1895 = vadd.f32 %v1837, 1.0
      %v1896 = vadd.f32 %v1839, 1.0
      %v1897 = vadd.f32 %v1841, 1.0
      %v1898 = vadd.f32 %v1843, 1.0
      %v1899 = vadd.f32 %v1845, 1.0
      %v1900 = vadd.f32 %v1847, 1.0
      %v1901 = vadd.f32 %v1849, 1.0
      %v1902 = vadd.f32 %v1851, 1.0
      %v1903 = vadd.f32 %v1853, 1.0
      %v1904 = vadd.f32 %v1855, 1.0
      %v1905 = vadd.f32 %v1857, 1.0
      %v1906 = vadd.f32 %v1859, 1.0
      %v1907 = vadd.f32 %v1861, 1.0
      %v1908 = vadd.f32 %v1863, 1.0
      %v1909 = vadd.f32 %v1865, 1.0
      %v1910 = vadd.f32 %v1867, 1.0
      %v1911 = vadd.f32 %v1869, 1.0
      %v1912 = vadd.f32 %v1871, 1.0
      %v1913 = vadd.f32 %v1873, 1.0
      %v1914 = vadd.f32 %v1875, 1.0
      %v1915 = vadd.f32 %v1877, 1.0
      %v1916 = vadd.f32 %v1879, 1.0
      %v1917 = vadd.f32 %v1881, 1.0
      %v1918 = vadd.f32 %v1883, 1.0
      %v1919 = vadd.f32 %v1885, 1.0
      %v1920 = vadd.f32 %v1887, 1.0
      %v1921 = vadd.f32 %v1889, 1.0
      %v1922 = vrcp.pop %v1890
      %v1923 = vrcp.pop %v1891
      %v1924 = vrcp.pop %v1892
      %v1925 = vrcp.pop %v1893
      %v1926 = vrcp.pop %v1894
      %v1927 = vrcp.pop %v1895
      %v1928 = vrcp.pop %v1896
      %v1929 = vrcp.pop %v1897
      %v1930 = vrcp.pop %v1898
      %v1931 = vrcp.pop %v1899
      %v1932 = vrcp.pop %v1900
      %v1933 = vrcp.pop %v1901
      %v1934 = vrcp.pop %v1902
      %v1935 = vrcp.pop %v1903
      %v1936 = vrcp.pop %v1904
      %v1937 = vrcp.pop %v1905
      %v1938 = vrcp.pop %v1906
      %v1939 = vrcp.pop %v1907
      %v1940 = vrcp.pop %v1908
      %v1941 = vrcp.pop %v1909
      %v1942 = vrcp.pop %v1910
      %v1943 = vrcp.pop %v1911
      %v1944 = vrcp.pop %v1912
      %v1945 = vrcp.pop %v1913
      %v1946 = vrcp.pop %v1914
      %v1947 = vrcp.pop %v1915
      %v1948 = vrcp.pop %v1916
      %v1949 = vrcp.pop %v1917
      %v1950 = vrcp.pop %v1918
      %v1951 = vrcp.pop %v1919
      %v1952 = vrcp.pop %v1920
      %v1953 = vrcp.pop %v1921
      %v1954 = vmul.f32 %v1762, %v1922
      %v1955 = vmul.f32 %v1763, %v1923
      %v1956 = vmul.f32 %v1764, %v1924
      %v1957 = vmul.f32 %v1765, %v1925
      %v1958 = vmul.f32 %v1766, %v1926
      %v1959 = vmul.f32 %v1767, %v1927
      %v1960 = vmul.f32 %v1768, %v1928
      %v1961 = vmul.f32 %v1769, %v1929
      %v1962 = vmul.f32 %v1770, %v1930
      %v1963 = vmul.f32 %v1771, %v1931
      %v1964 = vmul.f32 %v1772, %v1932
      %v1965 = vmul.f32 %v1773, %v1933
      %v1966 = vmul.f32 %v1774, %v1934
      %v1967 = vmul.f32 %v1775, %v1935
      %v1968 = vmul.f32 %v1776, %v1936
      %v1969 = vmul.f32 %v1777, %v1937
      %v1970 = vmul.f32 %v1778, %v1938
      %v1971 = vmul.f32 %v1779, %v1939
      %v1972 = vmul.f32 %v1780, %v1940
      %v1973 = vmul.f32 %v1781, %v1941
      %v1974 = vmul.f32 %v1782, %v1942
      %v1975 = vmul.f32 %v1783, %v1943
      %v1976 = vmul.f32 %v1784, %v1944
      %v1977 = vmul.f32 %v1785, %v1945
      %v1978 = vmul.f32 %v1786, %v1946
      %v1979 = vmul.f32 %v1787, %v1947
      %v1980 = vmul.f32 %v1788, %v1948
      %v1981 = vmul.f32 %v1789, %v1949
      %v1982 = vmul.f32 %v1790, %v1950
      %v1983 = vmul.f32 %v1791, %v1951
      %v1984 = vmul.f32 %v1792, %v1952
      %v1985 = vmul.f32 %v1793, %v1953
      %v1986 = vpack.c.bf16 %v1956, %v1954
      %v1987 = vpack.c.bf16 %v1957, %v1955
      %v1988 = vpack.c.bf16 %v1960, %v1958
      %v1989 = vpack.c.bf16 %v1961, %v1959
      %v1990 = vpack.c.bf16 %v1964, %v1962
      %v1991 = vpack.c.bf16 %v1965, %v1963
      %v1992 = vpack.c.bf16 %v1968, %v1966
      %v1993 = vpack.c.bf16 %v1969, %v1967
      %v1994 = vpack.c.bf16 %v1972, %v1970
      %v1995 = vpack.c.bf16 %v1973, %v1971
      %v1996 = vpack.c.bf16 %v1976, %v1974
      %v1997 = vpack.c.bf16 %v1977, %v1975
      %v1998 = vpack.c.bf16 %v1980, %v1978
      %v1999 = vpack.c.bf16 %v1981, %v1979
      %v2000 = vpack.c.bf16 %v1984, %v1982
      %v2001 = vpack.c.bf16 %v1985, %v1983
      %2002 = vmatprep.subr.bf16.mxu0 %v1987
      %2003 = vmatpush1.bf16.msra.mxu0 %v1986
      %2004 = vmatprep.subr.bf16.mxu0 %v1989
      %2005 = vmatpush1.bf16.msra.mxu0 %v1988
      %2006 = vmatprep.subr.bf16.mxu0 %v1991
      %2007 = vmatpush1.bf16.msra.mxu0 %v1990
      %2008 = vmatprep.subr.bf16.mxu0 %v1993
      %2009 = vmatpush1.bf16.msra.mxu0 %v1992
      %2010 = vmatprep.subr.bf16.mxu0 %v1995
      %2011 = vmatpush1.bf16.msra.mxu0 %v1994
      %2012 = vmatprep.subr.bf16.mxu0 %v1997
      %2013 = vmatpush1.bf16.msra.mxu0 %v1996
      %2014 = vmatprep.subr.bf16.mxu0 %v1999
      %2015 = vmatpush1.bf16.msra.mxu0 %v1998
      %2016 = vmatprep.subr.bf16.mxu0 %v2001
      %2017 = vmatpush1.bf16.msra.mxu0 %v2000
      %2018 = vmatprep.subr.bf16.mxu0 0
      %2019 = vmatpush1.bf16.msra.mxu0 0
      %2020 = vmatprep.subr.bf16.mxu0 0
      %2021 = vmatpush1.bf16.msra.mxu0 0
      %2022 = vmatprep.subr.bf16.mxu0 0
      %2023 = vmatpush1.bf16.msra.mxu0 0
      %2024 = vmatprep.subr.bf16.mxu0 0
      %2025 = vmatpush1.bf16.msra.mxu0 0
      %2026 = vmatprep.subr.bf16.mxu0 0
      %2027 = vmatpush1.bf16.msra.mxu0 0
      %2028 = vmatprep.subr.bf16.mxu0 0
      %2029 = vmatpush1.bf16.msra.mxu0 0
      %2030 = vmatprep.subr.bf16.mxu0 0
      %2031 = vmatpush1.bf16.msra.mxu0 0
      %2032 = vmatprep.subr.bf16.mxu0 0
      %2033 = vmatpush1.bf16.msra.mxu0 0
      %2034 = vmatprep.mubr.bf16.mxu0 0
      %2035 = vmatmul.mubr.bf16.gmra.mrb[0].mxu0 %v1232
      %v2036 = vpop.f32.mrb[0].mxu0
      %v2037 = vadd.f32 0.0, %v2036
      %v2038 = vpop.f32.mrb[0].mxu0
      %v2039 = vadd.f32 0.0, %v2038
      %v2040 = vpop.f32.mrb[0].mxu0
      %v2041 = vadd.f32 0.0, %v2040
      %v2042 = vpop.f32.mrb[0].mxu0
      %v2043 = vadd.f32 0.0, %v2042
      %2044 = vdwg.mxu0
      %v2045 = vsub.f32 0.0, %v2037
      %v2046 = vsub.f32 0.0, %v2039
      %v2047 = vsub.f32 0.0, %v2041
      %v2048 = vsub.f32 0.0, %v2043
      %v2049 = vmul.f32 %v2045, 1.442695
      %v2050 = vpow.pop %v2049
      %v2051 = vmul.f32 %v2046, 1.442695
      %v2052 = vpow.pop %v2051
      %v2053 = vmul.f32 %v2047, 1.442695
      %v2054 = vpow.pop %v2053
      %v2055 = vmul.f32 %v2048, 1.442695
      %v2056 = vpow.pop %v2055
      %v2057 = vadd.f32 %v2050, 1.0
      %v2058 = vadd.f32 %v2052, 1.0
      %v2059 = vadd.f32 %v2054, 1.0
      %v2060 = vadd.f32 %v2056, 1.0
      %v2061 = vrcp.pop %v2057
      %v2062 = vrcp.pop %v2058
      %v2063 = vrcp.pop %v2059
      %v2064 = vrcp.pop %v2060
      %s2065 = scalar_lea.vmem %s231, 32
      %2066 = vst [vmem:[%s2065] sm:$0xff] %v2061
      %2067 = vst [vmem:[%s2065 + $0x8] sm:$0xff] %v2062
      %2068 = vst [vmem:[%s2065 + $0x10] sm:$0xff] %v2063
      %2069 = vst [vmem:[%s2065 + $0x18] sm:$0xff] %v2064
      %s2070 = scalar_lea.vmem %s224, 64
      %v2071 = vld [vmem:[%s2070] sm:$0xff]
      %v2072 = vld [vmem:[%s2070 + $0x8] sm:$0xff]
      %v2073 = vld [vmem:[%s2070 + $0x10] sm:$0xff]
      %v2074 = vld [vmem:[%s2070 + $0x18] sm:$0xff]
      %v2075 = vunpack.c.l.bf16 %v2071
      %v2076 = vunpack.c.h.bf16 %v2071
      %v2077 = vunpack.c.l.bf16 %v2072
      %v2078 = vunpack.c.h.bf16 %v2072
      %v2079 = vunpack.c.l.bf16 %v2073
      %v2080 = vunpack.c.h.bf16 %v2073
      %v2081 = vunpack.c.l.bf16 %v2074
      %v2082 = vunpack.c.h.bf16 %v2074
      %2083 = vrot.lane.b32.xlu0 %v2075, 127
      %v2084 = vpop.permute.xlu0 %2083
      %2085 = vrot.lane.b32.xlu0 %v2077, 127
      %v2086 = vpop.permute.xlu0 %2085
      %2087 = vrot.lane.b32.xlu0 %v2079, 127
      %v2088 = vpop.permute.xlu0 %2087
      %2089 = vrot.lane.b32.xlu0 %v2081, 127
      %v2090 = vpop.permute.xlu0 %2089
      %2091 = vrot.lane.b32.xlu0 %v2076, 127
      %v2092 = vpop.permute.xlu0 %2091
      %2093 = vrot.lane.b32.xlu0 %v2078, 127
      %v2094 = vpop.permute.xlu0 %2093
      %2095 = vrot.lane.b32.xlu0 %v2080, 127
      %v2096 = vpop.permute.xlu0 %2095
      %2097 = vrot.lane.b32.xlu0 %v2082, 127
      %v2098 = vpop.permute.xlu0 %2097
      %v2099 = vsel %vm343, %v2084, %v2092
      %v2100 = vsel %vm343, %v2086, %v2094
      %v2101 = vsel %vm343, %v2088, %v2096
      %v2102 = vsel %vm343, %v2090, %v2098
      %v2103 = vsel %vm343, %v2092, %v2084
      %v2104 = vsel %vm343, %v2094, %v2086
      %v2105 = vsel %vm343, %v2096, %v2088
      %v2106 = vsel %vm343, %v2098, %v2090
      %v2107 = vsel %vm261, %v2099, 0.0
      %v2108 = vsel %vm262, %v2103, 0.0
      %v2109 = vsel %vm261, %v2100, 0.0
      %v2110 = vsel %vm262, %v2104, 0.0
      %v2111 = vsel %vm261, %v2101, 0.0
      %v2112 = vsel %vm262, %v2105, 0.0
      %v2113 = vsel %vm261, %v2102, 0.0
      %v2114 = vsel %vm262, %v2106, 0.0
      %2115 = vrot.lane.b32.xlu0 %v2075, 112
      %v2116 = vpop.permute.xlu0 %2115
      %2117 = vrot.lane.b32.xlu0 %v2077, 112
      %v2118 = vpop.permute.xlu0 %2117
      %2119 = vrot.lane.b32.xlu0 %v2079, 112
      %v2120 = vpop.permute.xlu0 %2119
      %2121 = vrot.lane.b32.xlu0 %v2081, 112
      %v2122 = vpop.permute.xlu0 %2121
      %2123 = vrot.lane.b32.xlu0 %v2076, 112
      %v2124 = vpop.permute.xlu0 %2123
      %2125 = vrot.lane.b32.xlu0 %v2078, 112
      %v2126 = vpop.permute.xlu0 %2125
      %2127 = vrot.lane.b32.xlu0 %v2080, 112
      %v2128 = vpop.permute.xlu0 %2127
      %2129 = vrot.lane.b32.xlu0 %v2082, 112
      %v2130 = vpop.permute.xlu0 %2129
      %v2131 = vsel %vm376, %v2116, %v2124
      %v2132 = vsel %vm376, %v2118, %v2126
      %v2133 = vsel %vm376, %v2120, %v2128
      %v2134 = vsel %vm376, %v2122, %v2130
      %v2135 = vsel %vm376, %v2124, %v2116
      %v2136 = vsel %vm376, %v2126, %v2118
      %v2137 = vsel %vm376, %v2128, %v2120
      %v2138 = vsel %vm376, %v2130, %v2122
      %v2139 = vsel %vm263, %v2131, 0.0
      %v2140 = vsel %vm264, %v2135, 0.0
      %v2141 = vsel %vm263, %v2132, 0.0
      %v2142 = vsel %vm264, %v2136, 0.0
      %v2143 = vsel %vm263, %v2133, 0.0
      %v2144 = vsel %vm264, %v2137, 0.0
      %v2145 = vsel %vm263, %v2134, 0.0
      %v2146 = vsel %vm264, %v2138, 0.0
      %2147 = vrot.lane.b32.xlu0 %v2075, 111
      %v2148 = vpop.permute.xlu0 %2147
      %2149 = vrot.lane.b32.xlu0 %v2077, 111
      %v2150 = vpop.permute.xlu0 %2149
      %2151 = vrot.lane.b32.xlu0 %v2079, 111
      %v2152 = vpop.permute.xlu0 %2151
      %2153 = vrot.lane.b32.xlu0 %v2081, 111
      %v2154 = vpop.permute.xlu0 %2153
      %2155 = vrot.lane.b32.xlu0 %v2076, 111
      %v2156 = vpop.permute.xlu0 %2155
      %2157 = vrot.lane.b32.xlu0 %v2078, 111
      %v2158 = vpop.permute.xlu0 %2157
      %2159 = vrot.lane.b32.xlu0 %v2080, 111
      %v2160 = vpop.permute.xlu0 %2159
      %2161 = vrot.lane.b32.xlu0 %v2082, 111
      %v2162 = vpop.permute.xlu0 %2161
      %v2163 = vsel %vm411, %v2148, %v2156
      %v2164 = vsel %vm411, %v2150, %v2158
      %v2165 = vsel %vm411, %v2152, %v2160
      %v2166 = vsel %vm411, %v2154, %v2162
      %v2167 = vsel %vm411, %v2156, %v2148
      %v2168 = vsel %vm411, %v2158, %v2150
      %v2169 = vsel %vm411, %v2160, %v2152
      %v2170 = vsel %vm411, %v2162, %v2154
      %v2171 = vsel %vm393, %v2163, 0.0
      %v2172 = vsel %vm394, %v2167, 0.0
      %v2173 = vsel %vm393, %v2164, 0.0
      %v2174 = vsel %vm394, %v2168, 0.0
      %v2175 = vsel %vm393, %v2165, 0.0
      %v2176 = vsel %vm394, %v2169, 0.0
      %v2177 = vsel %vm393, %v2166, 0.0
      %v2178 = vsel %vm394, %v2170, 0.0
      %v2179 = vpack.c.bf16 %v2077, %v2075
      %v2180 = vpack.c.bf16 %v2078, %v2076
      %v2181 = vpack.c.bf16 %v2081, %v2079
      %v2182 = vpack.c.bf16 %v2082, %v2080
      %v2183 = vpack.c.bf16 %v2109, %v2107
      %v2184 = vpack.c.bf16 %v2110, %v2108
      %v2185 = vpack.c.bf16 %v2113, %v2111
      %v2186 = vpack.c.bf16 %v2114, %v2112
      %v2187 = vpack.c.bf16 %v2141, %v2139
      %v2188 = vpack.c.bf16 %v2142, %v2140
      %v2189 = vpack.c.bf16 %v2145, %v2143
      %v2190 = vpack.c.bf16 %v2146, %v2144
      %v2191 = vpack.c.bf16 %v2173, %v2171
      %v2192 = vpack.c.bf16 %v2174, %v2172
      %v2193 = vpack.c.bf16 %v2177, %v2175
      %v2194 = vpack.c.bf16 %v2178, %v2176
      %2195 = vmatprep.subr.bf16.mxu0 %v2180
      %2196 = vmatpush1.bf16.msra.mxu0 %v2179
      %2197 = vmatprep.subr.bf16.mxu0 %v2182
      %2198 = vmatpush1.bf16.msra.mxu0 %v2181
      %2199 = vmatprep.subr.bf16.mxu0 %v2184
      %2200 = vmatpush1.bf16.msra.mxu0 %v2183
      %2201 = vmatprep.subr.bf16.mxu0 %v2186
      %2202 = vmatpush1.bf16.msra.mxu0 %v2185
      %2203 = vmatprep.subr.bf16.mxu0 %v2188
      %2204 = vmatpush1.bf16.msra.mxu0 %v2187
      %2205 = vmatprep.subr.bf16.mxu0 %v2190
      %2206 = vmatpush1.bf16.msra.mxu0 %v2189
      %2207 = vmatprep.subr.bf16.mxu0 %v2192
      %2208 = vmatpush1.bf16.msra.mxu0 %v2191
      %2209 = vmatprep.subr.bf16.mxu0 %v2194
      %2210 = vmatpush1.bf16.msra.mxu0 %v2193
      %2211 = vmatprep.subr.bf16.mxu0 0
      %2212 = vmatpush1.bf16.msra.mxu0 0
      %2213 = vmatprep.subr.bf16.mxu0 0
      %2214 = vmatpush1.bf16.msra.mxu0 0
      %2215 = vmatprep.subr.bf16.mxu0 0
      %2216 = vmatpush1.bf16.msra.mxu0 0
      %2217 = vmatprep.subr.bf16.mxu0 0
      %2218 = vmatpush1.bf16.msra.mxu0 0
      %2219 = vmatprep.subr.bf16.mxu0 0
      %2220 = vmatpush1.bf16.msra.mxu0 0
      %2221 = vmatprep.subr.bf16.mxu0 0
      %2222 = vmatpush1.bf16.msra.mxu0 0
      %2223 = vmatprep.subr.bf16.mxu0 0
      %2224 = vmatpush1.bf16.msra.mxu0 0
      %2225 = vmatprep.subr.bf16.mxu0 0
      %2226 = vmatpush1.bf16.msra.mxu0 0
      %2227 = vmatprep.mubr.bf16.mxu0 0
      %2228 = vmatmul.mubr.bf16.gmra.mrb[0].mxu0 %v476
      %v2229 = vpop.f32.mrb[0].mxu0
      %v2230 = vadd.f32 0.0, %v2229
      %v2231 = vpop.f32.mrb[0].mxu0
      %v2232 = vadd.f32 0.0, %v2231
      %v2233 = vpop.f32.mrb[0].mxu0
      %v2234 = vadd.f32 0.0, %v2233
      %v2235 = vpop.f32.mrb[0].mxu0
      %v2236 = vadd.f32 0.0, %v2235
      %2237 = vmatprep.mubr.bf16.mxu0 0
      %2238 = vmatmul.mubr.bf16.gmra.mrb[0].mxu0 %v477
      %v2239 = vpop.f32.mrb[0].mxu0
      %v2240 = vadd.f32 0.0, %v2239
      %v2241 = vpop.f32.mrb[0].mxu0
      %v2242 = vadd.f32 0.0, %v2241
      %v2243 = vpop.f32.mrb[0].mxu0
      %v2244 = vadd.f32 0.0, %v2243
      %v2245 = vpop.f32.mrb[0].mxu0
      %v2246 = vadd.f32 0.0, %v2245
      %2247 = vmatprep.mubr.bf16.mxu0 0
      %2248 = vmatmul.mubr.bf16.gmra.mrb[0].mxu0 %v478
      %v2249 = vpop.f32.mrb[0].mxu0
      %v2250 = vadd.f32 0.0, %v2249
      %v2251 = vpop.f32.mrb[0].mxu0
      %v2252 = vadd.f32 0.0, %v2251
      %v2253 = vpop.f32.mrb[0].mxu0
      %v2254 = vadd.f32 0.0, %v2253
      %v2255 = vpop.f32.mrb[0].mxu0
      %v2256 = vadd.f32 0.0, %v2255
      %2257 = vmatprep.mubr.bf16.mxu0 0
      %2258 = vmatmul.mubr.bf16.gmra.mrb[0].mxu0 %v479
      %v2259 = vpop.f32.mrb[0].mxu0
      %v2260 = vadd.f32 0.0, %v2259
      %v2261 = vpop.f32.mrb[0].mxu0
      %v2262 = vadd.f32 0.0, %v2261
      %v2263 = vpop.f32.mrb[0].mxu0
      %v2264 = vadd.f32 0.0, %v2263
      %v2265 = vpop.f32.mrb[0].mxu0
      %v2266 = vadd.f32 0.0, %v2265
      %2267 = vmatprep.mubr.bf16.mxu0 0
      %2268 = vmatmul.mubr.bf16.gmra.mrb[0].mxu0 %v480
      %v2269 = vpop.f32.mrb[0].mxu0
      %v2270 = vadd.f32 0.0, %v2269
      %v2271 = vpop.f32.mrb[0].mxu0
      %v2272 = vadd.f32 0.0, %v2271
      %v2273 = vpop.f32.mrb[0].mxu0
      %v2274 = vadd.f32 0.0, %v2273
      %v2275 = vpop.f32.mrb[0].mxu0
      %v2276 = vadd.f32 0.0, %v2275
      %2277 = vmatprep.mubr.bf16.mxu0 0
      %2278 = vmatmul.mubr.bf16.gmra.mrb[0].mxu0 %v481
      %v2279 = vpop.f32.mrb[0].mxu0
      %v2280 = vadd.f32 0.0, %v2279
      %v2281 = vpop.f32.mrb[0].mxu0
      %v2282 = vadd.f32 0.0, %v2281
      %v2283 = vpop.f32.mrb[0].mxu0
      %v2284 = vadd.f32 0.0, %v2283
      %v2285 = vpop.f32.mrb[0].mxu0
      %v2286 = vadd.f32 0.0, %v2285
      %2287 = vmatprep.mubr.bf16.mxu0 0
      %2288 = vmatmul.mubr.bf16.gmra.mrb[0].mxu0 %v482
      %v2289 = vpop.f32.mrb[0].mxu0
      %v2290 = vadd.f32 0.0, %v2289
      %v2291 = vpop.f32.mrb[0].mxu0
      %v2292 = vadd.f32 0.0, %v2291
      %v2293 = vpop.f32.mrb[0].mxu0
      %v2294 = vadd.f32 0.0, %v2293
      %v2295 = vpop.f32.mrb[0].mxu0
      %v2296 = vadd.f32 0.0, %v2295
      %2297 = vmatprep.mubr.bf16.mxu0 0
      %2298 = vmatmul.mubr.bf16.gmra.mrb[0].mxu0 %v483
      %v2299 = vpop.f32.mrb[0].mxu0
      %v2300 = vadd.f32 0.0, %v2299
      %v2301 = vpop.f32.mrb[0].mxu0
      %v2302 = vadd.f32 0.0, %v2301
      %v2303 = vpop.f32.mrb[0].mxu0
      %v2304 = vadd.f32 0.0, %v2303
      %v2305 = vpop.f32.mrb[0].mxu0
      %v2306 = vadd.f32 0.0, %v2305
      %2307 = vdwg.mxu0
      %v2308 = vadd.f32 %v2230, %v2232
      %v2309 = vadd.f32 %v2308, %v2234
      %v2310 = vadd.f32 %v2309, %v2236
      %v2311 = vadd.f32 %v2310, %v2240
      %v2312 = vadd.f32 %v2311, %v2242
      %v2313 = vadd.f32 %v2312, %v2244
      %v2314 = vadd.f32 %v2313, %v2246
      %v2315 = vadd.f32 %v2314, %v2250
      %v2316 = vadd.f32 %v2315, %v2252
      %v2317 = vadd.f32 %v2316, %v2254
      %v2318 = vadd.f32 %v2317, %v2256
      %v2319 = vadd.f32 %v2318, %v2260
      %v2320 = vadd.f32 %v2319, %v2262
      %v2321 = vadd.f32 %v2320, %v2264
      %v2322 = vadd.f32 %v2321, %v2266
      %v2323 = vadd.f32 %v2322, %v2270
      %v2324 = vadd.f32 %v2323, %v2272
      %v2325 = vadd.f32 %v2324, %v2274
      %v2326 = vadd.f32 %v2325, %v2276
      %v2327 = vadd.f32 %v2326, %v2280
      %v2328 = vadd.f32 %v2327, %v2282
      %v2329 = vadd.f32 %v2328, %v2284
      %v2330 = vadd.f32 %v2329, %v2286
      %v2331 = vadd.f32 %v2330, %v2290
      %v2332 = vadd.f32 %v2331, %v2292
      %v2333 = vadd.f32 %v2332, %v2294
      %v2334 = vadd.f32 %v2333, %v2296
      %v2335 = vadd.f32 %v2334, %v2300
      %v2336 = vadd.f32 %v2335, %v2302
      %v2337 = vadd.f32 %v2336, %v2304
      %v2338 = vadd.f32 %v2337, %v2306
      %2339 = vadd.xlane.f32.xlu0 %v2338
      %v2340 = vpop.xlane.xlu0 %2339
      %v2341 = vrot.slane %v2340, 4
      %v2342 = vadd.f32 %v2340, %v2341
      %v2343 = vrot.slane %v2342, 2
      %v2344 = vadd.f32 %v2342, %v2343
      %v2345 = vrot.slane %v2344, 1
      %v2346 = vadd.f32 %v2344, %v2345
      %s2347 = vtos %v2346
      %v2348 = vmul.f32 %v2230, %v2230
      %v2349 = vmul.f32 %v2232, %v2232
      %v2350 = vmul.f32 %v2234, %v2234
      %v2351 = vmul.f32 %v2236, %v2236
      %v2352 = vmul.f32 %v2240, %v2240
      %v2353 = vmul.f32 %v2242, %v2242
      %v2354 = vmul.f32 %v2244, %v2244
      %v2355 = vmul.f32 %v2246, %v2246
      %v2356 = vmul.f32 %v2250, %v2250
      %v2357 = vmul.f32 %v2252, %v2252
      %v2358 = vmul.f32 %v2254, %v2254
      %v2359 = vmul.f32 %v2256, %v2256
      %v2360 = vmul.f32 %v2260, %v2260
      %v2361 = vmul.f32 %v2262, %v2262
      %v2362 = vmul.f32 %v2264, %v2264
      %v2363 = vmul.f32 %v2266, %v2266
      %v2364 = vmul.f32 %v2270, %v2270
      %v2365 = vmul.f32 %v2272, %v2272
      %v2366 = vmul.f32 %v2274, %v2274
      %v2367 = vmul.f32 %v2276, %v2276
      %v2368 = vmul.f32 %v2280, %v2280
      %v2369 = vmul.f32 %v2282, %v2282
      %v2370 = vmul.f32 %v2284, %v2284
      %v2371 = vmul.f32 %v2286, %v2286
      %v2372 = vmul.f32 %v2290, %v2290
      %v2373 = vmul.f32 %v2292, %v2292
      %v2374 = vmul.f32 %v2294, %v2294
      %v2375 = vmul.f32 %v2296, %v2296
      %v2376 = vmul.f32 %v2300, %v2300
      %v2377 = vmul.f32 %v2302, %v2302
      %v2378 = vmul.f32 %v2304, %v2304
      %v2379 = vmul.f32 %v2306, %v2306
      %v2380 = vadd.f32 %v2348, %v2349
      %v2381 = vadd.f32 %v2380, %v2350
      %v2382 = vadd.f32 %v2381, %v2351
      %v2383 = vadd.f32 %v2382, %v2352
      %v2384 = vadd.f32 %v2383, %v2353
      %v2385 = vadd.f32 %v2384, %v2354
      %v2386 = vadd.f32 %v2385, %v2355
      %v2387 = vadd.f32 %v2386, %v2356
      %v2388 = vadd.f32 %v2387, %v2357
      %v2389 = vadd.f32 %v2388, %v2358
      %v2390 = vadd.f32 %v2389, %v2359
      %v2391 = vadd.f32 %v2390, %v2360
      %v2392 = vadd.f32 %v2391, %v2361
      %v2393 = vadd.f32 %v2392, %v2362
      %v2394 = vadd.f32 %v2393, %v2363
      %v2395 = vadd.f32 %v2394, %v2364
      %v2396 = vadd.f32 %v2395, %v2365
      %v2397 = vadd.f32 %v2396, %v2366
      %v2398 = vadd.f32 %v2397, %v2367
      %v2399 = vadd.f32 %v2398, %v2368
      %v2400 = vadd.f32 %v2399, %v2369
      %v2401 = vadd.f32 %v2400, %v2370
      %v2402 = vadd.f32 %v2401, %v2371
      %v2403 = vadd.f32 %v2402, %v2372
      %v2404 = vadd.f32 %v2403, %v2373
      %v2405 = vadd.f32 %v2404, %v2374
      %v2406 = vadd.f32 %v2405, %v2375
      %v2407 = vadd.f32 %v2406, %v2376
      %v2408 = vadd.f32 %v2407, %v2377
      %v2409 = vadd.f32 %v2408, %v2378
      %v2410 = vadd.f32 %v2409, %v2379
      %2411 = vadd.xlane.f32.xlu0 %v2410
      %v2412 = vpop.xlane.xlu0 %2411
      %v2413 = vrot.slane %v2412, 4
      %v2414 = vadd.f32 %v2412, %v2413
      %v2415 = vrot.slane %v2414, 2
      %v2416 = vadd.f32 %v2414, %v2415
      %v2417 = vrot.slane %v2416, 1
      %v2418 = vadd.f32 %v2416, %v2417
      %s2419 = vtos %v2418
      %v2420 = vrcp.pop 32768.0
      %s2421 = vtos %v2420
      %s2422 = smul.f32 %s2347, %s2421
      %v2423 = vrcp.pop 32768.0
      %s2424 = vtos %v2423
      %s2425 = smul.f32 %s2419, %s2424
      %s2426 = smul.f32 %s2422, %s2422
      %s2427 = ssub.f32 %s2425, %s2426
      %s2428 = smax.f32 %s2427, 0.0
      %v2429 = vstv %s2422
      %v2430 = vsub.f32 %v2230, %v2429
      %v2431 = vsub.f32 %v2232, %v2429
      %v2432 = vsub.f32 %v2234, %v2429
      %v2433 = vsub.f32 %v2236, %v2429
      %v2434 = vsub.f32 %v2240, %v2429
      %v2435 = vsub.f32 %v2242, %v2429
      %v2436 = vsub.f32 %v2244, %v2429
      %v2437 = vsub.f32 %v2246, %v2429
      %v2438 = vsub.f32 %v2250, %v2429
      %v2439 = vsub.f32 %v2252, %v2429
      %v2440 = vsub.f32 %v2254, %v2429
      %v2441 = vsub.f32 %v2256, %v2429
      %v2442 = vsub.f32 %v2260, %v2429
      %v2443 = vsub.f32 %v2262, %v2429
      %v2444 = vsub.f32 %v2264, %v2429
      %v2445 = vsub.f32 %v2266, %v2429
      %v2446 = vsub.f32 %v2270, %v2429
      %v2447 = vsub.f32 %v2272, %v2429
      %v2448 = vsub.f32 %v2274, %v2429
      %v2449 = vsub.f32 %v2276, %v2429
      %v2450 = vsub.f32 %v2280, %v2429
      %v2451 = vsub.f32 %v2282, %v2429
      %v2452 = vsub.f32 %v2284, %v2429
      %v2453 = vsub.f32 %v2286, %v2429
      %v2454 = vsub.f32 %v2290, %v2429
      %v2455 = vsub.f32 %v2292, %v2429
      %v2456 = vsub.f32 %v2294, %v2429
      %v2457 = vsub.f32 %v2296, %v2429
      %v2458 = vsub.f32 %v2300, %v2429
      %v2459 = vsub.f32 %v2302, %v2429
      %v2460 = vsub.f32 %v2304, %v2429
      %v2461 = vsub.f32 %v2306, %v2429
      %s2462 = sadd.f32 %s2428, 1e-05
      %v2463 = vstv %s2462
      %v2464 = vrsqrt.pop %v2463
      %s2465 = vtos %v2464
      %v2466 = vstv %s2465
      %v2467 = vmul.f32 %v2430, %v2466
      %v2468 = vmul.f32 %v2431, %v2466
      %v2469 = vmul.f32 %v2432, %v2466
      %v2470 = vmul.f32 %v2433, %v2466
      %v2471 = vmul.f32 %v2434, %v2466
      %v2472 = vmul.f32 %v2435, %v2466
      %v2473 = vmul.f32 %v2436, %v2466
      %v2474 = vmul.f32 %v2437, %v2466
      %v2475 = vmul.f32 %v2438, %v2466
      %v2476 = vmul.f32 %v2439, %v2466
      %v2477 = vmul.f32 %v2440, %v2466
      %v2478 = vmul.f32 %v2441, %v2466
      %v2479 = vmul.f32 %v2442, %v2466
      %v2480 = vmul.f32 %v2443, %v2466
      %v2481 = vmul.f32 %v2444, %v2466
      %v2482 = vmul.f32 %v2445, %v2466
      %v2483 = vmul.f32 %v2446, %v2466
      %v2484 = vmul.f32 %v2447, %v2466
      %v2485 = vmul.f32 %v2448, %v2466
      %v2486 = vmul.f32 %v2449, %v2466
      %v2487 = vmul.f32 %v2450, %v2466
      %v2488 = vmul.f32 %v2451, %v2466
      %v2489 = vmul.f32 %v2452, %v2466
      %v2490 = vmul.f32 %v2453, %v2466
      %v2491 = vmul.f32 %v2454, %v2466
      %v2492 = vmul.f32 %v2455, %v2466
      %v2493 = vmul.f32 %v2456, %v2466
      %v2494 = vmul.f32 %v2457, %v2466
      %v2495 = vmul.f32 %v2458, %v2466
      %v2496 = vmul.f32 %v2459, %v2466
      %v2497 = vmul.f32 %v2460, %v2466
      %v2498 = vmul.f32 %v2461, %v2466
      %v2499 = vmul.f32 %v2467, %v799
      %v2500 = vmul.f32 %v2468, %v799
      %v2501 = vmul.f32 %v2469, %v804
      %v2502 = vmul.f32 %v2470, %v804
      %v2503 = vmul.f32 %v2471, %v809
      %v2504 = vmul.f32 %v2472, %v809
      %v2505 = vmul.f32 %v2473, %v814
      %v2506 = vmul.f32 %v2474, %v814
      %v2507 = vmul.f32 %v2475, %v819
      %v2508 = vmul.f32 %v2476, %v819
      %v2509 = vmul.f32 %v2477, %v824
      %v2510 = vmul.f32 %v2478, %v824
      %v2511 = vmul.f32 %v2479, %v829
      %v2512 = vmul.f32 %v2480, %v829
      %v2513 = vmul.f32 %v2481, %v834
      %v2514 = vmul.f32 %v2482, %v834
      %v2515 = vmul.f32 %v2483, %v839
      %v2516 = vmul.f32 %v2484, %v839
      %v2517 = vmul.f32 %v2485, %v844
      %v2518 = vmul.f32 %v2486, %v844
      %v2519 = vmul.f32 %v2487, %v849
      %v2520 = vmul.f32 %v2488, %v849
      %v2521 = vmul.f32 %v2489, %v854
      %v2522 = vmul.f32 %v2490, %v854
      %v2523 = vmul.f32 %v2491, %v859
      %v2524 = vmul.f32 %v2492, %v859
      %v2525 = vmul.f32 %v2493, %v864
      %v2526 = vmul.f32 %v2494, %v864
      %v2527 = vmul.f32 %v2495, %v869
      %v2528 = vmul.f32 %v2496, %v869
      %v2529 = vmul.f32 %v2497, %v874
      %v2530 = vmul.f32 %v2498, %v874
      %v2531 = vadd.f32 %v2499, %v911
      %v2532 = vadd.f32 %v2500, %v911
      %v2533 = vadd.f32 %v2501, %v916
      %v2534 = vadd.f32 %v2502, %v916
      %v2535 = vadd.f32 %v2503, %v921
      %v2536 = vadd.f32 %v2504, %v921
      %v2537 = vadd.f32 %v2505, %v926
      %v2538 = vadd.f32 %v2506, %v926
      %v2539 = vadd.f32 %v2507, %v931
      %v2540 = vadd.f32 %v2508, %v931
      %v2541 = vadd.f32 %v2509, %v936
      %v2542 = vadd.f32 %v2510, %v936
      %v2543 = vadd.f32 %v2511, %v941
      %v2544 = vadd.f32 %v2512, %v941
      %v2545 = vadd.f32 %v2513, %v946
      %v2546 = vadd.f32 %v2514, %v946
      %v2547 = vadd.f32 %v2515, %v951
      %v2548 = vadd.f32 %v2516, %v951
      %v2549 = vadd.f32 %v2517, %v956
      %v2550 = vadd.f32 %v2518, %v956
      %v2551 = vadd.f32 %v2519, %v961
      %v2552 = vadd.f32 %v2520, %v961
      %v2553 = vadd.f32 %v2521, %v966
      %v2554 = vadd.f32 %v2522, %v966
      %v2555 = vadd.f32 %v2523, %v971
      %v2556 = vadd.f32 %v2524, %v971
      %v2557 = vadd.f32 %v2525, %v976
      %v2558 = vadd.f32 %v2526, %v976
      %v2559 = vadd.f32 %v2527, %v981
      %v2560 = vadd.f32 %v2528, %v981
      %v2561 = vadd.f32 %v2529, %v986
      %v2562 = vadd.f32 %v2530, %v986
      %v2563 = vsub.f32 0.0, %v2531
      %v2564 = vsub.f32 0.0, %v2532
      %v2565 = vsub.f32 0.0, %v2533
      %v2566 = vsub.f32 0.0, %v2534
      %v2567 = vsub.f32 0.0, %v2535
      %v2568 = vsub.f32 0.0, %v2536
      %v2569 = vsub.f32 0.0, %v2537
      %v2570 = vsub.f32 0.0, %v2538
      %v2571 = vsub.f32 0.0, %v2539
      %v2572 = vsub.f32 0.0, %v2540
      %v2573 = vsub.f32 0.0, %v2541
      %v2574 = vsub.f32 0.0, %v2542
      %v2575 = vsub.f32 0.0, %v2543
      %v2576 = vsub.f32 0.0, %v2544
      %v2577 = vsub.f32 0.0, %v2545
      %v2578 = vsub.f32 0.0, %v2546
      %v2579 = vsub.f32 0.0, %v2547
      %v2580 = vsub.f32 0.0, %v2548
      %v2581 = vsub.f32 0.0, %v2549
      %v2582 = vsub.f32 0.0, %v2550
      %v2583 = vsub.f32 0.0, %v2551
      %v2584 = vsub.f32 0.0, %v2552
      %v2585 = vsub.f32 0.0, %v2553
      %v2586 = vsub.f32 0.0, %v2554
      %v2587 = vsub.f32 0.0, %v2555
      %v2588 = vsub.f32 0.0, %v2556
      %v2589 = vsub.f32 0.0, %v2557
      %v2590 = vsub.f32 0.0, %v2558
      %v2591 = vsub.f32 0.0, %v2559
      %v2592 = vsub.f32 0.0, %v2560
      %v2593 = vsub.f32 0.0, %v2561
      %v2594 = vsub.f32 0.0, %v2562
      %v2595 = vmul.f32 %v2563, 1.442695
      %v2596 = vpow.pop %v2595
      %v2597 = vmul.f32 %v2564, 1.442695
      %v2598 = vpow.pop %v2597
      %v2599 = vmul.f32 %v2565, 1.442695
      %v2600 = vpow.pop %v2599
      %v2601 = vmul.f32 %v2566, 1.442695
      %v2602 = vpow.pop %v2601
      %v2603 = vmul.f32 %v2567, 1.442695
      %v2604 = vpow.pop %v2603
      %v2605 = vmul.f32 %v2568, 1.442695
      %v2606 = vpow.pop %v2605
      %v2607 = vmul.f32 %v2569, 1.442695
      %v2608 = vpow.pop %v2607
      %v2609 = vmul.f32 %v2570, 1.442695
      %v2610 = vpow.pop %v2609
      %v2611 = vmul.f32 %v2571, 1.442695
      %v2612 = vpow.pop %v2611
      %v2613 = vmul.f32 %v2572, 1.442695
      %v2614 = vpow.pop %v2613
      %v2615 = vmul.f32 %v2573, 1.442695
      %v2616 = vpow.pop %v2615
      %v2617 = vmul.f32 %v2574, 1.442695
      %v2618 = vpow.pop %v2617
      %v2619 = vmul.f32 %v2575, 1.442695
      %v2620 = vpow.pop %v2619
      %v2621 = vmul.f32 %v2576, 1.442695
      %v2622 = vpow.pop %v2621
      %v2623 = vmul.f32 %v2577, 1.442695
      %v2624 = vpow.pop %v2623
      %v2625 = vmul.f32 %v2578, 1.442695
      %v2626 = vpow.pop %v2625
      %v2627 = vmul.f32 %v2579, 1.442695
      %v2628 = vpow.pop %v2627
      %v2629 = vmul.f32 %v2580, 1.442695
      %v2630 = vpow.pop %v2629
      %v2631 = vmul.f32 %v2581, 1.442695
      %v2632 = vpow.pop %v2631
      %v2633 = vmul.f32 %v2582, 1.442695
      %v2634 = vpow.pop %v2633
      %v2635 = vmul.f32 %v2583, 1.442695
      %v2636 = vpow.pop %v2635
      %v2637 = vmul.f32 %v2584, 1.442695
      %v2638 = vpow.pop %v2637
      %v2639 = vmul.f32 %v2585, 1.442695
      %v2640 = vpow.pop %v2639
      %v2641 = vmul.f32 %v2586, 1.442695
      %v2642 = vpow.pop %v2641
      %v2643 = vmul.f32 %v2587, 1.442695
      %v2644 = vpow.pop %v2643
      %v2645 = vmul.f32 %v2588, 1.442695
      %v2646 = vpow.pop %v2645
      %v2647 = vmul.f32 %v2589, 1.442695
      %v2648 = vpow.pop %v2647
      %v2649 = vmul.f32 %v2590, 1.442695
      %v2650 = vpow.pop %v2649
      %v2651 = vmul.f32 %v2591, 1.442695
      %v2652 = vpow.pop %v2651
      %v2653 = vmul.f32 %v2592, 1.442695
      %v2654 = vpow.pop %v2653
      %v2655 = vmul.f32 %v2593, 1.442695
      %v2656 = vpow.pop %v2655
      %v2657 = vmul.f32 %v2594, 1.442695
      %v2658 = vpow.pop %v2657
      %v2659 = vadd.f32 %v2596, 1.0
      %v2660 = vadd.f32 %v2598, 1.0
      %v2661 = vadd.f32 %v2600, 1.0
      %v2662 = vadd.f32 %v2602, 1.0
      %v2663 = vadd.f32 %v2604, 1.0
      %v2664 = vadd.f32 %v2606, 1.0
      %v2665 = vadd.f32 %v2608, 1.0
      %v2666 = vadd.f32 %v2610, 1.0
      %v2667 = vadd.f32 %v2612, 1.0
      %v2668 = vadd.f32 %v2614, 1.0
      %v2669 = vadd.f32 %v2616, 1.0
      %v2670 = vadd.f32 %v2618, 1.0
      %v2671 = vadd.f32 %v2620, 1.0
      %v2672 = vadd.f32 %v2622, 1.0
      %v2673 = vadd.f32 %v2624, 1.0
      %v2674 = vadd.f32 %v2626, 1.0
      %v2675 = vadd.f32 %v2628, 1.0
      %v2676 = vadd.f32 %v2630, 1.0
      %v2677 = vadd.f32 %v2632, 1.0
      %v2678 = vadd.f32 %v2634, 1.0
      %v2679 = vadd.f32 %v2636, 1.0
      %v2680 = vadd.f32 %v2638, 1.0
      %v2681 = vadd.f32 %v2640, 1.0
      %v2682 = vadd.f32 %v2642, 1.0
      %v2683 = vadd.f32 %v2644, 1.0
      %v2684 = vadd.f32 %v2646, 1.0
      %v2685 = vadd.f32 %v2648, 1.0
      %v2686 = vadd.f32 %v2650, 1.0
      %v2687 = vadd.f32 %v2652, 1.0
      %v2688 = vadd.f32 %v2654, 1.0
      %v2689 = vadd.f32 %v2656, 1.0
      %v2690 = vadd.f32 %v2658, 1.0
      %v2691 = vrcp.pop %v2659
      %v2692 = vrcp.pop %v2660
      %v2693 = vrcp.pop %v2661
      %v2694 = vrcp.pop %v2662
      %v2695 = vrcp.pop %v2663
      %v2696 = vrcp.pop %v2664
      %v2697 = vrcp.pop %v2665
      %v2698 = vrcp.pop %v2666
      %v2699 = vrcp.pop %v2667
      %v2700 = vrcp.pop %v2668
      %v2701 = vrcp.pop %v2669
      %v2702 = vrcp.pop %v2670
      %v2703 = vrcp.pop %v2671
      %v2704 = vrcp.pop %v2672
      %v2705 = vrcp.pop %v2673
      %v2706 = vrcp.pop %v2674
      %v2707 = vrcp.pop %v2675
      %v2708 = vrcp.pop %v2676
      %v2709 = vrcp.pop %v2677
      %v2710 = vrcp.pop %v2678
      %v2711 = vrcp.pop %v2679
      %v2712 = vrcp.pop %v2680
      %v2713 = vrcp.pop %v2681
      %v2714 = vrcp.pop %v2682
      %v2715 = vrcp.pop %v2683
      %v2716 = vrcp.pop %v2684
      %v2717 = vrcp.pop %v2685
      %v2718 = vrcp.pop %v2686
      %v2719 = vrcp.pop %v2687
      %v2720 = vrcp.pop %v2688
      %v2721 = vrcp.pop %v2689
      %v2722 = vrcp.pop %v2690
      %v2723 = vmul.f32 %v2531, %v2691
      %v2724 = vmul.f32 %v2532, %v2692
      %v2725 = vmul.f32 %v2533, %v2693
      %v2726 = vmul.f32 %v2534, %v2694
      %v2727 = vmul.f32 %v2535, %v2695
      %v2728 = vmul.f32 %v2536, %v2696
      %v2729 = vmul.f32 %v2537, %v2697
      %v2730 = vmul.f32 %v2538, %v2698
      %v2731 = vmul.f32 %v2539, %v2699
      %v2732 = vmul.f32 %v2540, %v2700
      %v2733 = vmul.f32 %v2541, %v2701
      %v2734 = vmul.f32 %v2542, %v2702
      %v2735 = vmul.f32 %v2543, %v2703
      %v2736 = vmul.f32 %v2544, %v2704
      %v2737 = vmul.f32 %v2545, %v2705
      %v2738 = vmul.f32 %v2546, %v2706
      %v2739 = vmul.f32 %v2547, %v2707
      %v2740 = vmul.f32 %v2548, %v2708
      %v2741 = vmul.f32 %v2549, %v2709
      %v2742 = vmul.f32 %v2550, %v2710
      %v2743 = vmul.f32 %v2551, %v2711
      %v2744 = vmul.f32 %v2552, %v2712
      %v2745 = vmul.f32 %v2553, %v2713
      %v2746 = vmul.f32 %v2554, %v2714
      %v2747 = vmul.f32 %v2555, %v2715
      %v2748 = vmul.f32 %v2556, %v2716
      %v2749 = vmul.f32 %v2557, %v2717
      %v2750 = vmul.f32 %v2558, %v2718
      %v2751 = vmul.f32 %v2559, %v2719
      %v2752 = vmul.f32 %v2560, %v2720
      %v2753 = vmul.f32 %v2561, %v2721
      %v2754 = vmul.f32 %v2562, %v2722
      %v2755 = vpack.c.bf16 %v2725, %v2723
      %v2756 = vpack.c.bf16 %v2726, %v2724
      %v2757 = vpack.c.bf16 %v2729, %v2727
      %v2758 = vpack.c.bf16 %v2730, %v2728
      %v2759 = vpack.c.bf16 %v2733, %v2731
      %v2760 = vpack.c.bf16 %v2734, %v2732
      %v2761 = vpack.c.bf16 %v2737, %v2735
      %v2762 = vpack.c.bf16 %v2738, %v2736
      %v2763 = vpack.c.bf16 %v2741, %v2739
      %v2764 = vpack.c.bf16 %v2742, %v2740
      %v2765 = vpack.c.bf16 %v2745, %v2743
      %v2766 = vpack.c.bf16 %v2746, %v2744
      %v2767 = vpack.c.bf16 %v2749, %v2747
      %v2768 = vpack.c.bf16 %v2750, %v2748
      %v2769 = vpack.c.bf16 %v2753, %v2751
      %v2770 = vpack.c.bf16 %v2754, %v2752
      %2771 = vmatprep.subr.bf16.mxu0 %v2756
      %2772 = vmatpush1.bf16.msra.mxu0 %v2755
      %2773 = vmatprep.subr.bf16.mxu0 %v2758
      %2774 = vmatpush1.bf16.msra.mxu0 %v2757
      %2775 = vmatprep.subr.bf16.mxu0 %v2760
      %2776 = vmatpush1.bf16.msra.mxu0 %v2759
      %2777 = vmatprep.subr.bf16.mxu0 %v2762
      %2778 = vmatpush1.bf16.msra.mxu0 %v2761
      %2779 = vmatprep.subr.bf16.mxu0 %v2764
      %2780 = vmatpush1.bf16.msra.mxu0 %v2763
      %2781 = vmatprep.subr.bf16.mxu0 %v2766
      %2782 = vmatpush1.bf16.msra.mxu0 %v2765
      %2783 = vmatprep.subr.bf16.mxu0 %v2768
      %2784 = vmatpush1.bf16.msra.mxu0 %v2767
      %2785 = vmatprep.subr.bf16.mxu0 %v2770
      %2786 = vmatpush1.bf16.msra.mxu0 %v2769
      %2787 = vmatprep.subr.bf16.mxu0 0
      %2788 = vmatpush1.bf16.msra.mxu0 0
      %2789 = vmatprep.subr.bf16.mxu0 0
      %2790 = vmatpush1.bf16.msra.mxu0 0
      %2791 = vmatprep.subr.bf16.mxu0 0
      %2792 = vmatpush1.bf16.msra.mxu0 0
      %2793 = vmatprep.subr.bf16.mxu0 0
      %2794 = vmatpush1.bf16.msra.mxu0 0
      %2795 = vmatprep.subr.bf16.mxu0 0
      %2796 = vmatpush1.bf16.msra.mxu0 0
      %2797 = vmatprep.subr.bf16.mxu0 0
      %2798 = vmatpush1.bf16.msra.mxu0 0
      %2799 = vmatprep.subr.bf16.mxu0 0
      %2800 = vmatpush1.bf16.msra.mxu0 0
      %2801 = vmatprep.subr.bf16.mxu0 0
      %2802 = vmatpush1.bf16.msra.mxu0 0
      %2803 = vmatprep.mubr.bf16.mxu0 0
      %2804 = vmatmul.mubr.bf16.gmra.mrb[0].mxu0 %v1232
      %v2805 = vpop.f32.mrb[0].mxu0
      %v2806 = vadd.f32 0.0, %v2805
      %v2807 = vpop.f32.mrb[0].mxu0
      %v2808 = vadd.f32 0.0, %v2807
      %v2809 = vpop.f32.mrb[0].mxu0
      %v2810 = vadd.f32 0.0, %v2809
      %v2811 = vpop.f32.mrb[0].mxu0
      %v2812 = vadd.f32 0.0, %v2811
      %2813 = vdwg.mxu0
      %v2814 = vsub.f32 0.0, %v2806
      %v2815 = vsub.f32 0.0, %v2808
      %v2816 = vsub.f32 0.0, %v2810
      %v2817 = vsub.f32 0.0, %v2812
      %v2818 = vmul.f32 %v2814, 1.442695
      %v2819 = vpow.pop %v2818
      %v2820 = vmul.f32 %v2815, 1.442695
      %v2821 = vpow.pop %v2820
      %v2822 = vmul.f32 %v2816, 1.442695
      %v2823 = vpow.pop %v2822
      %v2824 = vmul.f32 %v2817, 1.442695
      %v2825 = vpow.pop %v2824
      %v2826 = vadd.f32 %v2819, 1.0
      %v2827 = vadd.f32 %v2821, 1.0
      %v2828 = vadd.f32 %v2823, 1.0
      %v2829 = vadd.f32 %v2825, 1.0
      %v2830 = vrcp.pop %v2826
      %v2831 = vrcp.pop %v2827
      %v2832 = vrcp.pop %v2828
      %v2833 = vrcp.pop %v2829
      %s2834 = scalar_lea.vmem %s231, 64
      %2835 = vst [vmem:[%s2834] sm:$0xff] %v2830
      %2836 = vst [vmem:[%s2834 + $0x8] sm:$0xff] %v2831
      %2837 = vst [vmem:[%s2834 + $0x10] sm:$0xff] %v2832
      %2838 = vst [vmem:[%s2834 + $0x18] sm:$0xff] %v2833
      %s2839 = scalar_lea.vmem %s224, 96
      %v2840 = vld [vmem:[%s2839] sm:$0xff]
      %v2841 = vld [vmem:[%s2839 + $0x8] sm:$0xff]
      %v2842 = vld [vmem:[%s2839 + $0x10] sm:$0xff]
      %v2843 = vld [vmem:[%s2839 + $0x18] sm:$0xff]
      %v2844 = vunpack.c.l.bf16 %v2840
      %v2845 = vunpack.c.h.bf16 %v2840
      %v2846 = vunpack.c.l.bf16 %v2841
      %v2847 = vunpack.c.h.bf16 %v2841
      %v2848 = vunpack.c.l.bf16 %v2842
      %v2849 = vunpack.c.h.bf16 %v2842
      %v2850 = vunpack.c.l.bf16 %v2843
      %v2851 = vunpack.c.h.bf16 %v2843
      %2852 = vrot.lane.b32.xlu0 %v2844, 127
      %v2853 = vpop.permute.xlu0 %2852
      %2854 = vrot.lane.b32.xlu0 %v2846, 127
      %v2855 = vpop.permute.xlu0 %2854
      %2856 = vrot.lane.b32.xlu0 %v2848, 127
      %v2857 = vpop.permute.xlu0 %2856
      %2858 = vrot.lane.b32.xlu0 %v2850, 127
      %v2859 = vpop.permute.xlu0 %2858
      %2860 = vrot.lane.b32.xlu0 %v2845, 127
      %v2861 = vpop.permute.xlu0 %2860
      %2862 = vrot.lane.b32.xlu0 %v2847, 127
      %v2863 = vpop.permute.xlu0 %2862
      %2864 = vrot.lane.b32.xlu0 %v2849, 127
      %v2865 = vpop.permute.xlu0 %2864
      %2866 = vrot.lane.b32.xlu0 %v2851, 127
      %v2867 = vpop.permute.xlu0 %2866
      %v2868 = vsel %vm343, %v2853, %v2861
      %v2869 = vsel %vm343, %v2855, %v2863
      %v2870 = vsel %vm343, %v2857, %v2865
      %v2871 = vsel %vm343, %v2859, %v2867
      %v2872 = vsel %vm343, %v2861, %v2853
      %v2873 = vsel %vm343, %v2863, %v2855
      %v2874 = vsel %vm343, %v2865, %v2857
      %v2875 = vsel %vm343, %v2867, %v2859
      %v2876 = vsel %vm261, %v2868, 0.0
      %v2877 = vsel %vm262, %v2872, 0.0
      %v2878 = vsel %vm261, %v2869, 0.0
      %v2879 = vsel %vm262, %v2873, 0.0
      %v2880 = vsel %vm261, %v2870, 0.0
      %v2881 = vsel %vm262, %v2874, 0.0
      %v2882 = vsel %vm261, %v2871, 0.0
      %v2883 = vsel %vm262, %v2875, 0.0
      %2884 = vrot.lane.b32.xlu0 %v2844, 112
      %v2885 = vpop.permute.xlu0 %2884
      %2886 = vrot.lane.b32.xlu0 %v2846, 112
      %v2887 = vpop.permute.xlu0 %2886
      %2888 = vrot.lane.b32.xlu0 %v2848, 112
      %v2889 = vpop.permute.xlu0 %2888
      %2890 = vrot.lane.b32.xlu0 %v2850, 112
      %v2891 = vpop.permute.xlu0 %2890
      %2892 = vrot.lane.b32.xlu0 %v2845, 112
      %v2893 = vpop.permute.xlu0 %2892
      %2894 = vrot.lane.b32.xlu0 %v2847, 112
      %v2895 = vpop.permute.xlu0 %2894
      %2896 = vrot.lane.b32.xlu0 %v2849, 112
      %v2897 = vpop.permute.xlu0 %2896
      %2898 = vrot.lane.b32.xlu0 %v2851, 112
      %v2899 = vpop.permute.xlu0 %2898
      %v2900 = vsel %vm376, %v2885, %v2893
      %v2901 = vsel %vm376, %v2887, %v2895
      %v2902 = vsel %vm376, %v2889, %v2897
      %v2903 = vsel %vm376, %v2891, %v2899
      %v2904 = vsel %vm376, %v2893, %v2885
      %v2905 = vsel %vm376, %v2895, %v2887
      %v2906 = vsel %vm376, %v2897, %v2889
      %v2907 = vsel %vm376, %v2899, %v2891
      %v2908 = vsel %vm263, %v2900, 0.0
      %v2909 = vsel %vm264, %v2904, 0.0
      %v2910 = vsel %vm263, %v2901, 0.0
      %v2911 = vsel %vm264, %v2905, 0.0
      %v2912 = vsel %vm263, %v2902, 0.0
      %v2913 = vsel %vm264, %v2906, 0.0
      %v2914 = vsel %vm263, %v2903, 0.0
      %v2915 = vsel %vm264, %v2907, 0.0
      %2916 = vrot.lane.b32.xlu0 %v2844, 111
      %v2917 = vpop.permute.xlu0 %2916
      %2918 = vrot.lane.b32.xlu0 %v2846, 111
      %v2919 = vpop.permute.xlu0 %2918
      %2920 = vrot.lane.b32.xlu0 %v2848, 111
      %v2921 = vpop.permute.xlu0 %2920
      %2922 = vrot.lane.b32.xlu0 %v2850, 111
      %v2923 = vpop.permute.xlu0 %2922
      %2924 = vrot.lane.b32.xlu0 %v2845, 111
      %v2925 = vpop.permute.xlu0 %2924
      %2926 = vrot.lane.b32.xlu0 %v2847, 111
      %v2927 = vpop.permute.xlu0 %2926
      %2928 = vrot.lane.b32.xlu0 %v2849, 111
      %v2929 = vpop.permute.xlu0 %2928
      %2930 = vrot.lane.b32.xlu0 %v2851, 111
      %v2931 = vpop.permute.xlu0 %2930
      %v2932 = vsel %vm411, %v2917, %v2925
      %v2933 = vsel %vm411, %v2919, %v2927
      %v2934 = vsel %vm411, %v2921, %v2929
      %v2935 = vsel %vm411, %v2923, %v2931
      %v2936 = vsel %vm411, %v2925, %v2917
      %v2937 = vsel %vm411, %v2927, %v2919
      %v2938 = vsel %vm411, %v2929, %v2921
      %v2939 = vsel %vm411, %v2931, %v2923
      %v2940 = vsel %vm393, %v2932, 0.0
      %v2941 = vsel %vm394, %v2936, 0.0
      %v2942 = vsel %vm393, %v2933, 0.0
      %v2943 = vsel %vm394, %v2937, 0.0
      %v2944 = vsel %vm393, %v2934, 0.0
      %v2945 = vsel %vm394, %v2938, 0.0
      %v2946 = vsel %vm393, %v2935, 0.0
      %v2947 = vsel %vm394, %v2939, 0.0
      %v2948 = vpack.c.bf16 %v2846, %v2844
      %v2949 = vpack.c.bf16 %v2847, %v2845
      %v2950 = vpack.c.bf16 %v2850, %v2848
      %v2951 = vpack.c.bf16 %v2851, %v2849
      %v2952 = vpack.c.bf16 %v2878, %v2876
      %v2953 = vpack.c.bf16 %v2879, %v2877
      %v2954 = vpack.c.bf16 %v2882, %v2880
      %v2955 = vpack.c.bf16 %v2883, %v2881
      %v2956 = vpack.c.bf16 %v2910, %v2908
      %v2957 = vpack.c.bf16 %v2911, %v2909
      %v2958 = vpack.c.bf16 %v2914, %v2912
      %v2959 = vpack.c.bf16 %v2915, %v2913
      %v2960 = vpack.c.bf16 %v2942, %v2940
      %v2961 = vpack.c.bf16 %v2943, %v2941
      %v2962 = vpack.c.bf16 %v2946, %v2944
      %v2963 = vpack.c.bf16 %v2947, %v2945
      %2964 = vmatprep.subr.bf16.mxu0 %v2949
      %2965 = vmatpush1.bf16.msra.mxu0 %v2948
      %2966 = vmatprep.subr.bf16.mxu0 %v2951
      %2967 = vmatpush1.bf16.msra.mxu0 %v2950
      %2968 = vmatprep.subr.bf16.mxu0 %v2953
      %2969 = vmatpush1.bf16.msra.mxu0 %v2952
      %2970 = vmatprep.subr.bf16.mxu0 %v2955
      %2971 = vmatpush1.bf16.msra.mxu0 %v2954
      %2972 = vmatprep.subr.bf16.mxu0 %v2957
      %2973 = vmatpush1.bf16.msra.mxu0 %v2956
      %2974 = vmatprep.subr.bf16.mxu0 %v2959
      %2975 = vmatpush1.bf16.msra.mxu0 %v2958
      %2976 = vmatprep.subr.bf16.mxu0 %v2961
      %2977 = vmatpush1.bf16.msra.mxu0 %v2960
      %2978 = vmatprep.subr.bf16.mxu0 %v2963
      %2979 = vmatpush1.bf16.msra.mxu0 %v2962
      %2980 = vmatprep.subr.bf16.mxu0 0
      %2981 = vmatpush1.bf16.msra.mxu0 0
      %2982 = vmatprep.subr.bf16.mxu0 0
      %2983 = vmatpush1.bf16.msra.mxu0 0
      %2984 = vmatprep.subr.bf16.mxu0 0
      %2985 = vmatpush1.bf16.msra.mxu0 0
      %2986 = vmatprep.subr.bf16.mxu0 0
      %2987 = vmatpush1.bf16.msra.mxu0 0
      %2988 = vmatprep.subr.bf16.mxu0 0
      %2989 = vmatpush1.bf16.msra.mxu0 0
      %2990 = vmatprep.subr.bf16.mxu0 0
      %2991 = vmatpush1.bf16.msra.mxu0 0
      %2992 = vmatprep.subr.bf16.mxu0 0
      %2993 = vmatpush1.bf16.msra.mxu0 0
      %2994 = vmatprep.subr.bf16.mxu0 0
      %2995 = vmatpush1.bf16.msra.mxu0 0
      %2996 = vmatprep.mubr.bf16.mxu0 0
      %2997 = vmatmul.mubr.bf16.gmra.mrb[0].mxu0 %v476
      %v2998 = vpop.f32.mrb[0].mxu0
      %v2999 = vadd.f32 0.0, %v2998
      %v3000 = vpop.f32.mrb[0].mxu0
      %v3001 = vadd.f32 0.0, %v3000
      %v3002 = vpop.f32.mrb[0].mxu0
      %v3003 = vadd.f32 0.0, %v3002
      %v3004 = vpop.f32.mrb[0].mxu0
      %v3005 = vadd.f32 0.0, %v3004
      %3006 = vmatprep.mubr.bf16.mxu0 0
      %3007 = vmatmul.mubr.bf16.gmra.mrb[0].mxu0 %v477
      %v3008 = vpop.f32.mrb[0].mxu0
      %v3009 = vadd.f32 0.0, %v3008
      %v3010 = vpop.f32.mrb[0].mxu0
      %v3011 = vadd.f32 0.0, %v3010
      %v3012 = vpop.f32.mrb[0].mxu0
      %v3013 = vadd.f32 0.0, %v3012
      %v3014 = vpop.f32.mrb[0].mxu0
      %v3015 = vadd.f32 0.0, %v3014
      %3016 = vmatprep.mubr.bf16.mxu0 0
      %3017 = vmatmul.mubr.bf16.gmra.mrb[0].mxu0 %v478
      %v3018 = vpop.f32.mrb[0].mxu0
      %v3019 = vadd.f32 0.0, %v3018
      %v3020 = vpop.f32.mrb[0].mxu0
      %v3021 = vadd.f32 0.0, %v3020
      %v3022 = vpop.f32.mrb[0].mxu0
      %v3023 = vadd.f32 0.0, %v3022
      %v3024 = vpop.f32.mrb[0].mxu0
      %v3025 = vadd.f32 0.0, %v3024
      %3026 = vmatprep.mubr.bf16.mxu0 0
      %3027 = vmatmul.mubr.bf16.gmra.mrb[0].mxu0 %v479
      %v3028 = vpop.f32.mrb[0].mxu0
      %v3029 = vadd.f32 0.0, %v3028
      %v3030 = vpop.f32.mrb[0].mxu0
      %v3031 = vadd.f32 0.0, %v3030
      %v3032 = vpop.f32.mrb[0].mxu0
      %v3033 = vadd.f32 0.0, %v3032
      %v3034 = vpop.f32.mrb[0].mxu0
      %v3035 = vadd.f32 0.0, %v3034
      %3036 = vmatprep.mubr.bf16.mxu0 0
      %3037 = vmatmul.mubr.bf16.gmra.mrb[0].mxu0 %v480
      %v3038 = vpop.f32.mrb[0].mxu0
      %v3039 = vadd.f32 0.0, %v3038
      %v3040 = vpop.f32.mrb[0].mxu0
      %v3041 = vadd.f32 0.0, %v3040
      %v3042 = vpop.f32.mrb[0].mxu0
      %v3043 = vadd.f32 0.0, %v3042
      %v3044 = vpop.f32.mrb[0].mxu0
      %v3045 = vadd.f32 0.0, %v3044
      %3046 = vmatprep.mubr.bf16.mxu0 0
      %3047 = vmatmul.mubr.bf16.gmra.mrb[0].mxu0 %v481
      %v3048 = vpop.f32.mrb[0].mxu0
      %v3049 = vadd.f32 0.0, %v3048
      %v3050 = vpop.f32.mrb[0].mxu0
      %v3051 = vadd.f32 0.0, %v3050
      %v3052 = vpop.f32.mrb[0].mxu0
      %v3053 = vadd.f32 0.0, %v3052
      %v3054 = vpop.f32.mrb[0].mxu0
      %v3055 = vadd.f32 0.0, %v3054
      %3056 = vmatprep.mubr.bf16.mxu0 0
      %3057 = vmatmul.mubr.bf16.gmra.mrb[0].mxu0 %v482
      %v3058 = vpop.f32.mrb[0].mxu0
      %v3059 = vadd.f32 0.0, %v3058
      %v3060 = vpop.f32.mrb[0].mxu0
      %v3061 = vadd.f32 0.0, %v3060
      %v3062 = vpop.f32.mrb[0].mxu0
      %v3063 = vadd.f32 0.0, %v3062
      %v3064 = vpop.f32.mrb[0].mxu0
      %v3065 = vadd.f32 0.0, %v3064
      %3066 = vmatprep.mubr.bf16.mxu0 0
      %3067 = vmatmul.mubr.bf16.gmra.mrb[0].mxu0 %v483
      %v3068 = vpop.f32.mrb[0].mxu0
      %v3069 = vadd.f32 0.0, %v3068
      %v3070 = vpop.f32.mrb[0].mxu0
      %v3071 = vadd.f32 0.0, %v3070
      %v3072 = vpop.f32.mrb[0].mxu0
      %v3073 = vadd.f32 0.0, %v3072
      %v3074 = vpop.f32.mrb[0].mxu0
      %v3075 = vadd.f32 0.0, %v3074
      %3076 = vdwg.mxu0
      %v3077 = vadd.f32 %v2999, %v3001
      %v3078 = vadd.f32 %v3077, %v3003
      %v3079 = vadd.f32 %v3078, %v3005
      %v3080 = vadd.f32 %v3079, %v3009
      %v3081 = vadd.f32 %v3080, %v3011
      %v3082 = vadd.f32 %v3081, %v3013
      %v3083 = vadd.f32 %v3082, %v3015
      %v3084 = vadd.f32 %v3083, %v3019
      %v3085 = vadd.f32 %v3084, %v3021
      %v3086 = vadd.f32 %v3085, %v3023
      %v3087 = vadd.f32 %v3086, %v3025
      %v3088 = vadd.f32 %v3087, %v3029
      %v3089 = vadd.f32 %v3088, %v3031
      %v3090 = vadd.f32 %v3089, %v3033
      %v3091 = vadd.f32 %v3090, %v3035
      %v3092 = vadd.f32 %v3091, %v3039
      %v3093 = vadd.f32 %v3092, %v3041
      %v3094 = vadd.f32 %v3093, %v3043
      %v3095 = vadd.f32 %v3094, %v3045
      %v3096 = vadd.f32 %v3095, %v3049
      %v3097 = vadd.f32 %v3096, %v3051
      %v3098 = vadd.f32 %v3097, %v3053
      %v3099 = vadd.f32 %v3098, %v3055
      %v3100 = vadd.f32 %v3099, %v3059
      %v3101 = vadd.f32 %v3100, %v3061
      %v3102 = vadd.f32 %v3101, %v3063
      %v3103 = vadd.f32 %v3102, %v3065
      %v3104 = vadd.f32 %v3103, %v3069
      %v3105 = vadd.f32 %v3104, %v3071
      %v3106 = vadd.f32 %v3105, %v3073
      %v3107 = vadd.f32 %v3106, %v3075
      %3108 = vadd.xlane.f32.xlu0 %v3107
      %v3109 = vpop.xlane.xlu0 %3108
      %v3110 = vrot.slane %v3109, 4
      %v3111 = vadd.f32 %v3109, %v3110
      %v3112 = vrot.slane %v3111, 2
      %v3113 = vadd.f32 %v3111, %v3112
      %v3114 = vrot.slane %v3113, 1
      %v3115 = vadd.f32 %v3113, %v3114
      %s3116 = vtos %v3115
      %v3117 = vmul.f32 %v2999, %v2999
      %v3118 = vmul.f32 %v3001, %v3001
      %v3119 = vmul.f32 %v3003, %v3003
      %v3120 = vmul.f32 %v3005, %v3005
      %v3121 = vmul.f32 %v3009, %v3009
      %v3122 = vmul.f32 %v3011, %v3011
      %v3123 = vmul.f32 %v3013, %v3013
      %v3124 = vmul.f32 %v3015, %v3015
      %v3125 = vmul.f32 %v3019, %v3019
      %v3126 = vmul.f32 %v3021, %v3021
      %v3127 = vmul.f32 %v3023, %v3023
      %v3128 = vmul.f32 %v3025, %v3025
      %v3129 = vmul.f32 %v3029, %v3029
      %v3130 = vmul.f32 %v3031, %v3031
      %v3131 = vmul.f32 %v3033, %v3033
      %v3132 = vmul.f32 %v3035, %v3035
      %v3133 = vmul.f32 %v3039, %v3039
      %v3134 = vmul.f32 %v3041, %v3041
      %v3135 = vmul.f32 %v3043, %v3043
      %v3136 = vmul.f32 %v3045, %v3045
      %v3137 = vmul.f32 %v3049, %v3049
      %v3138 = vmul.f32 %v3051, %v3051
      %v3139 = vmul.f32 %v3053, %v3053
      %v3140 = vmul.f32 %v3055, %v3055
      %v3141 = vmul.f32 %v3059, %v3059
      %v3142 = vmul.f32 %v3061, %v3061
      %v3143 = vmul.f32 %v3063, %v3063
      %v3144 = vmul.f32 %v3065, %v3065
      %v3145 = vmul.f32 %v3069, %v3069
      %v3146 = vmul.f32 %v3071, %v3071
      %v3147 = vmul.f32 %v3073, %v3073
      %v3148 = vmul.f32 %v3075, %v3075
      %v3149 = vadd.f32 %v3117, %v3118
      %v3150 = vadd.f32 %v3149, %v3119
      %v3151 = vadd.f32 %v3150, %v3120
      %v3152 = vadd.f32 %v3151, %v3121
      %v3153 = vadd.f32 %v3152, %v3122
      %v3154 = vadd.f32 %v3153, %v3123
      %v3155 = vadd.f32 %v3154, %v3124
      %v3156 = vadd.f32 %v3155, %v3125
      %v3157 = vadd.f32 %v3156, %v3126
      %v3158 = vadd.f32 %v3157, %v3127
      %v3159 = vadd.f32 %v3158, %v3128
      %v3160 = vadd.f32 %v3159, %v3129
      %v3161 = vadd.f32 %v3160, %v3130
      %v3162 = vadd.f32 %v3161, %v3131
      %v3163 = vadd.f32 %v3162, %v3132
      %v3164 = vadd.f32 %v3163, %v3133
      %v3165 = vadd.f32 %v3164, %v3134
      %v3166 = vadd.f32 %v3165, %v3135
      %v3167 = vadd.f32 %v3166, %v3136
      %v3168 = vadd.f32 %v3167, %v3137
      %v3169 = vadd.f32 %v3168, %v3138
      %v3170 = vadd.f32 %v3169, %v3139
      %v3171 = vadd.f32 %v3170, %v3140
      %v3172 = vadd.f32 %v3171, %v3141
      %v3173 = vadd.f32 %v3172, %v3142
      %v3174 = vadd.f32 %v3173, %v3143
      %v3175 = vadd.f32 %v3174, %v3144
      %v3176 = vadd.f32 %v3175, %v3145
      %v3177 = vadd.f32 %v3176, %v3146
      %v3178 = vadd.f32 %v3177, %v3147
      %v3179 = vadd.f32 %v3178, %v3148
      %3180 = vadd.xlane.f32.xlu0 %v3179
      %v3181 = vpop.xlane.xlu0 %3180
      %v3182 = vrot.slane %v3181, 4
      %v3183 = vadd.f32 %v3181, %v3182
      %v3184 = vrot.slane %v3183, 2
      %v3185 = vadd.f32 %v3183, %v3184
      %v3186 = vrot.slane %v3185, 1
      %v3187 = vadd.f32 %v3185, %v3186
      %s3188 = vtos %v3187
      %v3189 = vrcp.pop 32768.0
      %s3190 = vtos %v3189
      %s3191 = smul.f32 %s3116, %s3190
      %v3192 = vrcp.pop 32768.0
      %s3193 = vtos %v3192
      %s3194 = smul.f32 %s3188, %s3193
      %s3195 = smul.f32 %s3191, %s3191
      %s3196 = ssub.f32 %s3194, %s3195
      %s3197 = smax.f32 %s3196, 0.0
      %v3198 = vstv %s3191
      %v3199 = vsub.f32 %v2999, %v3198
      %v3200 = vsub.f32 %v3001, %v3198
      %v3201 = vsub.f32 %v3003, %v3198
      %v3202 = vsub.f32 %v3005, %v3198
      %v3203 = vsub.f32 %v3009, %v3198
      %v3204 = vsub.f32 %v3011, %v3198
      %v3205 = vsub.f32 %v3013, %v3198
      %v3206 = vsub.f32 %v3015, %v3198
      %v3207 = vsub.f32 %v3019, %v3198
      %v3208 = vsub.f32 %v3021, %v3198
      %v3209 = vsub.f32 %v3023, %v3198
      %v3210 = vsub.f32 %v3025, %v3198
      %v3211 = vsub.f32 %v3029, %v3198
      %v3212 = vsub.f32 %v3031, %v3198
      %v3213 = vsub.f32 %v3033, %v3198
      %v3214 = vsub.f32 %v3035, %v3198
      %v3215 = vsub.f32 %v3039, %v3198
      %v3216 = vsub.f32 %v3041, %v3198
      %v3217 = vsub.f32 %v3043, %v3198
      %v3218 = vsub.f32 %v3045, %v3198
      %v3219 = vsub.f32 %v3049, %v3198
      %v3220 = vsub.f32 %v3051, %v3198
      %v3221 = vsub.f32 %v3053, %v3198
      %v3222 = vsub.f32 %v3055, %v3198
      %v3223 = vsub.f32 %v3059, %v3198
      %v3224 = vsub.f32 %v3061, %v3198
      %v3225 = vsub.f32 %v3063, %v3198
      %v3226 = vsub.f32 %v3065, %v3198
      %v3227 = vsub.f32 %v3069, %v3198
      %v3228 = vsub.f32 %v3071, %v3198
      %v3229 = vsub.f32 %v3073, %v3198
      %v3230 = vsub.f32 %v3075, %v3198
      %s3231 = sadd.f32 %s3197, 1e-05
      %v3232 = vstv %s3231
      %v3233 = vrsqrt.pop %v3232
      %s3234 = vtos %v3233
      %v3235 = vstv %s3234
      %v3236 = vmul.f32 %v3199, %v3235
      %v3237 = vmul.f32 %v3200, %v3235
      %v3238 = vmul.f32 %v3201, %v3235
      %v3239 = vmul.f32 %v3202, %v3235
      %v3240 = vmul.f32 %v3203, %v3235
      %v3241 = vmul.f32 %v3204, %v3235
      %v3242 = vmul.f32 %v3205, %v3235
      %v3243 = vmul.f32 %v3206, %v3235
      %v3244 = vmul.f32 %v3207, %v3235
      %v3245 = vmul.f32 %v3208, %v3235
      %v3246 = vmul.f32 %v3209, %v3235
      %v3247 = vmul.f32 %v3210, %v3235
      %v3248 = vmul.f32 %v3211, %v3235
      %v3249 = vmul.f32 %v3212, %v3235
      %v3250 = vmul.f32 %v3213, %v3235
      %v3251 = vmul.f32 %v3214, %v3235
      %v3252 = vmul.f32 %v3215, %v3235
      %v3253 = vmul.f32 %v3216, %v3235
      %v3254 = vmul.f32 %v3217, %v3235
      %v3255 = vmul.f32 %v3218, %v3235
      %v3256 = vmul.f32 %v3219, %v3235
      %v3257 = vmul.f32 %v3220, %v3235
      %v3258 = vmul.f32 %v3221, %v3235
      %v3259 = vmul.f32 %v3222, %v3235
      %v3260 = vmul.f32 %v3223, %v3235
      %v3261 = vmul.f32 %v3224, %v3235
      %v3262 = vmul.f32 %v3225, %v3235
      %v3263 = vmul.f32 %v3226, %v3235
      %v3264 = vmul.f32 %v3227, %v3235
      %v3265 = vmul.f32 %v3228, %v3235
      %v3266 = vmul.f32 %v3229, %v3235
      %v3267 = vmul.f32 %v3230, %v3235
      %v3268 = vmul.f32 %v3236, %v799
      %v3269 = vmul.f32 %v3237, %v799
      %v3270 = vmul.f32 %v3238, %v804
      %v3271 = vmul.f32 %v3239, %v804
      %v3272 = vmul.f32 %v3240, %v809
      %v3273 = vmul.f32 %v3241, %v809
      %v3274 = vmul.f32 %v3242, %v814
      %v3275 = vmul.f32 %v3243, %v814
      %v3276 = vmul.f32 %v3244, %v819
      %v3277 = vmul.f32 %v3245, %v819
      %v3278 = vmul.f32 %v3246, %v824
      %v3279 = vmul.f32 %v3247, %v824
      %v3280 = vmul.f32 %v3248, %v829
      %v3281 = vmul.f32 %v3249, %v829
      %v3282 = vmul.f32 %v3250, %v834
      %v3283 = vmul.f32 %v3251, %v834
      %v3284 = vmul.f32 %v3252, %v839
      %v3285 = vmul.f32 %v3253, %v839
      %v3286 = vmul.f32 %v3254, %v844
      %v3287 = vmul.f32 %v3255, %v844
      %v3288 = vmul.f32 %v3256, %v849
      %v3289 = vmul.f32 %v3257, %v849
      %v3290 = vmul.f32 %v3258, %v854
      %v3291 = vmul.f32 %v3259, %v854
      %v3292 = vmul.f32 %v3260, %v859
      %v3293 = vmul.f32 %v3261, %v859
      %v3294 = vmul.f32 %v3262, %v864
      %v3295 = vmul.f32 %v3263, %v864
      %v3296 = vmul.f32 %v3264, %v869
      %v3297 = vmul.f32 %v3265, %v869
      %v3298 = vmul.f32 %v3266, %v874
      %v3299 = vmul.f32 %v3267, %v874
      %v3300 = vadd.f32 %v3268, %v911
      %v3301 = vadd.f32 %v3269, %v911
      %v3302 = vadd.f32 %v3270, %v916
      %v3303 = vadd.f32 %v3271, %v916
      %v3304 = vadd.f32 %v3272, %v921
      %v3305 = vadd.f32 %v3273, %v921
      %v3306 = vadd.f32 %v3274, %v926
      %v3307 = vadd.f32 %v3275, %v926
      %v3308 = vadd.f32 %v3276, %v931
      %v3309 = vadd.f32 %v3277, %v931
      %v3310 = vadd.f32 %v3278, %v936
      %v3311 = vadd.f32 %v3279, %v936
      %v3312 = vadd.f32 %v3280, %v941
      %v3313 = vadd.f32 %v3281, %v941
      %v3314 = vadd.f32 %v3282, %v946
      %v3315 = vadd.f32 %v3283, %v946
      %v3316 = vadd.f32 %v3284, %v951
      %v3317 = vadd.f32 %v3285, %v951
      %v3318 = vadd.f32 %v3286, %v956
      %v3319 = vadd.f32 %v3287, %v956
      %v3320 = vadd.f32 %v3288, %v961
      %v3321 = vadd.f32 %v3289, %v961
      %v3322 = vadd.f32 %v3290, %v966
      %v3323 = vadd.f32 %v3291, %v966
      %v3324 = vadd.f32 %v3292, %v971
      %v3325 = vadd.f32 %v3293, %v971
      %v3326 = vadd.f32 %v3294, %v976
      %v3327 = vadd.f32 %v3295, %v976
      %v3328 = vadd.f32 %v3296, %v981
      %v3329 = vadd.f32 %v3297, %v981
      %v3330 = vadd.f32 %v3298, %v986
      %v3331 = vadd.f32 %v3299, %v986
      %v3332 = vsub.f32 0.0, %v3300
      %v3333 = vsub.f32 0.0, %v3301
      %v3334 = vsub.f32 0.0, %v3302
      %v3335 = vsub.f32 0.0, %v3303
      %v3336 = vsub.f32 0.0, %v3304
      %v3337 = vsub.f32 0.0, %v3305
      %v3338 = vsub.f32 0.0, %v3306
      %v3339 = vsub.f32 0.0, %v3307
      %v3340 = vsub.f32 0.0, %v3308
      %v3341 = vsub.f32 0.0, %v3309
      %v3342 = vsub.f32 0.0, %v3310
      %v3343 = vsub.f32 0.0, %v3311
      %v3344 = vsub.f32 0.0, %v3312
      %v3345 = vsub.f32 0.0, %v3313
      %v3346 = vsub.f32 0.0, %v3314
      %v3347 = vsub.f32 0.0, %v3315
      %v3348 = vsub.f32 0.0, %v3316
      %v3349 = vsub.f32 0.0, %v3317
      %v3350 = vsub.f32 0.0, %v3318
      %v3351 = vsub.f32 0.0, %v3319
      %v3352 = vsub.f32 0.0, %v3320
      %v3353 = vsub.f32 0.0, %v3321
      %v3354 = vsub.f32 0.0, %v3322
      %v3355 = vsub.f32 0.0, %v3323
      %v3356 = vsub.f32 0.0, %v3324
      %v3357 = vsub.f32 0.0, %v3325
      %v3358 = vsub.f32 0.0, %v3326
      %v3359 = vsub.f32 0.0, %v3327
      %v3360 = vsub.f32 0.0, %v3328
      %v3361 = vsub.f32 0.0, %v3329
      %v3362 = vsub.f32 0.0, %v3330
      %v3363 = vsub.f32 0.0, %v3331
      %v3364 = vmul.f32 %v3332, 1.442695
      %v3365 = vpow.pop %v3364
      %v3366 = vmul.f32 %v3333, 1.442695
      %v3367 = vpow.pop %v3366
      %v3368 = vmul.f32 %v3334, 1.442695
      %v3369 = vpow.pop %v3368
      %v3370 = vmul.f32 %v3335, 1.442695
      %v3371 = vpow.pop %v3370
      %v3372 = vmul.f32 %v3336, 1.442695
      %v3373 = vpow.pop %v3372
      %v3374 = vmul.f32 %v3337, 1.442695
      %v3375 = vpow.pop %v3374
      %v3376 = vmul.f32 %v3338, 1.442695
      %v3377 = vpow.pop %v3376
      %v3378 = vmul.f32 %v3339, 1.442695
      %v3379 = vpow.pop %v3378
      %v3380 = vmul.f32 %v3340, 1.442695
      %v3381 = vpow.pop %v3380
      %v3382 = vmul.f32 %v3341, 1.442695
      %v3383 = vpow.pop %v3382
      %v3384 = vmul.f32 %v3342, 1.442695
      %v3385 = vpow.pop %v3384
      %v3386 = vmul.f32 %v3343, 1.442695
      %v3387 = vpow.pop %v3386
      %v3388 = vmul.f32 %v3344, 1.442695
      %v3389 = vpow.pop %v3388
      %v3390 = vmul.f32 %v3345, 1.442695
      %v3391 = vpow.pop %v3390
      %v3392 = vmul.f32 %v3346, 1.442695
      %v3393 = vpow.pop %v3392
      %v3394 = vmul.f32 %v3347, 1.442695
      %v3395 = vpow.pop %v3394
      %v3396 = vmul.f32 %v3348, 1.442695
      %v3397 = vpow.pop %v3396
      %v3398 = vmul.f32 %v3349, 1.442695
      %v3399 = vpow.pop %v3398
      %v3400 = vmul.f32 %v3350, 1.442695
      %v3401 = vpow.pop %v3400
      %v3402 = vmul.f32 %v3351, 1.442695
      %v3403 = vpow.pop %v3402
      %v3404 = vmul.f32 %v3352, 1.442695
      %v3405 = vpow.pop %v3404
      %v3406 = vmul.f32 %v3353, 1.442695
      %v3407 = vpow.pop %v3406
      %v3408 = vmul.f32 %v3354, 1.442695
      %v3409 = vpow.pop %v3408
      %v3410 = vmul.f32 %v3355, 1.442695
      %v3411 = vpow.pop %v3410
      %v3412 = vmul.f32 %v3356, 1.442695
      %v3413 = vpow.pop %v3412
      %v3414 = vmul.f32 %v3357, 1.442695
      %v3415 = vpow.pop %v3414
      %v3416 = vmul.f32 %v3358, 1.442695
      %v3417 = vpow.pop %v3416
      %v3418 = vmul.f32 %v3359, 1.442695
      %v3419 = vpow.pop %v3418
      %v3420 = vmul.f32 %v3360, 1.442695
      %v3421 = vpow.pop %v3420
      %v3422 = vmul.f32 %v3361, 1.442695
      %v3423 = vpow.pop %v3422
      %v3424 = vmul.f32 %v3362, 1.442695
      %v3425 = vpow.pop %v3424
      %v3426 = vmul.f32 %v3363, 1.442695
      %v3427 = vpow.pop %v3426
      %v3428 = vadd.f32 %v3365, 1.0
      %v3429 = vadd.f32 %v3367, 1.0
      %v3430 = vadd.f32 %v3369, 1.0
      %v3431 = vadd.f32 %v3371, 1.0
      %v3432 = vadd.f32 %v3373, 1.0
      %v3433 = vadd.f32 %v3375, 1.0
      %v3434 = vadd.f32 %v3377, 1.0
      %v3435 = vadd.f32 %v3379, 1.0
      %v3436 = vadd.f32 %v3381, 1.0
      %v3437 = vadd.f32 %v3383, 1.0
      %v3438 = vadd.f32 %v3385, 1.0
      %v3439 = vadd.f32 %v3387, 1.0
      %v3440 = vadd.f32 %v3389, 1.0
      %v3441 = vadd.f32 %v3391, 1.0
      %v3442 = vadd.f32 %v3393, 1.0
      %v3443 = vadd.f32 %v3395, 1.0
      %v3444 = vadd.f32 %v3397, 1.0
      %v3445 = vadd.f32 %v3399, 1.0
      %v3446 = vadd.f32 %v3401, 1.0
      %v3447 = vadd.f32 %v3403, 1.0
      %v3448 = vadd.f32 %v3405, 1.0
      %v3449 = vadd.f32 %v3407, 1.0
      %v3450 = vadd.f32 %v3409, 1.0
      %v3451 = vadd.f32 %v3411, 1.0
      %v3452 = vadd.f32 %v3413, 1.0
      %v3453 = vadd.f32 %v3415, 1.0
      %v3454 = vadd.f32 %v3417, 1.0
      %v3455 = vadd.f32 %v3419, 1.0
      %v3456 = vadd.f32 %v3421, 1.0
      %v3457 = vadd.f32 %v3423, 1.0
      %v3458 = vadd.f32 %v3425, 1.0
      %v3459 = vadd.f32 %v3427, 1.0
      %v3460 = vrcp.pop %v3428
      %v3461 = vrcp.pop %v3429
      %v3462 = vrcp.pop %v3430
      %v3463 = vrcp.pop %v3431
      %v3464 = vrcp.pop %v3432
      %v3465 = vrcp.pop %v3433
      %v3466 = vrcp.pop %v3434
      %v3467 = vrcp.pop %v3435
      %v3468 = vrcp.pop %v3436
      %v3469 = vrcp.pop %v3437
      %v3470 = vrcp.pop %v3438
      %v3471 = vrcp.pop %v3439
      %v3472 = vrcp.pop %v3440
      %v3473 = vrcp.pop %v3441
      %v3474 = vrcp.pop %v3442
      %v3475 = vrcp.pop %v3443
      %v3476 = vrcp.pop %v3444
      %v3477 = vrcp.pop %v3445
      %v3478 = vrcp.pop %v3446
      %v3479 = vrcp.pop %v3447
      %v3480 = vrcp.pop %v3448
      %v3481 = vrcp.pop %v3449
      %v3482 = vrcp.pop %v3450
      %v3483 = vrcp.pop %v3451
      %v3484 = vrcp.pop %v3452
      %v3485 = vrcp.pop %v3453
      %v3486 = vrcp.pop %v3454
      %v3487 = vrcp.pop %v3455
      %v3488 = vrcp.pop %v3456
      %v3489 = vrcp.pop %v3457
      %v3490 = vrcp.pop %v3458
      %v3491 = vrcp.pop %v3459
      %v3492 = vmul.f32 %v3300, %v3460
      %v3493 = vmul.f32 %v3301, %v3461
      %v3494 = vmul.f32 %v3302, %v3462
      %v3495 = vmul.f32 %v3303, %v3463
      %v3496 = vmul.f32 %v3304, %v3464
      %v3497 = vmul.f32 %v3305, %v3465
      %v3498 = vmul.f32 %v3306, %v3466
      %v3499 = vmul.f32 %v3307, %v3467
      %v3500 = vmul.f32 %v3308, %v3468
      %v3501 = vmul.f32 %v3309, %v3469
      %v3502 = vmul.f32 %v3310, %v3470
      %v3503 = vmul.f32 %v3311, %v3471
      %v3504 = vmul.f32 %v3312, %v3472
      %v3505 = vmul.f32 %v3313, %v3473
      %v3506 = vmul.f32 %v3314, %v3474
      %v3507 = vmul.f32 %v3315, %v3475
      %v3508 = vmul.f32 %v3316, %v3476
      %v3509 = vmul.f32 %v3317, %v3477
      %v3510 = vmul.f32 %v3318, %v3478
      %v3511 = vmul.f32 %v3319, %v3479
      %v3512 = vmul.f32 %v3320, %v3480
      %v3513 = vmul.f32 %v3321, %v3481
      %v3514 = vmul.f32 %v3322, %v3482
      %v3515 = vmul.f32 %v3323, %v3483
      %v3516 = vmul.f32 %v3324, %v3484
      %v3517 = vmul.f32 %v3325, %v3485
      %v3518 = vmul.f32 %v3326, %v3486
      %v3519 = vmul.f32 %v3327, %v3487
      %v3520 = vmul.f32 %v3328, %v3488
      %v3521 = vmul.f32 %v3329, %v3489
      %v3522 = vmul.f32 %v3330, %v3490
      %v3523 = vmul.f32 %v3331, %v3491
      %v3524 = vpack.c.bf16 %v3494, %v3492
      %v3525 = vpack.c.bf16 %v3495, %v3493
      %v3526 = vpack.c.bf16 %v3498, %v3496
      %v3527 = vpack.c.bf16 %v3499, %v3497
      %v3528 = vpack.c.bf16 %v3502, %v3500
      %v3529 = vpack.c.bf16 %v3503, %v3501
      %v3530 = vpack.c.bf16 %v3506, %v3504
      %v3531 = vpack.c.bf16 %v3507, %v3505
      %v3532 = vpack.c.bf16 %v3510, %v3508
      %v3533 = vpack.c.bf16 %v3511, %v3509
      %v3534 = vpack.c.bf16 %v3514, %v3512
      %v3535 = vpack.c.bf16 %v3515, %v3513
      %v3536 = vpack.c.bf16 %v3518, %v3516
      %v3537 = vpack.c.bf16 %v3519, %v3517
      %v3538 = vpack.c.bf16 %v3522, %v3520
      %v3539 = vpack.c.bf16 %v3523, %v3521
      %3540 = vmatprep.subr.bf16.mxu0 %v3525
      %3541 = vmatpush1.bf16.msra.mxu0 %v3524
      %3542 = vmatprep.subr.bf16.mxu0 %v3527
      %3543 = vmatpush1.bf16.msra.mxu0 %v3526
      %3544 = vmatprep.subr.bf16.mxu0 %v3529
      %3545 = vmatpush1.bf16.msra.mxu0 %v3528
      %3546 = vmatprep.subr.bf16.mxu0 %v3531
      %3547 = vmatpush1.bf16.msra.mxu0 %v3530
      %3548 = vmatprep.subr.bf16.mxu0 %v3533
      %3549 = vmatpush1.bf16.msra.mxu0 %v3532
      %3550 = vmatprep.subr.bf16.mxu0 %v3535
      %3551 = vmatpush1.bf16.msra.mxu0 %v3534
      %3552 = vmatprep.subr.bf16.mxu0 %v3537
      %3553 = vmatpush1.bf16.msra.mxu0 %v3536
      %3554 = vmatprep.subr.bf16.mxu0 %v3539
      %3555 = vmatpush1.bf16.msra.mxu0 %v3538
      %3556 = vmatprep.subr.bf16.mxu0 0
      %3557 = vmatpush1.bf16.msra.mxu0 0
      %3558 = vmatprep.subr.bf16.mxu0 0
      %3559 = vmatpush1.bf16.msra.mxu0 0
      %3560 = vmatprep.subr.bf16.mxu0 0
      %3561 = vmatpush1.bf16.msra.mxu0 0
      %3562 = vmatprep.subr.bf16.mxu0 0
      %3563 = vmatpush1.bf16.msra.mxu0 0
      %3564 = vmatprep.subr.bf16.mxu0 0
      %3565 = vmatpush1.bf16.msra.mxu0 0
      %3566 = vmatprep.subr.bf16.mxu0 0
      %3567 = vmatpush1.bf16.msra.mxu0 0
      %3568 = vmatprep.subr.bf16.mxu0 0
      %3569 = vmatpush1.bf16.msra.mxu0 0
      %3570 = vmatprep.subr.bf16.mxu0 0
      %3571 = vmatpush1.bf16.msra.mxu0 0
      %3572 = vmatprep.mubr.bf16.mxu0 0
      %3573 = vmatmul.mubr.bf16.gmra.mrb[0].mxu0 %v1232
      %v3574 = vpop.f32.mrb[0].mxu0
      %v3575 = vadd.f32 0.0, %v3574
      %v3576 = vpop.f32.mrb[0].mxu0
      %v3577 = vadd.f32 0.0, %v3576
      %v3578 = vpop.f32.mrb[0].mxu0
      %v3579 = vadd.f32 0.0, %v3578
      %v3580 = vpop.f32.mrb[0].mxu0
      %v3581 = vadd.f32 0.0, %v3580
      %3582 = vdwg.mxu0
      %v3583 = vsub.f32 0.0, %v3575
      %v3584 = vsub.f32 0.0, %v3577
      %v3585 = vsub.f32 0.0, %v3579
      %v3586 = vsub.f32 0.0, %v3581
      %v3587 = vmul.f32 %v3583, 1.442695
      %v3588 = vpow.pop %v3587
      %v3589 = vmul.f32 %v3584, 1.442695
      %v3590 = vpow.pop %v3589
      %v3591 = vmul.f32 %v3585, 1.442695
      %v3592 = vpow.pop %v3591
      %v3593 = vmul.f32 %v3586, 1.442695
      %v3594 = vpow.pop %v3593
      %v3595 = vadd.f32 %v3588, 1.0
      %v3596 = vadd.f32 %v3590, 1.0
      %v3597 = vadd.f32 %v3592, 1.0
      %v3598 = vadd.f32 %v3594, 1.0
      %v3599 = vrcp.pop %v3595
      %v3600 = vrcp.pop %v3596
      %v3601 = vrcp.pop %v3597
      %v3602 = vrcp.pop %v3598
      %s3603 = scalar_lea.vmem %s231, 96
      %3604 = vst [vmem:[%s3603] sm:$0xff] %v3599
      %3605 = vst [vmem:[%s3603 + $0x8] sm:$0xff] %v3600
      %3606 = vst [vmem:[%s3603 + $0x10] sm:$0xff] %v3601
      %3607 = vst [vmem:[%s3603 + $0x18] sm:$0xff] %v3602
      %s3608 = smul.u32 4, %s16
      %p3609 = scmp.lt.s32.totalorder %s3608, 7
      %s3610 = scalar_select %p3609, %s3608, 7
      %s3611 = smul.addr %s3610, 4
      %s3612 = smul.addr %s3611, 8
      %s3613 = scalar_lea.vmem %s5, %s3612
      // Predicated region
      $region41: #{_lambda_.3} parent=39 // pred_check
        %p3614 = pneg %p144
      $region42: #{_lambda_.3} parent=39 // pred_check_branch
        %3616 = sbr.rel (%p3614) target = $region44
      $region43: #{_lambda_.3} parent=39 // pred_region
        %s3617 = smul.u32 4, %s16
      $region44: #{_lambda_.3} parent=39 // pred_fallthru
        _
    $region40: #{_lambda_.3} parent=5 // pred_fallthru
      _
    %p3618 = scmp.le.s32.totalorder 2, %s11
    // Predicated region
    $region45: #{_lambda_.3} parent=5 // pred_check
      %p3619 = pneg %p3618
    $region46: #{_lambda_.3} parent=5 // pred_check_branch
      %3621 = sbr.rel (%p3619) target = $region48
    $region47: #{_lambda_.3} parent=5 // pred_region
      %s3622 = ssub.s32 %s11, 2
      // Predicated region
      $region49: #{_lambda_.3} parent=47 // pred_check
        %p3623 = pneg %p150
      $region50: #{_lambda_.3} parent=47 // pred_check_branch
        %3625 = sbr.rel (%p3623) target = $region52
      $region51: #{_lambda_.3} parent=47 // pred_region
        %s3626 = smul.u32 4, %s17
        %p3627 = scmp.lt.s32.totalorder %s3626, 7
        %s3628 = scalar_select %p3627, %s3626, 7
        %s3629 = smul.addr %s3628, 4
        %s3630 = smul.addr %s3629, 8
        %s3631 = scalar_lea.vmem %s5, %s3630
      $region52: #{_lambda_.3} parent=47 // pred_fallthru
        _
    $region48: #{_lambda_.3} parent=5 // pred_fallthru
      _
  $region6: #{_lambda_.3} parent=0 // loop_footer
    %s15 = sadd.s32 1, %s11
  $region7: #{_lambda_.3} parent=0 // loop_footer_branch
    %10 = sbr.rel target = $region3
  $region8: #{_lambda_.3} parent=0 // loop_exit
    _

</llo_original>
